<compile_context>
chip_gen: v7x
topology: tpu7x:2x2x1
jax: 0.10.0
libtpu: 0.0.40
codegen_flags: <defaults>
</compile_context>

<pallas_src>
import functools
import math

import jax
import jax.numpy as jnp
from jax.experimental import pallas as pl
from jax.experimental.pallas import tpu as pltpu


def _rmsnorm(x, w, eps):
    ms = jnp.mean(x * x, axis=-1, keepdims=True)
    return x * jax.lax.rsqrt(ms + eps) * w


def block_kernel(
    # batch-folded activation tile + grid-invariant parameters (VMEM)
    x_ref, pos_ref,
    norm1_w_ref,
    wq_ref, bq_ref, wk_ref, bk_ref, wv_ref, bv_ref,
    qn_w_ref, kn_w_ref,
    wo_ref, bo_ref,
    norm2_w_ref,
    w1_ref, b1_ref, b2_ref, ffn_norm_w_ref,
    # large SwiGLU weights left in HBM and streamed below
    wg_hbm, bg_hbm, w2_hbm,
    # output
    o_ref,
    # scratch
    ffn_acc_ref,
    *, n_heads, seq_len, eps, ffn_chunk,
):
    M, H = x_ref.shape            # M = Bt * seq_len (batch folded into MXU M dim)
    Bt = M // seq_len
    hd = H // n_heads
    Hm = w1_ref.shape[1]          # mlp hidden (4*H)
    Cn = ffn_chunk
    n_chunks = Hm // Cn
    cdt = jnp.bfloat16            # MXU operand dtype for every big matmul

    xb = x_ref[...]               # (M, H) f32

    # ---------------- Attention branch ----------------
    h = _rmsnorm(xb, norm1_w_ref[...], eps)
    hb = h.astype(cdt)
    q = jnp.dot(hb, wq_ref[...], preferred_element_type=jnp.float32) + bq_ref[...]
    k = jnp.dot(hb, wk_ref[...], preferred_element_type=jnp.float32) + bk_ref[...]
    v = jnp.dot(hb, wv_ref[...], preferred_element_type=jnp.float32) + bv_ref[...]

    # pos is (S, H); broadcast over the folded batch after the (Bt, S, H) view.
    # NOTE: this reshape is sublane-aligned (free) when seq_len % 8 == 0.
    pos = pos_ref[...]
    q3 = _rmsnorm(q.reshape(Bt, seq_len, H) + pos[None], qn_w_ref[...], eps)
    k3 = _rmsnorm(k.reshape(Bt, seq_len, H) + pos[None], kn_w_ref[...], eps)
    v3 = v.reshape(Bt, seq_len, H)

    # bf16 operands for the attention einsums; softmax math stays in f32.
    q3b = q3.astype(cdt)
    k3b = k3.astype(cdt)
    v3b = v3.astype(cdt)

    scale = 1.0 / math.sqrt(hd)
    ctx_heads = []
    for hh in range(n_heads):     # static, small n_heads
        cs = slice(hh * hd, (hh + 1) * hd)
        s = jnp.einsum("bqd,bkd->bqk", q3b[:, :, cs], k3b[:, :, cs],
                       preferred_element_type=jnp.float32) * scale
        s = s - jnp.max(s, axis=-1, keepdims=True)
        p = jnp.exp(s)
        p = p * pl.reciprocal(jnp.sum(p, axis=-1, keepdims=True), approx=True)
        ctx_heads.append(
            jnp.einsum("bqk,bkd->bqd", p.astype(cdt), v3b[:, :, cs],
                       preferred_element_type=jnp.float32))
    # One full-K (K = H) output projection instead of per-head K = hd dots:
    # keeps the MXU contraction depth occupied; the lane concat is cheap XLU work.
    ctx_all = jnp.concatenate(ctx_heads, axis=-1).reshape(M, H)
    attn_out = jnp.dot(ctx_all.astype(cdt), wo_ref[...],
                       preferred_element_type=jnp.float32) + bo_ref[...]
    x1 = xb + attn_out            # residual 1

    # ---------------- FeedForward branch (SwiGLU streamed from HBM) ----------------
    h2 = _rmsnorm(x1, norm2_w_ref[...], eps)
    f = jnp.dot(h2.astype(cdt), w1_ref[...],
                preferred_element_type=jnp.float32) + b1_ref[...]      # (M, Hm)
    fb = f.astype(cdt)

    # Stream wg/bg/w2 in paired column chunks: per chunk c
    #   g1_c = f @ wg[:, c],  g2_c = f @ wg[:, Hm + c],
    #   acc += (silu(g1_c) * g2_c) @ w2[c_rows, :]
    # Only a (2, Hm, Cn) + (Cn, H) slice is resident (double-buffered by the
    # inner pipeline) instead of the full gate weight; weight DMA overlaps the
    # SwiGLU compute.  w1 (H x 4H bf16) is small enough to stay resident.
    # TODO(synk): on v7x, wg could additionally be fp8-quantized with
    # per-output-channel scales (needs accuracy validation).
    ffn_acc_ref[...] = jnp.zeros_like(ffn_acc_ref)

    def swiglu_chunk(wgp_ref, bgp_ref, w2c_ref):
        bgc = bgp_ref[...]                                             # (2, Cn) f32
        g1 = jnp.dot(fb, wgp_ref[0], preferred_element_type=jnp.float32) + bgc[0:1, :]
        g2 = jnp.dot(fb, wgp_ref[1], preferred_element_type=jnp.float32) + bgc[1:2, :]
        mc = (g1 * jax.nn.sigmoid(g1)) * g2                            # (M, Cn) f32
        ffn_acc_ref[...] += jnp.dot(mc.astype(cdt), w2c_ref[...],
                                    preferred_element_type=jnp.float32)

    pltpu.emit_pipeline(
        swiglu_chunk,
        grid=(n_chunks,),
        in_specs=[
            pl.BlockSpec((2, Hm, Cn), lambda c: (0, 0, c)),   # paired gate halves
            pl.BlockSpec((2, Cn), lambda c: (0, c)),          # paired gate biases
            pl.BlockSpec((Cn, H), lambda c: (c, 0)),          # down-proj row chunk
        ],
    )(wg_hbm, bg_hbm, w2_hbm)

    m = ffn_acc_ref[...] + b2_ref[...]
    m = _rmsnorm(m, ffn_norm_w_ref[...], eps)
    o_ref[...] = x1 + m           # residual 2


def _pick_bt(B, S, rows_target):
    """Batch elements folded per grid step.  Ensures M = Bt*S % 8 == 0 and
    prefers >= 2 grid steps (v7x shards the 'parallel' axis over 2 cores)."""
    limit = max(1, rows_target // max(1, S))
    fallback = None
    for bt in range(min(B, limit), 0, -1):
        if B % bt or (bt * S) % 8:
            continue
        if B // bt >= 2:
            return bt
        if fallback is None:
            fallback = bt
    if fallback is not None:
        return fallback
    return B          # single block == full array (exempt from (8,128) rule)


def _pick_ffn_chunk(Hm, cap=512):
    """Lane-aligned column chunk of the gate weight (Hm % Cn == 0, Cn % 128 == 0)."""
    if Hm % 128:
        return Hm
    cn = min(Hm, max(128, (cap // 128) * 128))
    while Hm % cn:
        cn -= 128
    return cn


def _vmem_estimate(M, S, H, Hm, Cn):
    f32, bf16 = 4, 2
    resident = (S * H * f32 + 5 * H * f32
                + 4 * H * H * bf16 + 4 * H * f32
                + H * Hm * bf16 + Hm * f32 + H * f32)
    streamed_chunk = 2 * Hm * Cn * bf16 + 2 * Cn * f32 + Cn * H * bf16
    io = 2 * 2 * M * H * f32
    scratch = M * H * f32
    acts = M * (8 * H + 3 * Hm + 4 * Cn) * f32
    return int(1.5 * (2 * resident + 2 * streamed_chunk + io + scratch + acts))


def _vmem_limit_bytes(est_bytes):
    cap = 128 * 1024 * 1024
    try:
        info = pltpu.get_tpu_info()
        cap = int(getattr(info, "vmem_capacity_bytes", cap))
    except Exception:
        pass
    lo = 32 * 1024 * 1024
    hi = max(lo, cap - 16 * 1024 * 1024)      # leave headroom for compiler scratch
    return int(min(hi, max(lo, est_bytes)))


def block_forward(x, params, *, n_heads, eps=1e-5, rows_target=256, ffn_chunk_cap=512):
    """x: (B, S, H) float32.  params: dict of pre-transposed weights (in, out)."""
    B, S, H = x.shape
    Hm = params["w1"].shape[1]

    Bt = _pick_bt(B, S, rows_target)
    M = Bt * S
    Cn = _pick_ffn_chunk(Hm, ffn_chunk_cap)

    x2 = x.reshape(B * S, H)                                 # metadata-only

    # Pre-pack the gate weight/bias so chunk c of g1/g2 each comes from one
    # contiguous lane slab (in a real model this is done once at load time).
    wg, bg = params["wg"], params["bg"]
    wg_paired = jnp.stack([wg[:, :Hm], wg[:, Hm:]], axis=0)                   # (2, Hm, Hm)
    bg_paired = jnp.concatenate([bg[:, :Hm], bg[:, Hm:]], 0).astype(jnp.float32)  # (2, Hm)

    kernel = functools.partial(block_kernel, n_heads=n_heads, seq_len=S,
                               eps=eps, ffn_chunk=Cn)
    vmem_limit = _vmem_limit_bytes(_vmem_estimate(M, S, H, Hm, Cn))

    def call(single_buffer_consts):
        const_mode = ({"pipeline_mode": pl.Buffered(1)}
                      if single_buffer_consts else {})

        def const2(shape):
            # grid-invariant operand: same block every step; single-buffered
            # when the build supports pipeline_mode=pl.Buffered(1).
            return pl.BlockSpec(shape, lambda b: (0, 0), **const_mode)

        in_specs = [
            pl.BlockSpec((M, H), lambda b: (b, 0)),          # x (batch-folded rows)
            const2((S, H)),                                   # pos
            const2((1, H)),                                   # norm1_w
            const2((H, H)), const2((1, H)),                   # wq, bq
            const2((H, H)), const2((1, H)),                   # wk, bk
            const2((H, H)), const2((1, H)),                   # wv, bv
            const2((1, H)), const2((1, H)),                   # q_norm_w, k_norm_w
            const2((H, H)), const2((1, H)),                   # wo, bo
            const2((1, H)),                                   # norm2_w
            const2((H, Hm)), const2((1, Hm)),                 # w1, b1
            const2((1, H)),                                   # b2
            const2((1, H)),                                   # ffn_norm_w
            pl.BlockSpec(memory_space=pl.ANY),                # wg_paired (HBM, streamed)
            pl.BlockSpec(memory_space=pl.ANY),                # bg_paired (HBM, streamed)
            pl.BlockSpec(memory_space=pl.ANY),                # w2        (HBM, streamed)
        ]
        return pl.pallas_call(
            kernel,
            out_shape=jax.ShapeDtypeStruct((B * S, H), jnp.float32),
            grid_spec=pltpu.PrefetchScalarGridSpec(
                num_scalar_prefetch=0,
                grid=(B // Bt,),
                in_specs=in_specs,
                out_specs=pl.BlockSpec((M, H), lambda b: (b, 0)),
                scratch_shapes=[pltpu.VMEM((M, H), jnp.float32)],
            ),
            compiler_params=pltpu.CompilerParams(
                dimension_semantics=("parallel",),
                vmem_limit_bytes=vmem_limit,
            ),
        )(
            x2, params["pos"].astype(jnp.float32),
            params["norm1_w"],
            params["wq"], params["bq"], params["wk"], params["bk"],
            params["wv"], params["bv"],
            params["q_norm_w"], params["k_norm_w"],
            params["wo"], params["bo"],
            params["norm2_w"],
            params["w1"], params["b1"],
            params["b2"], params["ffn_norm_w"],
            wg_paired, bg_paired, params["w2"],
        )

    try:
        out2 = call(single_buffer_consts=True)
    except Exception:
        # pl.Buffered(1) is a pure VMEM-footprint optimization; if this
        # JAX/Mosaic build rejects buffer_count=1, fall back to the default
        # double-buffered const operands (identical numerics).
        out2 = call(single_buffer_consts=False)
    return out2.reshape(B, S, H)


def block_reference(x, params, *, n_heads, eps=1e-5):
    """Pure-JAX f32 reference mirroring the PyTorch forward (eval mode, mask=None)."""
    p = {k: v.astype(jnp.float32) for k, v in params.items()}
    B, S, H = x.shape
    hd = H // n_heads

    def rms(v, w):
        return v * jax.lax.rsqrt(jnp.mean(v * v, -1, keepdims=True) + eps) * w

    h = rms(x, p["norm1_w"])
    q = h @ p["wq"] + p["bq"]
    k = h @ p["wk"] + p["bk"]
    v = h @ p["wv"] + p["bv"]
    q = rms(q + p["pos"], p["q_norm_w"])
    k = rms(k + p["pos"], p["k_norm_w"])
    q = q.reshape(B, S, n_heads, hd).transpose(0, 2, 1, 3)
    k = k.reshape(B, S, n_heads, hd).transpose(0, 2, 1, 3)
    v = v.reshape(B, S, n_heads, hd).transpose(0, 2, 1, 3)
    s = jnp.einsum("bhqd,bhkd->bhqk", q, k) / math.sqrt(hd)
    pr = jax.nn.softmax(s, axis=-1)
    o = jnp.einsum("bhqk,bhkd->bhqd", pr, v).transpose(0, 2, 1, 3).reshape(B, S, H)
    o = o @ p["wo"] + p["bo"]
    x1 = x + o

    h2 = rms(x1, p["norm2_w"])
    f = h2 @ p["w1"] + p["b1"]
    g = f @ p["wg"] + p["bg"]
    g1, g2 = jnp.split(g, 2, axis=-1)
    m = jax.nn.silu(g1) * g2
    m = m @ p["w2"] + p["b2"]
    m = rms(m, p["ffn_norm_w"])
    return x1 + m


def init_params(key, *, hidden, mlp_ratio, seq_len, max_length):
    """Deterministic synthetic parameters (not a checkpoint load).
    Linear weights stored pre-transposed as (in, out); biases as (1, out).
    Large matmul weights are stored in bf16; norms/biases in f32."""
    Hm = hidden * mlp_ratio
    keys = jax.random.split(key, 16)
    std = 0.02
    bf16 = jnp.bfloat16

    def w(k, shape, dtype=jnp.float32):
        return (jax.random.normal(k, shape, jnp.float32) * std).astype(dtype)

    params = {
        "pos": w(keys[0], (max_length, hidden))[:seq_len],
        "norm1_w": jnp.ones((1, hidden), jnp.float32),
        "wq": w(keys[1], (hidden, hidden), bf16), "bq": w(keys[2], (1, hidden)),
        "wk": w(keys[3], (hidden, hidden), bf16), "bk": w(keys[4], (1, hidden)),
        "wv": w(keys[5], (hidden, hidden), bf16), "bv": w(keys[6], (1, hidden)),
        "q_norm_w": jnp.ones((1, hidden), jnp.float32),
        "k_norm_w": jnp.ones((1, hidden), jnp.float32),
        "wo": w(keys[7], (hidden, hidden), bf16), "bo": w(keys[8], (1, hidden)),
        "norm2_w": jnp.ones((1, hidden), jnp.float32),
        "w1": w(keys[9], (hidden, Hm), bf16), "b1": w(keys[10], (1, Hm)),
        "wg": w(keys[11], (Hm, 2 * Hm), bf16), "bg": w(keys[12], (1, 2 * Hm)),
        "w2": w(keys[13], (Hm, hidden), bf16), "b2": w(keys[14], (1, hidden)),
        "ffn_norm_w": jnp.ones((1, hidden), jnp.float32),
    }
    return params


if __name__ == "__main__":
    B, S, H = 2, 8, 32
    N_HEADS = 4
    MLP_RATIO = 4
    MAX_LEN = 77 + 196
    EPS = 1e-5

    key = jax.random.PRNGKey(0)
    kx, kp = jax.random.split(key)
    x = jax.random.normal(kx, (B, S, H), jnp.float32)
    params = init_params(kp, hidden=H, mlp_ratio=MLP_RATIO,
                         seq_len=S, max_length=MAX_LEN)

    out = block_forward(x, params, n_heads=N_HEADS, eps=EPS)
    out = jax.block_until_ready(out)

    ref = block_reference(x, params, n_heads=N_HEADS, eps=EPS)
    assert out.shape == (B, S, H)
    max_err = float(jnp.max(jnp.abs(out - ref)))
    assert jnp.allclose(out, ref, atol=5e-2, rtol=5e-2), max_err

    print("KERNEL_OK")
</pallas_src>

<mosaic_0001>
module attributes {stable_mosaic.version = 11 : i64} {
  func.func @block_kernel(%arg0: i32, %arg1: memref<8x32xf32, #tpu.memory_space<vmem>>, %arg2: memref<8x32xf32, #tpu.memory_space<vmem>>, %arg3: memref<1x32xf32, #tpu.memory_space<vmem>>, %arg4: memref<32x32xbf16, #tpu.memory_space<vmem>>, %arg5: memref<1x32xf32, #tpu.memory_space<vmem>>, %arg6: memref<32x32xbf16, #tpu.memory_space<vmem>>, %arg7: memref<1x32xf32, #tpu.memory_space<vmem>>, %arg8: memref<32x32xbf16, #tpu.memory_space<vmem>>, %arg9: memref<1x32xf32, #tpu.memory_space<vmem>>, %arg10: memref<1x32xf32, #tpu.memory_space<vmem>>, %arg11: memref<1x32xf32, #tpu.memory_space<vmem>>, %arg12: memref<32x32xbf16, #tpu.memory_space<vmem>>, %arg13: memref<1x32xf32, #tpu.memory_space<vmem>>, %arg14: memref<1x32xf32, #tpu.memory_space<vmem>>, %arg15: memref<32x128xbf16, #tpu.memory_space<vmem>>, %arg16: memref<1x128xf32, #tpu.memory_space<vmem>>, %arg17: memref<1x32xf32, #tpu.memory_space<vmem>>, %arg18: memref<1x32xf32, #tpu.memory_space<vmem>>, %arg19: memref<2x128x128xbf16, #tpu.memory_space<any>>, %arg20: memref<2x128xf32, #tpu.memory_space<any>>, %arg21: memref<128x32xbf16, #tpu.memory_space<any>>, %arg22: memref<8x32xf32, #tpu.memory_space<vmem>>, %arg23: memref<8x32xf32, #tpu.memory_space<vmem>>) attributes {dimension_semantics = [#tpu.dimension_semantics<parallel>], iteration_bounds = array<i64: 2>, scalar_prefetch = 0 : i64, scratch_operands = 1 : i64, tpu.core_type = #tpu.core_type<tc>, window_params = [{transform_indices = @transform_0, window_bounds = array<i64: 8, 32>}, {pipeline_mode = #tpu.pipeline_mode<synchronous>, transform_indices = @transform_1, window_bounds = array<i64: 8, 32>}, {pipeline_mode = #tpu.pipeline_mode<synchronous>, transform_indices = @transform_2, window_bounds = array<i64: 1, 32>}, {pipeline_mode = #tpu.pipeline_mode<synchronous>, transform_indices = @transform_3, window_bounds = array<i64: 32, 32>}, {pipeline_mode = #tpu.pipeline_mode<synchronous>, transform_indices = @transform_4, window_bounds = array<i64: 1, 32>}, {pipeline_mode = #tpu.pipeline_mode<synchronous>, transform_indices = @transform_5, window_bounds = array<i64: 32, 32>}, {pipeline_mode = #tpu.pipeline_mode<synchronous>, transform_indices = @transform_6, window_bounds = array<i64: 1, 32>}, {pipeline_mode = #tpu.pipeline_mode<synchronous>, transform_indices = @transform_7, window_bounds = array<i64: 32, 32>}, {pipeline_mode = #tpu.pipeline_mode<synchronous>, transform_indices = @transform_8, window_bounds = array<i64: 1, 32>}, {pipeline_mode = #tpu.pipeline_mode<synchronous>, transform_indices = @transform_9, window_bounds = array<i64: 1, 32>}, {pipeline_mode = #tpu.pipeline_mode<synchronous>, transform_indices = @transform_10, window_bounds = array<i64: 1, 32>}, {pipeline_mode = #tpu.pipeline_mode<synchronous>, transform_indices = @transform_11, window_bounds = array<i64: 32, 32>}, {pipeline_mode = #tpu.pipeline_mode<synchronous>, transform_indices = @transform_12, window_bounds = array<i64: 1, 32>}, {pipeline_mode = #tpu.pipeline_mode<synchronous>, transform_indices = @transform_13, window_bounds = array<i64: 1, 32>}, {pipeline_mode = #tpu.pipeline_mode<synchronous>, transform_indices = @transform_14, window_bounds = array<i64: 32, 128>}, {pipeline_mode = #tpu.pipeline_mode<synchronous>, transform_indices = @transform_15, window_bounds = array<i64: 1, 128>}, {pipeline_mode = #tpu.pipeline_mode<synchronous>, transform_indices = @transform_16, window_bounds = array<i64: 1, 32>}, {pipeline_mode = #tpu.pipeline_mode<synchronous>, transform_indices = @transform_17, window_bounds = array<i64: 1, 32>}, {}, {}, {}, {transform_indices = @transform_21, window_bounds = array<i64: 8, 32>}]} {
    %c0 = arith.constant 0 : index
    %c0_0 = arith.constant 0 : index
    %0 = vector.load %arg1[%c0, %c0_0] : memref<8x32xf32, #tpu.memory_space<vmem>>, vector<8x32xf32>
    %c0_1 = arith.constant 0 : index
    %c0_2 = arith.constant 0 : index
    %1 = vector.load %arg3[%c0_1, %c0_2] : memref<1x32xf32, #tpu.memory_space<vmem>>, vector<1x32xf32>
    %2 = arith.mulf %0, %0 : vector<8x32xf32>
    %cst = arith.constant dense<0.000000e+00> : vector<8xf32>
    %3 = vector.multi_reduction <add>, %2, %cst [1] : vector<8x32xf32> to vector<8xf32>
    %4 = vector.shape_cast %3 : vector<8xf32> to vector<8x1xf32>
    %cst_3 = arith.constant 3.200000e+01 : f32
    %5 = vector.broadcast %cst_3 : f32 to vector<8x1xf32>
    %6 = arith.divf %4, %5 : vector<8x1xf32>
    %cst_4 = arith.constant 9.99999974E-6 : f32
    %7 = vector.broadcast %cst_4 : f32 to vector<8x1xf32>
    %8 = arith.addf %6, %7 : vector<8x1xf32>
    %9 = math.rsqrt %8 : vector<8x1xf32>
    %10 = vector.broadcast %9 : vector<8x1xf32> to vector<8x32xf32>
    %11 = arith.mulf %0, %10 : vector<8x32xf32>
    %12 = vector.broadcast %1 : vector<1x32xf32> to vector<8x32xf32>
    %13 = arith.mulf %11, %12 : vector<8x32xf32>
    %14 = arith.truncf %13 : vector<8x32xf32> to vector<8x32xbf16>
    %c0_5 = arith.constant 0 : index
    %c0_6 = arith.constant 0 : index
    %15 = vector.load %arg4[%c0_5, %c0_6] : memref<32x32xbf16, #tpu.memory_space<vmem>>, vector<32x32xbf16>
    %cst_7 = arith.constant dense<0.000000e+00> : vector<8x32xf32>
    %16 = tpu.matmul %14, %15, %cst_7 {dimension_numbers = #tpu.dot_dimension_numbers<[1], [0], [0], [1], [0, 0, 1, 1], [], []>} : vector<8x32xbf16>, vector<32x32xbf16>, vector<8x32xf32> -> vector<8x32xf32>
    %c0_8 = arith.constant 0 : index
    %c0_9 = arith.constant 0 : index
    %17 = vector.load %arg5[%c0_8, %c0_9] : memref<1x32xf32, #tpu.memory_space<vmem>>, vector<1x32xf32>
    %18 = vector.broadcast %17 : vector<1x32xf32> to vector<8x32xf32>
    %19 = arith.addf %16, %18 : vector<8x32xf32>
    %c0_10 = arith.constant 0 : index
    %c0_11 = arith.constant 0 : index
    %20 = vector.load %arg6[%c0_10, %c0_11] : memref<32x32xbf16, #tpu.memory_space<vmem>>, vector<32x32xbf16>
    %cst_12 = arith.constant dense<0.000000e+00> : vector<8x32xf32>
    %21 = tpu.matmul %14, %20, %cst_12 {dimension_numbers = #tpu.dot_dimension_numbers<[1], [0], [0], [1], [0, 0, 1, 1], [], []>} : vector<8x32xbf16>, vector<32x32xbf16>, vector<8x32xf32> -> vector<8x32xf32>
    %c0_13 = arith.constant 0 : index
    %c0_14 = arith.constant 0 : index
    %22 = vector.load %arg7[%c0_13, %c0_14] : memref<1x32xf32, #tpu.memory_space<vmem>>, vector<1x32xf32>
    %23 = vector.broadcast %22 : vector<1x32xf32> to vector<8x32xf32>
    %24 = arith.addf %21, %23 : vector<8x32xf32>
    %c0_15 = arith.constant 0 : index
    %c0_16 = arith.constant 0 : index
    %25 = vector.load %arg8[%c0_15, %c0_16] : memref<32x32xbf16, #tpu.memory_space<vmem>>, vector<32x32xbf16>
    %cst_17 = arith.constant dense<0.000000e+00> : vector<8x32xf32>
    %26 = tpu.matmul %14, %25, %cst_17 {dimension_numbers = #tpu.dot_dimension_numbers<[1], [0], [0], [1], [0, 0, 1, 1], [], []>} : vector<8x32xbf16>, vector<32x32xbf16>, vector<8x32xf32> -> vector<8x32xf32>
    %c0_18 = arith.constant 0 : index
    %c0_19 = arith.constant 0 : index
    %27 = vector.load %arg9[%c0_18, %c0_19] : memref<1x32xf32, #tpu.memory_space<vmem>>, vector<1x32xf32>
    %28 = vector.broadcast %27 : vector<1x32xf32> to vector<8x32xf32>
    %29 = arith.addf %26, %28 : vector<8x32xf32>
    %c0_20 = arith.constant 0 : index
    %c0_21 = arith.constant 0 : index
    %30 = vector.load %arg2[%c0_20, %c0_21] : memref<8x32xf32, #tpu.memory_space<vmem>>, vector<8x32xf32>
    %31 = vector.shape_cast %19 : vector<8x32xf32> to vector<1x8x32xf32>
    %32 = vector.shape_cast %30 : vector<8x32xf32> to vector<1x8x32xf32>
    %33 = arith.addf %31, %32 : vector<1x8x32xf32>
    %c0_22 = arith.constant 0 : index
    %c0_23 = arith.constant 0 : index
    %34 = vector.load %arg10[%c0_22, %c0_23] : memref<1x32xf32, #tpu.memory_space<vmem>>, vector<1x32xf32>
    %35 = arith.mulf %33, %33 : vector<1x8x32xf32>
    %cst_24 = arith.constant dense<0.000000e+00> : vector<1x8xf32>
    %36 = vector.multi_reduction <add>, %35, %cst_24 [2] : vector<1x8x32xf32> to vector<1x8xf32>
    %37 = vector.shape_cast %36 : vector<1x8xf32> to vector<1x8x1xf32>
    %cst_25 = arith.constant 3.200000e+01 : f32
    %38 = vector.broadcast %cst_25 : f32 to vector<1x8x1xf32>
    %39 = arith.divf %37, %38 : vector<1x8x1xf32>
    %cst_26 = arith.constant 9.99999974E-6 : f32
    %40 = vector.broadcast %cst_26 : f32 to vector<1x8x1xf32>
    %41 = arith.addf %39, %40 : vector<1x8x1xf32>
    %42 = math.rsqrt %41 : vector<1x8x1xf32>
    %43 = vector.broadcast %42 : vector<1x8x1xf32> to vector<1x8x32xf32>
    %44 = arith.mulf %33, %43 : vector<1x8x32xf32>
    %45 = vector.shape_cast %34 : vector<1x32xf32> to vector<1x1x32xf32>
    %46 = vector.broadcast %45 : vector<1x1x32xf32> to vector<1x8x32xf32>
    %47 = arith.mulf %44, %46 : vector<1x8x32xf32>
    %48 = vector.shape_cast %24 : vector<8x32xf32> to vector<1x8x32xf32>
    %49 = vector.shape_cast %30 : vector<8x32xf32> to vector<1x8x32xf32>
    %50 = arith.addf %48, %49 : vector<1x8x32xf32>
    %c0_27 = arith.constant 0 : index
    %c0_28 = arith.constant 0 : index
    %51 = vector.load %arg11[%c0_27, %c0_28] : memref<1x32xf32, #tpu.memory_space<vmem>>, vector<1x32xf32>
    %52 = arith.mulf %50, %50 : vector<1x8x32xf32>
    %cst_29 = arith.constant dense<0.000000e+00> : vector<1x8xf32>
    %53 = vector.multi_reduction <add>, %52, %cst_29 [2] : vector<1x8x32xf32> to vector<1x8xf32>
    %54 = vector.shape_cast %53 : vector<1x8xf32> to vector<1x8x1xf32>
    %cst_30 = arith.constant 3.200000e+01 : f32
    %55 = vector.broadcast %cst_30 : f32 to vector<1x8x1xf32>
    %56 = arith.divf %54, %55 : vector<1x8x1xf32>
    %cst_31 = arith.constant 9.99999974E-6 : f32
    %57 = vector.broadcast %cst_31 : f32 to vector<1x8x1xf32>
    %58 = arith.addf %56, %57 : vector<1x8x1xf32>
    %59 = math.rsqrt %58 : vector<1x8x1xf32>
    %60 = vector.broadcast %59 : vector<1x8x1xf32> to vector<1x8x32xf32>
    %61 = arith.mulf %50, %60 : vector<1x8x32xf32>
    %62 = vector.shape_cast %51 : vector<1x32xf32> to vector<1x1x32xf32>
    %63 = vector.broadcast %62 : vector<1x1x32xf32> to vector<1x8x32xf32>
    %64 = arith.mulf %61, %63 : vector<1x8x32xf32>
    %65 = vector.shape_cast %29 : vector<8x32xf32> to vector<1x8x32xf32>
    %66 = arith.truncf %47 : vector<1x8x32xf32> to vector<1x8x32xbf16>
    %67 = arith.truncf %64 : vector<1x8x32xf32> to vector<1x8x32xbf16>
    %68 = arith.truncf %65 : vector<1x8x32xf32> to vector<1x8x32xbf16>
    %69 = vector.extract_strided_slice %66 {offsets = [0, 0, 0], sizes = [1, 8, 8], strides = [1, 1, 1]} : vector<1x8x32xbf16> to vector<1x8x8xbf16>
    %70 = vector.extract_strided_slice %67 {offsets = [0, 0, 0], sizes = [1, 8, 8], strides = [1, 1, 1]} : vector<1x8x32xbf16> to vector<1x8x8xbf16>
    "tpu.trace_start"() <{level = 10 : i32, message = "bqd,bkd->bqk"}> : () -> ()
    %cst_32 = arith.constant dense<0.000000e+00> : vector<1x8x8xf32>
    %71 = tpu.matmul %69, %70, %cst_32 {dimension_numbers = #tpu.dot_dimension_numbers<[2], [2], [1], [1], [0, 0, 0, 1, 1, 1], [0], [0]>} : vector<1x8x8xbf16>, vector<1x8x8xbf16>, vector<1x8x8xf32> -> vector<1x8x8xf32>
    "tpu.trace_stop"() : () -> ()
    %cst_33 = arith.constant 0.353553385 : f32
    %72 = vector.broadcast %cst_33 : f32 to vector<1x8x8xf32>
    %73 = arith.mulf %71, %72 : vector<1x8x8xf32>
    %cst_34 = arith.constant dense<0xFF800000> : vector<1x8xf32>
    %74 = vector.multi_reduction <maximumf>, %73, %cst_34 [2] : vector<1x8x8xf32> to vector<1x8xf32>
    %75 = vector.shape_cast %74 : vector<1x8xf32> to vector<1x8x1xf32>
    %76 = vector.broadcast %75 : vector<1x8x1xf32> to vector<1x8x8xf32>
    %77 = arith.subf %73, %76 : vector<1x8x8xf32>
    %78 = math.exp %77 : vector<1x8x8xf32>
    %cst_35 = arith.constant dense<0.000000e+00> : vector<1x8xf32>
    %79 = vector.multi_reduction <add>, %78, %cst_35 [2] : vector<1x8x8xf32> to vector<1x8xf32>
    %80 = vector.shape_cast %79 : vector<1x8xf32> to vector<1x8x1xf32>
    %81 = tpu.reciprocal %80 {approx = true} : vector<1x8x1xf32> -> vector<1x8x1xf32>
    %82 = vector.broadcast %81 : vector<1x8x1xf32> to vector<1x8x8xf32>
    %83 = arith.mulf %78, %82 : vector<1x8x8xf32>
    %84 = arith.truncf %83 : vector<1x8x8xf32> to vector<1x8x8xbf16>
    %85 = vector.extract_strided_slice %68 {offsets = [0, 0, 0], sizes = [1, 8, 8], strides = [1, 1, 1]} : vector<1x8x32xbf16> to vector<1x8x8xbf16>
    "tpu.trace_start"() <{level = 10 : i32, message = "bqk,bkd->bqd"}> : () -> ()
    %cst_36 = arith.constant dense<0.000000e+00> : vector<1x8x8xf32>
    %86 = tpu.matmul %84, %85, %cst_36 {dimension_numbers = #tpu.dot_dimension_numbers<[2], [1], [1], [2], [0, 0, 0, 1, 1, 2], [0], [0]>} : vector<1x8x8xbf16>, vector<1x8x8xbf16>, vector<1x8x8xf32> -> vector<1x8x8xf32>
    "tpu.trace_stop"() : () -> ()
    %87 = vector.extract_strided_slice %66 {offsets = [0, 0, 8], sizes = [1, 8, 8], strides = [1, 1, 1]} : vector<1x8x32xbf16> to vector<1x8x8xbf16>
    %88 = vector.extract_strided_slice %67 {offsets = [0, 0, 8], sizes = [1, 8, 8], strides = [1, 1, 1]} : vector<1x8x32xbf16> to vector<1x8x8xbf16>
    "tpu.trace_start"() <{level = 10 : i32, message = "bqd,bkd->bqk"}> : () -> ()
    %cst_37 = arith.constant dense<0.000000e+00> : vector<1x8x8xf32>
    %89 = tpu.matmul %87, %88, %cst_37 {dimension_numbers = #tpu.dot_dimension_numbers<[2], [2], [1], [1], [0, 0, 0, 1, 1, 1], [0], [0]>} : vector<1x8x8xbf16>, vector<1x8x8xbf16>, vector<1x8x8xf32> -> vector<1x8x8xf32>
    "tpu.trace_stop"() : () -> ()
    %cst_38 = arith.constant 0.353553385 : f32
    %90 = vector.broadcast %cst_38 : f32 to vector<1x8x8xf32>
    %91 = arith.mulf %89, %90 : vector<1x8x8xf32>
    %cst_39 = arith.constant dense<0xFF800000> : vector<1x8xf32>
    %92 = vector.multi_reduction <maximumf>, %91, %cst_39 [2] : vector<1x8x8xf32> to vector<1x8xf32>
    %93 = vector.shape_cast %92 : vector<1x8xf32> to vector<1x8x1xf32>
    %94 = vector.broadcast %93 : vector<1x8x1xf32> to vector<1x8x8xf32>
    %95 = arith.subf %91, %94 : vector<1x8x8xf32>
    %96 = math.exp %95 : vector<1x8x8xf32>
    %cst_40 = arith.constant dense<0.000000e+00> : vector<1x8xf32>
    %97 = vector.multi_reduction <add>, %96, %cst_40 [2] : vector<1x8x8xf32> to vector<1x8xf32>
    %98 = vector.shape_cast %97 : vector<1x8xf32> to vector<1x8x1xf32>
    %99 = tpu.reciprocal %98 {approx = true} : vector<1x8x1xf32> -> vector<1x8x1xf32>
    %100 = vector.broadcast %99 : vector<1x8x1xf32> to vector<1x8x8xf32>
    %101 = arith.mulf %96, %100 : vector<1x8x8xf32>
    %102 = arith.truncf %101 : vector<1x8x8xf32> to vector<1x8x8xbf16>
    %103 = vector.extract_strided_slice %68 {offsets = [0, 0, 8], sizes = [1, 8, 8], strides = [1, 1, 1]} : vector<1x8x32xbf16> to vector<1x8x8xbf16>
    "tpu.trace_start"() <{level = 10 : i32, message = "bqk,bkd->bqd"}> : () -> ()
    %cst_41 = arith.constant dense<0.000000e+00> : vector<1x8x8xf32>
    %104 = tpu.matmul %102, %103, %cst_41 {dimension_numbers = #tpu.dot_dimension_numbers<[2], [1], [1], [2], [0, 0, 0, 1, 1, 2], [0], [0]>} : vector<1x8x8xbf16>, vector<1x8x8xbf16>, vector<1x8x8xf32> -> vector<1x8x8xf32>
    "tpu.trace_stop"() : () -> ()
    %105 = vector.extract_strided_slice %66 {offsets = [0, 0, 16], sizes = [1, 8, 8], strides = [1, 1, 1]} : vector<1x8x32xbf16> to vector<1x8x8xbf16>
    %106 = vector.extract_strided_slice %67 {offsets = [0, 0, 16], sizes = [1, 8, 8], strides = [1, 1, 1]} : vector<1x8x32xbf16> to vector<1x8x8xbf16>
    "tpu.trace_start"() <{level = 10 : i32, message = "bqd,bkd->bqk"}> : () -> ()
    %cst_42 = arith.constant dense<0.000000e+00> : vector<1x8x8xf32>
    %107 = tpu.matmul %105, %106, %cst_42 {dimension_numbers = #tpu.dot_dimension_numbers<[2], [2], [1], [1], [0, 0, 0, 1, 1, 1], [0], [0]>} : vector<1x8x8xbf16>, vector<1x8x8xbf16>, vector<1x8x8xf32> -> vector<1x8x8xf32>
    "tpu.trace_stop"() : () -> ()
    %cst_43 = arith.constant 0.353553385 : f32
    %108 = vector.broadcast %cst_43 : f32 to vector<1x8x8xf32>
    %109 = arith.mulf %107, %108 : vector<1x8x8xf32>
    %cst_44 = arith.constant dense<0xFF800000> : vector<1x8xf32>
    %110 = vector.multi_reduction <maximumf>, %109, %cst_44 [2] : vector<1x8x8xf32> to vector<1x8xf32>
    %111 = vector.shape_cast %110 : vector<1x8xf32> to vector<1x8x1xf32>
    %112 = vector.broadcast %111 : vector<1x8x1xf32> to vector<1x8x8xf32>
    %113 = arith.subf %109, %112 : vector<1x8x8xf32>
    %114 = math.exp %113 : vector<1x8x8xf32>
    %cst_45 = arith.constant dense<0.000000e+00> : vector<1x8xf32>
    %115 = vector.multi_reduction <add>, %114, %cst_45 [2] : vector<1x8x8xf32> to vector<1x8xf32>
    %116 = vector.shape_cast %115 : vector<1x8xf32> to vector<1x8x1xf32>
    %117 = tpu.reciprocal %116 {approx = true} : vector<1x8x1xf32> -> vector<1x8x1xf32>
    %118 = vector.broadcast %117 : vector<1x8x1xf32> to vector<1x8x8xf32>
    %119 = arith.mulf %114, %118 : vector<1x8x8xf32>
    %120 = arith.truncf %119 : vector<1x8x8xf32> to vector<1x8x8xbf16>
    %121 = vector.extract_strided_slice %68 {offsets = [0, 0, 16], sizes = [1, 8, 8], strides = [1, 1, 1]} : vector<1x8x32xbf16> to vector<1x8x8xbf16>
    "tpu.trace_start"() <{level = 10 : i32, message = "bqk,bkd->bqd"}> : () -> ()
    %cst_46 = arith.constant dense<0.000000e+00> : vector<1x8x8xf32>
    %122 = tpu.matmul %120, %121, %cst_46 {dimension_numbers = #tpu.dot_dimension_numbers<[2], [1], [1], [2], [0, 0, 0, 1, 1, 2], [0], [0]>} : vector<1x8x8xbf16>, vector<1x8x8xbf16>, vector<1x8x8xf32> -> vector<1x8x8xf32>
    "tpu.trace_stop"() : () -> ()
    %123 = vector.extract_strided_slice %66 {offsets = [0, 0, 24], sizes = [1, 8, 8], strides = [1, 1, 1]} : vector<1x8x32xbf16> to vector<1x8x8xbf16>
    %124 = vector.extract_strided_slice %67 {offsets = [0, 0, 24], sizes = [1, 8, 8], strides = [1, 1, 1]} : vector<1x8x32xbf16> to vector<1x8x8xbf16>
    "tpu.trace_start"() <{level = 10 : i32, message = "bqd,bkd->bqk"}> : () -> ()
    %cst_47 = arith.constant dense<0.000000e+00> : vector<1x8x8xf32>
    %125 = tpu.matmul %123, %124, %cst_47 {dimension_numbers = #tpu.dot_dimension_numbers<[2], [2], [1], [1], [0, 0, 0, 1, 1, 1], [0], [0]>} : vector<1x8x8xbf16>, vector<1x8x8xbf16>, vector<1x8x8xf32> -> vector<1x8x8xf32>
    "tpu.trace_stop"() : () -> ()
    %cst_48 = arith.constant 0.353553385 : f32
    %126 = vector.broadcast %cst_48 : f32 to vector<1x8x8xf32>
    %127 = arith.mulf %125, %126 : vector<1x8x8xf32>
    %cst_49 = arith.constant dense<0xFF800000> : vector<1x8xf32>
    %128 = vector.multi_reduction <maximumf>, %127, %cst_49 [2] : vector<1x8x8xf32> to vector<1x8xf32>
    %129 = vector.shape_cast %128 : vector<1x8xf32> to vector<1x8x1xf32>
    %130 = vector.broadcast %129 : vector<1x8x1xf32> to vector<1x8x8xf32>
    %131 = arith.subf %127, %130 : vector<1x8x8xf32>
    %132 = math.exp %131 : vector<1x8x8xf32>
    %cst_50 = arith.constant dense<0.000000e+00> : vector<1x8xf32>
    %133 = vector.multi_reduction <add>, %132, %cst_50 [2] : vector<1x8x8xf32> to vector<1x8xf32>
    %134 = vector.shape_cast %133 : vector<1x8xf32> to vector<1x8x1xf32>
    %135 = tpu.reciprocal %134 {approx = true} : vector<1x8x1xf32> -> vector<1x8x1xf32>
    %136 = vector.broadcast %135 : vector<1x8x1xf32> to vector<1x8x8xf32>
    %137 = arith.mulf %132, %136 : vector<1x8x8xf32>
    %138 = arith.truncf %137 : vector<1x8x8xf32> to vector<1x8x8xbf16>
    %139 = vector.extract_strided_slice %68 {offsets = [0, 0, 24], sizes = [1, 8, 8], strides = [1, 1, 1]} : vector<1x8x32xbf16> to vector<1x8x8xbf16>
    "tpu.trace_start"() <{level = 10 : i32, message = "bqk,bkd->bqd"}> : () -> ()
    %cst_51 = arith.constant dense<0.000000e+00> : vector<1x8x8xf32>
    %140 = tpu.matmul %138, %139, %cst_51 {dimension_numbers = #tpu.dot_dimension_numbers<[2], [1], [1], [2], [0, 0, 0, 1, 1, 2], [0], [0]>} : vector<1x8x8xbf16>, vector<1x8x8xbf16>, vector<1x8x8xf32> -> vector<1x8x8xf32>
    "tpu.trace_stop"() : () -> ()
    %141 = tpu.concatenate %86, %104, %122, %140 in 2 : vector<1x8x8xf32>, vector<1x8x8xf32>, vector<1x8x8xf32>, vector<1x8x8xf32> -> vector<1x8x32xf32>
    %142 = vector.shape_cast %141 : vector<1x8x32xf32> to vector<8x32xf32>
    %143 = arith.truncf %142 : vector<8x32xf32> to vector<8x32xbf16>
    %c0_52 = arith.constant 0 : index
    %c0_53 = arith.constant 0 : index
    %144 = vector.load %arg12[%c0_52, %c0_53] : memref<32x32xbf16, #tpu.memory_space<vmem>>, vector<32x32xbf16>
    %cst_54 = arith.constant dense<0.000000e+00> : vector<8x32xf32>
    %145 = tpu.matmul %143, %144, %cst_54 {dimension_numbers = #tpu.dot_dimension_numbers<[1], [0], [0], [1], [0, 0, 1, 1], [], []>} : vector<8x32xbf16>, vector<32x32xbf16>, vector<8x32xf32> -> vector<8x32xf32>
    %c0_55 = arith.constant 0 : index
    %c0_56 = arith.constant 0 : index
    %146 = vector.load %arg13[%c0_55, %c0_56] : memref<1x32xf32, #tpu.memory_space<vmem>>, vector<1x32xf32>
    %147 = vector.broadcast %146 : vector<1x32xf32> to vector<8x32xf32>
    %148 = arith.addf %145, %147 : vector<8x32xf32>
    %149 = arith.addf %0, %148 : vector<8x32xf32>
    %c0_57 = arith.constant 0 : index
    %c0_58 = arith.constant 0 : index
    %150 = vector.load %arg14[%c0_57, %c0_58] : memref<1x32xf32, #tpu.memory_space<vmem>>, vector<1x32xf32>
    %151 = arith.mulf %149, %149 : vector<8x32xf32>
    %cst_59 = arith.constant dense<0.000000e+00> : vector<8xf32>
    %152 = vector.multi_reduction <add>, %151, %cst_59 [1] : vector<8x32xf32> to vector<8xf32>
    %153 = vector.shape_cast %152 : vector<8xf32> to vector<8x1xf32>
    %cst_60 = arith.constant 3.200000e+01 : f32
    %154 = vector.broadcast %cst_60 : f32 to vector<8x1xf32>
    %155 = arith.divf %153, %154 : vector<8x1xf32>
    %cst_61 = arith.constant 9.99999974E-6 : f32
    %156 = vector.broadcast %cst_61 : f32 to vector<8x1xf32>
    %157 = arith.addf %155, %156 : vector<8x1xf32>
    %158 = math.rsqrt %157 : vector<8x1xf32>
    %159 = vector.broadcast %158 : vector<8x1xf32> to vector<8x32xf32>
    %160 = arith.mulf %149, %159 : vector<8x32xf32>
    %161 = vector.broadcast %150 : vector<1x32xf32> to vector<8x32xf32>
    %162 = arith.mulf %160, %161 : vector<8x32xf32>
    %163 = arith.truncf %162 : vector<8x32xf32> to vector<8x32xbf16>
    %c0_62 = arith.constant 0 : index
    %c0_63 = arith.constant 0 : index
    %164 = vector.load %arg15[%c0_62, %c0_63] : memref<32x128xbf16, #tpu.memory_space<vmem>>, vector<32x128xbf16>
    %cst_64 = arith.constant dense<0.000000e+00> : vector<8x128xf32>
    %165 = tpu.matmul %163, %164, %cst_64 {dimension_numbers = #tpu.dot_dimension_numbers<[1], [0], [0], [1], [0, 0, 1, 1], [], []>} : vector<8x32xbf16>, vector<32x128xbf16>, vector<8x128xf32> -> vector<8x128xf32>
    %c0_65 = arith.constant 0 : index
    %c0_66 = arith.constant 0 : index
    %166 = vector.load %arg16[%c0_65, %c0_66] : memref<1x128xf32, #tpu.memory_space<vmem>>, vector<1x128xf32>
    %167 = vector.broadcast %166 : vector<1x128xf32> to vector<8x128xf32>
    %168 = arith.addf %165, %167 : vector<8x128xf32>
    %169 = arith.truncf %168 : vector<8x128xf32> to vector<8x128xbf16>
    %cst_67 = arith.constant 0.000000e+00 : f32
    %170 = vector.broadcast %cst_67 : f32 to vector<8x32xf32>
    %c0_68 = arith.constant 0 : index
    %c0_69 = arith.constant 0 : index
    %171 = vector.load %arg23[%c0_68, %c0_69] : memref<8x32xf32, #tpu.memory_space<vmem>>, vector<8x32xf32>
    tpu.vector_store %arg23[%c0_68, %c0_69], %170 {strides = array<i32>} : memref<8x32xf32, #tpu.memory_space<vmem>>, vector<8x32xf32>,
    %c1_i32 = arith.constant 1 : i32
    %c1_i32_70 = arith.constant 1 : i32
    %172 = arith.muli %c1_i32, %c1_i32_70 : i32
    "tpu.region"() ({
      %alloca = memref.alloca() : memref<2x128x128xbf16, #tpu.memory_space<vmem>>
      %alloca_82 = memref.alloca() : memref<2x128xf32, #tpu.memory_space<vmem>>
      %alloca_83 = memref.alloca() : memref<128x32xbf16, #tpu.memory_space<vmem>>
      %c0_i32 = arith.constant 0 : i32
      %192 = arith.cmpi sgt, %172, %c0_i32 : i32
      %193 = arith.extui %192 : i1 to i32
      %c0_i32_84 = arith.constant 0 : i32
      %194 = arith.cmpi ne, %193, %c0_i32_84 : i32
      scf.if %194 {
        %c1_i32_85 = arith.constant 1 : i32
        %c1_i32_86 = arith.constant 1 : i32
        %195 = arith.muli %c1_i32_85, %c1_i32_86 : i32
        %c1_i32_87 = arith.constant 1 : i32
        %196 = arith.subi %195, %c1_i32_87 : i32
        %c0_i32_88 = arith.constant 0 : i32
        %197 = arith.cmpi eq, %196, %c0_i32_88 : i32
        %true = arith.constant true
        %c0_i32_89 = arith.constant 0 : i32
        %c-1_i32 = arith.constant -1 : i32
        %198 = arith.select %true, %c-1_i32, %c0_i32_89 : i32
        %c-1_i32_90 = arith.constant -1 : i32
        %199 = arith.cmpi eq, %198, %c-1_i32_90 : i32
        %c0_i32_91 = arith.constant 0 : i32
        %200 = arith.select %199, %c0_i32_91, %198 : i32
        %true_92 = arith.constant true
        %c0_i32_93 = arith.constant 0 : i32
        %c1_i32_94 = arith.constant 1 : i32
        %201 = arith.select %true_92, %c1_i32_94, %c0_i32_93 : i32
        %c1_i32_95 = arith.constant 1 : i32
        %202 = arith.cmpi eq, %201, %c1_i32_95 : i32
        %c0_i32_96 = arith.constant 0 : i32
        %203 = arith.select %202, %c0_i32_96, %201 : i32
        %true_97 = arith.constant true
        %c0_i32_98 = arith.constant 0 : i32
        %c1_i32_99 = arith.constant 1 : i32
        %204 = arith.select %true_97, %c1_i32_99, %c0_i32_98 : i32
        %c1_i32_100 = arith.constant 1 : i32
        %205 = arith.cmpi eq, %204, %c1_i32_100 : i32
        %c0_i32_101 = arith.constant 0 : i32
        %206 = arith.select %205, %c0_i32_101, %204 : i32
        "tpu.region"() ({
          %228 = tpu.sem_alloc : memref<!tpu.dma_semaphore, #tpu.memory_space<semaphore_mem>>
          tpu.enqueue_dma source(%arg19 : memref<2x128x128xbf16, #tpu.memory_space<any>>) target(%alloca : memref<2x128x128xbf16, #tpu.memory_space<vmem>>) target_semaphore(%228 : memref<!tpu.dma_semaphore, #tpu.memory_space<semaphore_mem>>)
          tpu.wait_dma2 semaphore(%228 : memref<!tpu.dma_semaphore, #tpu.memory_space<semaphore_mem>>) src(%arg19 : memref<2x128x128xbf16, #tpu.memory_space<any>>) dst(%alloca : memref<2x128x128xbf16, #tpu.memory_space<vmem>>)
          tpu.yield
        }) : () -> ()
        "tpu.region"() ({
          %228 = tpu.sem_alloc : memref<!tpu.dma_semaphore, #tpu.memory_space<semaphore_mem>>
          tpu.enqueue_dma source(%arg20 : memref<2x128xf32, #tpu.memory_space<any>>) target(%alloca_82 : memref<2x128xf32, #tpu.memory_space<vmem>>) target_semaphore(%228 : memref<!tpu.dma_semaphore, #tpu.memory_space<semaphore_mem>>)
          tpu.wait_dma2 semaphore(%228 : memref<!tpu.dma_semaphore, #tpu.memory_space<semaphore_mem>>) src(%arg20 : memref<2x128xf32, #tpu.memory_space<any>>) dst(%alloca_82 : memref<2x128xf32, #tpu.memory_space<vmem>>)
          tpu.yield
        }) : () -> ()
        "tpu.region"() ({
          %228 = tpu.sem_alloc : memref<!tpu.dma_semaphore, #tpu.memory_space<semaphore_mem>>
          tpu.enqueue_dma source(%arg21 : memref<128x32xbf16, #tpu.memory_space<any>>) target(%alloca_83 : memref<128x32xbf16, #tpu.memory_space<vmem>>) target_semaphore(%228 : memref<!tpu.dma_semaphore, #tpu.memory_space<semaphore_mem>>)
          tpu.wait_dma2 semaphore(%228 : memref<!tpu.dma_semaphore, #tpu.memory_space<semaphore_mem>>) src(%arg21 : memref<128x32xbf16, #tpu.memory_space<any>>) dst(%alloca_83 : memref<128x32xbf16, #tpu.memory_space<vmem>>)
          tpu.yield
        }) : () -> ()
        %c0_i32_102 = arith.constant 0 : i32
        %c0_i32_103 = arith.constant 0 : i32
        %c0_i32_104 = arith.constant 0 : i32
        %c0_i32_105 = arith.constant 0 : i32
        %c0_i32_106 = arith.constant 0 : i32
        %c0_i32_107 = arith.constant 0 : i32
        %c0_i32_108 = arith.constant 0 : i32
        %c0_i32_109 = arith.constant 0 : i32
        %207 = arith.subi %172, %c0_i32_105 : i32
        %208 = arith.addi %c0_i32_105, %207 : i32
        %c1_i32_110 = arith.constant 1 : i32
        %209:4 = scf.for %arg24 = %c0_i32_105 to %208 step %c1_i32_110 iter_args(%arg25 = %c0_i32_106, %arg26 = %c0_i32_107, %arg27 = %c0_i32_108, %arg28 = %c0_i32_109) -> (i32, i32, i32, i32)  : i32 {
          %c1_i32_135 = arith.constant 1 : i32
          %c1_i32_136 = arith.constant 1 : i32
          %228 = arith.muli %c1_i32_135, %c1_i32_136 : i32
          %c0_i32_137 = arith.constant 0 : i32
          %229 = arith.cmpi eq, %arg24, %c0_i32_137 : i32
          %c1_i32_138 = arith.constant 1 : i32
          %230 = arith.subi %228, %c1_i32_138 : i32
          %231 = arith.cmpi eq, %arg24, %230 : i32
          %true_139 = arith.constant true
          %c0_i32_140 = arith.constant 0 : i32
          %c-1_i32_141 = arith.constant -1 : i32
          %232 = arith.select %true_139, %c-1_i32_141, %c0_i32_140 : i32
          %c-1_i32_142 = arith.constant -1 : i32
          %233 = arith.cmpi eq, %232, %c-1_i32_142 : i32
          %c0_i32_143 = arith.constant 0 : i32
          %234 = arith.select %233, %c0_i32_143, %232 : i32
          %true_144 = arith.constant true
          %c0_i32_145 = arith.constant 0 : i32
          %c1_i32_146 = arith.constant 1 : i32
          %235 = arith.select %true_144, %c1_i32_146, %c0_i32_145 : i32
          %c1_i32_147 = arith.constant 1 : i32
          %236 = arith.cmpi eq, %235, %c1_i32_147 : i32
          %c0_i32_148 = arith.constant 0 : i32
          %237 = arith.select %236, %c0_i32_148, %235 : i32
          %true_149 = arith.constant true
          %c0_i32_150 = arith.constant 0 : i32
          %c1_i32_151 = arith.constant 1 : i32
          %238 = arith.select %true_149, %c1_i32_151, %c0_i32_150 : i32
          %c1_i32_152 = arith.constant 1 : i32
          %239 = arith.cmpi eq, %238, %c1_i32_152 : i32
          %c0_i32_153 = arith.constant 0 : i32
          %240 = arith.select %239, %c0_i32_153, %238 : i32
          "tpu.trace_start"() <{level = 10 : i32, message = "ep_run_kernel"}> : () -> ()
          %c0_154 = arith.constant 0 : index
          %c0_155 = arith.constant 0 : index
          %241 = vector.load %alloca_82[%c0_154, %c0_155] : memref<2x128xf32, #tpu.memory_space<vmem>>, vector<2x128xf32>
          %c0_156 = arith.constant 0 : index
          %c0_157 = arith.constant 0 : index
          %c0_158 = arith.constant 0 : index
          %242 = vector.load %alloca[%c0_156, %c0_157, %c0_158] : memref<2x128x128xbf16, #tpu.memory_space<vmem>>, vector<1x128x128xbf16>
          %243 = vector.shape_cast %242 : vector<1x128x128xbf16> to vector<128x128xbf16>
          %cst_159 = arith.constant dense<0.000000e+00> : vector<8x128xf32>
          %244 = tpu.matmul %169, %243, %cst_159 {dimension_numbers = #tpu.dot_dimension_numbers<[1], [0], [0], [1], [0, 0, 1, 1], [], []>} : vector<8x128xbf16>, vector<128x128xbf16>, vector<8x128xf32> -> vector<8x128xf32>
          %245 = vector.extract_strided_slice %241 {offsets = [0, 0], sizes = [1, 128], strides = [1, 1]} : vector<2x128xf32> to vector<1x128xf32>
          %246 = vector.broadcast %245 : vector<1x128xf32> to vector<8x128xf32>
          %247 = arith.addf %244, %246 : vector<8x128xf32>
          %c1 = arith.constant 1 : index
          %c0_160 = arith.constant 0 : index
          %c0_161 = arith.constant 0 : index
          %248 = vector.load %alloca[%c1, %c0_160, %c0_161] : memref<2x128x128xbf16, #tpu.memory_space<vmem>>, vector<1x128x128xbf16>
          %249 = vector.shape_cast %248 : vector<1x128x128xbf16> to vector<128x128xbf16>
          %cst_162 = arith.constant dense<0.000000e+00> : vector<8x128xf32>
          %250 = tpu.matmul %169, %249, %cst_162 {dimension_numbers = #tpu.dot_dimension_numbers<[1], [0], [0], [1], [0, 0, 1, 1], [], []>} : vector<8x128xbf16>, vector<128x128xbf16>, vector<8x128xf32> -> vector<8x128xf32>
          %251 = vector.extract_strided_slice %241 {offsets = [1, 0], sizes = [1, 128], strides = [1, 1]} : vector<2x128xf32> to vector<1x128xf32>
          %252 = vector.broadcast %251 : vector<1x128xf32> to vector<8x128xf32>
          %253 = arith.addf %250, %252 : vector<8x128xf32>
          %254 = arith.negf %247 : vector<8x128xf32>
          %255 = math.exp %254 : vector<8x128xf32>
          %cst_163 = arith.constant 1.000000e+00 : f32
          %256 = vector.broadcast %cst_163 : f32 to vector<8x128xf32>
          %257 = arith.addf %256, %255 : vector<8x128xf32>
          %258 = arith.divf %256, %257 : vector<8x128xf32>
          %259 = arith.mulf %247, %258 : vector<8x128xf32>
          %260 = arith.mulf %259, %253 : vector<8x128xf32>
          %c0_164 = arith.constant 0 : index
          %c0_165 = arith.constant 0 : index
          %261 = vector.load %arg23[%c0_164, %c0_165] : memref<8x32xf32, #tpu.memory_space<vmem>>, vector<8x32xf32>
          %262 = arith.truncf %260 : vector<8x128xf32> to vector<8x128xbf16>
          %c0_166 = arith.constant 0 : index
          %c0_167 = arith.constant 0 : index
          %263 = vector.load %alloca_83[%c0_166, %c0_167] : memref<128x32xbf16, #tpu.memory_space<vmem>>, vector<128x32xbf16>
          %cst_168 = arith.constant dense<0.000000e+00> : vector<8x32xf32>
          %264 = tpu.matmul %262, %263, %cst_168 {dimension_numbers = #tpu.dot_dimension_numbers<[1], [0], [0], [1], [0, 0, 1, 1], [], []>} : vector<8x128xbf16>, vector<128x32xbf16>, vector<8x32xf32> -> vector<8x32xf32>
          %265 = arith.addf %261, %264 : vector<8x32xf32>
          %c0_169 = arith.constant 0 : index
          %c0_170 = arith.constant 0 : index
          %266 = vector.load %arg23[%c0_169, %c0_170] : memref<8x32xf32, #tpu.memory_space<vmem>>, vector<8x32xf32>
          tpu.vector_store %arg23[%c0_169, %c0_170], %265 {strides = array<i32>} : memref<8x32xf32, #tpu.memory_space<vmem>>, vector<8x32xf32>,
          "tpu.trace_stop"() : () -> ()
          %false = arith.constant false
          %267 = arith.ori %false, %231 : i1
          %c1_i32_171 = arith.constant 1 : i32
          %268 = arith.addi %arg25, %c1_i32_171 : i32
          %269 = arith.select %267, %268, %arg25 : i32
          %false_172 = arith.constant false
          %270 = arith.ori %false_172, %231 : i1
          %c1_i32_173 = arith.constant 1 : i32
          %271 = arith.addi %arg26, %c1_i32_173 : i32
          %272 = arith.select %270, %271, %arg26 : i32
          %false_174 = arith.constant false
          %273 = arith.ori %false_174, %231 : i1
          %c1_i32_175 = arith.constant 1 : i32
          %274 = arith.addi %arg27, %c1_i32_175 : i32
          %275 = arith.select %273, %274, %arg27 : i32
          %true_176 = arith.constant true
          %c0_i32_177 = arith.constant 0 : i32
          %c1_i32_178 = arith.constant 1 : i32
          %276 = arith.select %true_176, %c1_i32_178, %c0_i32_177 : i32
          %c1_i32_179 = arith.constant 1 : i32
          %277 = arith.cmpi eq, %276, %c1_i32_179 : i32
          %c0_i32_180 = arith.constant 0 : i32
          %278 = arith.select %277, %c0_i32_180, %276 : i32
          %c0_i32_181 = arith.constant 0 : i32
          scf.yield %269, %272, %275, %c0_i32_181 : i32, i32, i32, i32
        }
        %c1_i32_111 = arith.constant 1 : i32
        %210 = arith.subi %209#3, %c1_i32_111 : i32
        %true_112 = arith.constant true
        %211 = arith.select %true_112, %210, %209#3 : i32
        %c-1_i32_113 = arith.constant -1 : i32
        %212 = arith.cmpi eq, %211, %c-1_i32_113 : i32
        %c0_i32_114 = arith.constant 0 : i32
        %213 = arith.select %212, %c0_i32_114, %211 : i32
        %c1_i32_115 = arith.constant 1 : i32
        %214 = arith.subi %172, %c1_i32_115 : i32
        %c1_i32_116 = arith.constant 1 : i32
        %c1_i32_117 = arith.constant 1 : i32
        %215 = arith.muli %c1_i32_116, %c1_i32_117 : i32
        %c0_i32_118 = arith.constant 0 : i32
        %216 = arith.cmpi eq, %214, %c0_i32_118 : i32
        %c1_i32_119 = arith.constant 1 : i32
        %217 = arith.subi %215, %c1_i32_119 : i32
        %218 = arith.cmpi eq, %214, %217 : i32
        %true_120 = arith.constant true
        %c0_i32_121 = arith.constant 0 : i32
        %c-1_i32_122 = arith.constant -1 : i32
        %219 = arith.select %true_120, %c-1_i32_122, %c0_i32_121 : i32
        %c-1_i32_123 = arith.constant -1 : i32
        %220 = arith.cmpi eq, %219, %c-1_i32_123 : i32
        %c0_i32_124 = arith.constant 0 : i32
        %221 = arith.select %220, %c0_i32_124, %219 : i32
        %true_125 = arith.constant true
        %c0_i32_126 = arith.constant 0 : i32
        %c1_i32_127 = arith.constant 1 : i32
        %222 = arith.select %true_125, %c1_i32_127, %c0_i32_126 : i32
        %c1_i32_128 = arith.constant 1 : i32
        %223 = arith.cmpi eq, %222, %c1_i32_128 : i32
        %c0_i32_129 = arith.constant 0 : i32
        %224 = arith.select %223, %c0_i32_129, %222 : i32
        %true_130 = arith.constant true
        %c0_i32_131 = arith.constant 0 : i32
        %c1_i32_132 = arith.constant 1 : i32
        %225 = arith.select %true_130, %c1_i32_132, %c0_i32_131 : i32
        %c1_i32_133 = arith.constant 1 : i32
        %226 = arith.cmpi eq, %225, %c1_i32_133 : i32
        %c0_i32_134 = arith.constant 0 : i32
        %227 = arith.select %226, %c0_i32_134, %225 : i32
      } else {
      }
      tpu.yield
    }) : () -> ()
    %c0_71 = arith.constant 0 : index
    %c0_72 = arith.constant 0 : index
    %173 = vector.load %arg23[%c0_71, %c0_72] : memref<8x32xf32, #tpu.memory_space<vmem>>, vector<8x32xf32>
    %c0_73 = arith.constant 0 : index
    %c0_74 = arith.constant 0 : index
    %174 = vector.load %arg17[%c0_73, %c0_74] : memref<1x32xf32, #tpu.memory_space<vmem>>, vector<1x32xf32>
    %175 = vector.broadcast %174 : vector<1x32xf32> to vector<8x32xf32>
    %176 = arith.addf %173, %175 : vector<8x32xf32>
    %c0_75 = arith.constant 0 : index
    %c0_76 = arith.constant 0 : index
    %177 = vector.load %arg18[%c0_75, %c0_76] : memref<1x32xf32, #tpu.memory_space<vmem>>, vector<1x32xf32>
    %178 = arith.mulf %176, %176 : vector<8x32xf32>
    %cst_77 = arith.constant dense<0.000000e+00> : vector<8xf32>
    %179 = vector.multi_reduction <add>, %178, %cst_77 [1] : vector<8x32xf32> to vector<8xf32>
    %180 = vector.shape_cast %179 : vector<8xf32> to vector<8x1xf32>
    %cst_78 = arith.constant 3.200000e+01 : f32
    %181 = vector.broadcast %cst_78 : f32 to vector<8x1xf32>
    %182 = arith.divf %180, %181 : vector<8x1xf32>
    %cst_79 = arith.constant 9.99999974E-6 : f32
    %183 = vector.broadcast %cst_79 : f32 to vector<8x1xf32>
    %184 = arith.addf %182, %183 : vector<8x1xf32>
    %185 = math.rsqrt %184 : vector<8x1xf32>
    %186 = vector.broadcast %185 : vector<8x1xf32> to vector<8x32xf32>
    %187 = arith.mulf %176, %186 : vector<8x32xf32>
    %188 = vector.broadcast %177 : vector<1x32xf32> to vector<8x32xf32>
    %189 = arith.mulf %187, %188 : vector<8x32xf32>
    %190 = arith.addf %149, %189 : vector<8x32xf32>
    %c0_80 = arith.constant 0 : index
    %c0_81 = arith.constant 0 : index
    %191 = vector.load %arg22[%c0_80, %c0_81] : memref<8x32xf32, #tpu.memory_space<vmem>>, vector<8x32xf32>
    tpu.vector_store %arg22[%c0_80, %c0_81], %190 {strides = array<i32>} : memref<8x32xf32, #tpu.memory_space<vmem>>, vector<8x32xf32>,
    return
  }
  func.func @transform_0(%arg0: i32) -> (i32, i32) {
    %c0_i32 = arith.constant 0 : i32
    %c0_i32_0 = arith.constant 0 : i32
    return %arg0, %c0_i32 : i32, i32
  }
  func.func @transform_1(%arg0: i32) -> (i32, i32) {
    %c0_i32 = arith.constant 0 : i32
    %c0_i32_0 = arith.constant 0 : i32
    %c0_i32_1 = arith.constant 0 : i32
    return %c0_i32, %c0_i32_0 : i32, i32
  }
  func.func @transform_2(%arg0: i32) -> (i32, i32) {
    %c0_i32 = arith.constant 0 : i32
    %c0_i32_0 = arith.constant 0 : i32
    %c0_i32_1 = arith.constant 0 : i32
    return %c0_i32, %c0_i32_0 : i32, i32
  }
  func.func @transform_3(%arg0: i32) -> (i32, i32) {
    %c0_i32 = arith.constant 0 : i32
    %c0_i32_0 = arith.constant 0 : i32
    %c0_i32_1 = arith.constant 0 : i32
    return %c0_i32, %c0_i32_0 : i32, i32
  }
  func.func @transform_4(%arg0: i32) -> (i32, i32) {
    %c0_i32 = arith.constant 0 : i32
    %c0_i32_0 = arith.constant 0 : i32
    %c0_i32_1 = arith.constant 0 : i32
    return %c0_i32, %c0_i32_0 : i32, i32
  }
  func.func @transform_5(%arg0: i32) -> (i32, i32) {
    %c0_i32 = arith.constant 0 : i32
    %c0_i32_0 = arith.constant 0 : i32
    %c0_i32_1 = arith.constant 0 : i32
    return %c0_i32, %c0_i32_0 : i32, i32
  }
  func.func @transform_6(%arg0: i32) -> (i32, i32) {
    %c0_i32 = arith.constant 0 : i32
    %c0_i32_0 = arith.constant 0 : i32
    %c0_i32_1 = arith.constant 0 : i32
    return %c0_i32, %c0_i32_0 : i32, i32
  }
  func.func @transform_7(%arg0: i32) -> (i32, i32) {
    %c0_i32 = arith.constant 0 : i32
    %c0_i32_0 = arith.constant 0 : i32
    %c0_i32_1 = arith.constant 0 : i32
    return %c0_i32, %c0_i32_0 : i32, i32
  }
  func.func @transform_8(%arg0: i32) -> (i32, i32) {
    %c0_i32 = arith.constant 0 : i32
    %c0_i32_0 = arith.constant 0 : i32
    %c0_i32_1 = arith.constant 0 : i32
    return %c0_i32, %c0_i32_0 : i32, i32
  }
  func.func @transform_9(%arg0: i32) -> (i32, i32) {
    %c0_i32 = arith.constant 0 : i32
    %c0_i32_0 = arith.constant 0 : i32
    %c0_i32_1 = arith.constant 0 : i32
    return %c0_i32, %c0_i32_0 : i32, i32
  }
  func.func @transform_10(%arg0: i32) -> (i32, i32) {
    %c0_i32 = arith.constant 0 : i32
    %c0_i32_0 = arith.constant 0 : i32
    %c0_i32_1 = arith.constant 0 : i32
    return %c0_i32, %c0_i32_0 : i32, i32
  }
  func.func @transform_11(%arg0: i32) -> (i32, i32) {
    %c0_i32 = arith.constant 0 : i32
    %c0_i32_0 = arith.constant 0 : i32
    %c0_i32_1 = arith.constant 0 : i32
    return %c0_i32, %c0_i32_0 : i32, i32
  }
  func.func @transform_12(%arg0: i32) -> (i32, i32) {
    %c0_i32 = arith.constant 0 : i32
    %c0_i32_0 = arith.constant 0 : i32
    %c0_i32_1 = arith.constant 0 : i32
    return %c0_i32, %c0_i32_0 : i32, i32
  }
  func.func @transform_13(%arg0: i32) -> (i32, i32) {
    %c0_i32 = arith.constant 0 : i32
    %c0_i32_0 = arith.constant 0 : i32
    %c0_i32_1 = arith.constant 0 : i32
    return %c0_i32, %c0_i32_0 : i32, i32
  }
  func.func @transform_14(%arg0: i32) -> (i32, i32) {
    %c0_i32 = arith.constant 0 : i32
    %c0_i32_0 = arith.constant 0 : i32
    %c0_i32_1 = arith.constant 0 : i32
    return %c0_i32, %c0_i32_0 : i32, i32
  }
  func.func @transform_15(%arg0: i32) -> (i32, i32) {
    %c0_i32 = arith.constant 0 : i32
    %c0_i32_0 = arith.constant 0 : i32
    %c0_i32_1 = arith.constant 0 : i32
    return %c0_i32, %c0_i32_0 : i32, i32
  }
  func.func @transform_16(%arg0: i32) -> (i32, i32) {
    %c0_i32 = arith.constant 0 : i32
    %c0_i32_0 = arith.constant 0 : i32
    %c0_i32_1 = arith.constant 0 : i32
    return %c0_i32, %c0_i32_0 : i32, i32
  }
  func.func @transform_17(%arg0: i32) -> (i32, i32) {
    %c0_i32 = arith.constant 0 : i32
    %c0_i32_0 = arith.constant 0 : i32
    %c0_i32_1 = arith.constant 0 : i32
    return %c0_i32, %c0_i32_0 : i32, i32
  }
  func.func @transform_21(%arg0: i32) -> (i32, i32) {
    %c0_i32 = arith.constant 0 : i32
    %c0_i32_0 = arith.constant 0 : i32
    return %arg0, %c0_i32 : i32, i32
  }
}

module attributes {stable_mosaic.version = 11 : i64} {
  func.func @block_kernel(%arg0: i32, %arg1: memref<8x32xf32, #tpu.memory_space<vmem>>, %arg2: memref<8x32xf32, #tpu.memory_space<vmem>>, %arg3: memref<1x32xf32, #tpu.memory_space<vmem>>, %arg4: memref<32x32xbf16, #tpu.memory_space<vmem>>, %arg5: memref<1x32xf32, #tpu.memory_space<vmem>>, %arg6: memref<32x32xbf16, #tpu.memory_space<vmem>>, %arg7: memref<1x32xf32, #tpu.memory_space<vmem>>, %arg8: memref<32x32xbf16, #tpu.memory_space<vmem>>, %arg9: memref<1x32xf32, #tpu.memory_space<vmem>>, %arg10: memref<1x32xf32, #tpu.memory_space<vmem>>, %arg11: memref<1x32xf32, #tpu.memory_space<vmem>>, %arg12: memref<32x32xbf16, #tpu.memory_space<vmem>>, %arg13: memref<1x32xf32, #tpu.memory_space<vmem>>, %arg14: memref<1x32xf32, #tpu.memory_space<vmem>>, %arg15: memref<32x128xbf16, #tpu.memory_space<vmem>>, %arg16: memref<1x128xf32, #tpu.memory_space<vmem>>, %arg17: memref<1x32xf32, #tpu.memory_space<vmem>>, %arg18: memref<1x32xf32, #tpu.memory_space<vmem>>, %arg19: memref<2x128x128xbf16, #tpu.memory_space<any>>, %arg20: memref<2x128xf32, #tpu.memory_space<any>>, %arg21: memref<128x32xbf16, #tpu.memory_space<any>>, %arg22: memref<8x32xf32, #tpu.memory_space<vmem>>, %arg23: memref<8x32xf32, #tpu.memory_space<vmem>>) attributes {dimension_semantics = [#tpu.dimension_semantics<parallel>], iteration_bounds = array<i64: 2>, scalar_prefetch = 0 : i64, scratch_operands = 1 : i64, tpu.core_type = #tpu.core_type<tc>, window_params = [{transform_indices = @transform_0, window_bounds = array<i64: 8, 32>}, {pipeline_mode = #tpu.pipeline_mode<synchronous>, transform_indices = @transform_1, window_bounds = array<i64: 8, 32>}, {pipeline_mode = #tpu.pipeline_mode<synchronous>, transform_indices = @transform_2, window_bounds = array<i64: 1, 32>}, {pipeline_mode = #tpu.pipeline_mode<synchronous>, transform_indices = @transform_3, window_bounds = array<i64: 32, 32>}, {pipeline_mode = #tpu.pipeline_mode<synchronous>, transform_indices = @transform_4, window_bounds = array<i64: 1, 32>}, {pipeline_mode = #tpu.pipeline_mode<synchronous>, transform_indices = @transform_5, window_bounds = array<i64: 32, 32>}, {pipeline_mode = #tpu.pipeline_mode<synchronous>, transform_indices = @transform_6, window_bounds = array<i64: 1, 32>}, {pipeline_mode = #tpu.pipeline_mode<synchronous>, transform_indices = @transform_7, window_bounds = array<i64: 32, 32>}, {pipeline_mode = #tpu.pipeline_mode<synchronous>, transform_indices = @transform_8, window_bounds = array<i64: 1, 32>}, {pipeline_mode = #tpu.pipeline_mode<synchronous>, transform_indices = @transform_9, window_bounds = array<i64: 1, 32>}, {pipeline_mode = #tpu.pipeline_mode<synchronous>, transform_indices = @transform_10, window_bounds = array<i64: 1, 32>}, {pipeline_mode = #tpu.pipeline_mode<synchronous>, transform_indices = @transform_11, window_bounds = array<i64: 32, 32>}, {pipeline_mode = #tpu.pipeline_mode<synchronous>, transform_indices = @transform_12, window_bounds = array<i64: 1, 32>}, {pipeline_mode = #tpu.pipeline_mode<synchronous>, transform_indices = @transform_13, window_bounds = array<i64: 1, 32>}, {pipeline_mode = #tpu.pipeline_mode<synchronous>, transform_indices = @transform_14, window_bounds = array<i64: 32, 128>}, {pipeline_mode = #tpu.pipeline_mode<synchronous>, transform_indices = @transform_15, window_bounds = array<i64: 1, 128>}, {pipeline_mode = #tpu.pipeline_mode<synchronous>, transform_indices = @transform_16, window_bounds = array<i64: 1, 32>}, {pipeline_mode = #tpu.pipeline_mode<synchronous>, transform_indices = @transform_17, window_bounds = array<i64: 1, 32>}, {}, {}, {}, {transform_indices = @transform_21, window_bounds = array<i64: 8, 32>}]} {
    %c0 = arith.constant 0 : index
    %c0_0 = arith.constant 0 : index
    %0 = vector.load %arg1[%c0, %c0_0] : memref<8x32xf32, #tpu.memory_space<vmem>>, vector<8x32xf32>
    %c0_1 = arith.constant 0 : index
    %c0_2 = arith.constant 0 : index
    %1 = vector.load %arg3[%c0_1, %c0_2] : memref<1x32xf32, #tpu.memory_space<vmem>>, vector<1x32xf32>
    %2 = arith.mulf %0, %0 : vector<8x32xf32>
    %cst = arith.constant dense<0.000000e+00> : vector<8xf32>
    %3 = vector.multi_reduction <add>, %2, %cst [1] : vector<8x32xf32> to vector<8xf32>
    %4 = vector.shape_cast %3 : vector<8xf32> to vector<8x1xf32>
    %cst_3 = arith.constant 3.200000e+01 : f32
    %5 = vector.broadcast %cst_3 : f32 to vector<8x1xf32>
    %6 = arith.divf %4, %5 : vector<8x1xf32>
    %cst_4 = arith.constant 9.99999974E-6 : f32
    %7 = vector.broadcast %cst_4 : f32 to vector<8x1xf32>
    %8 = arith.addf %6, %7 : vector<8x1xf32>
    %9 = math.rsqrt %8 : vector<8x1xf32>
    %10 = vector.broadcast %9 : vector<8x1xf32> to vector<8x32xf32>
    %11 = arith.mulf %0, %10 : vector<8x32xf32>
    %12 = vector.broadcast %1 : vector<1x32xf32> to vector<8x32xf32>
    %13 = arith.mulf %11, %12 : vector<8x32xf32>
    %14 = arith.truncf %13 : vector<8x32xf32> to vector<8x32xbf16>
    %c0_5 = arith.constant 0 : index
    %c0_6 = arith.constant 0 : index
    %15 = vector.load %arg4[%c0_5, %c0_6] : memref<32x32xbf16, #tpu.memory_space<vmem>>, vector<32x32xbf16>
    %cst_7 = arith.constant dense<0.000000e+00> : vector<8x32xf32>
    %16 = tpu.matmul %14, %15, %cst_7 {dimension_numbers = #tpu.dot_dimension_numbers<[1], [0], [0], [1], [0, 0, 1, 1], [], []>} : vector<8x32xbf16>, vector<32x32xbf16>, vector<8x32xf32> -> vector<8x32xf32>
    %c0_8 = arith.constant 0 : index
    %c0_9 = arith.constant 0 : index
    %17 = vector.load %arg5[%c0_8, %c0_9] : memref<1x32xf32, #tpu.memory_space<vmem>>, vector<1x32xf32>
    %18 = vector.broadcast %17 : vector<1x32xf32> to vector<8x32xf32>
    %19 = arith.addf %16, %18 : vector<8x32xf32>
    %c0_10 = arith.constant 0 : index
    %c0_11 = arith.constant 0 : index
    %20 = vector.load %arg6[%c0_10, %c0_11] : memref<32x32xbf16, #tpu.memory_space<vmem>>, vector<32x32xbf16>
    %cst_12 = arith.constant dense<0.000000e+00> : vector<8x32xf32>
    %21 = tpu.matmul %14, %20, %cst_12 {dimension_numbers = #tpu.dot_dimension_numbers<[1], [0], [0], [1], [0, 0, 1, 1], [], []>} : vector<8x32xbf16>, vector<32x32xbf16>, vector<8x32xf32> -> vector<8x32xf32>
    %c0_13 = arith.constant 0 : index
    %c0_14 = arith.constant 0 : index
    %22 = vector.load %arg7[%c0_13, %c0_14] : memref<1x32xf32, #tpu.memory_space<vmem>>, vector<1x32xf32>
    %23 = vector.broadcast %22 : vector<1x32xf32> to vector<8x32xf32>
    %24 = arith.addf %21, %23 : vector<8x32xf32>
    %c0_15 = arith.constant 0 : index
    %c0_16 = arith.constant 0 : index
    %25 = vector.load %arg8[%c0_15, %c0_16] : memref<32x32xbf16, #tpu.memory_space<vmem>>, vector<32x32xbf16>
    %cst_17 = arith.constant dense<0.000000e+00> : vector<8x32xf32>
    %26 = tpu.matmul %14, %25, %cst_17 {dimension_numbers = #tpu.dot_dimension_numbers<[1], [0], [0], [1], [0, 0, 1, 1], [], []>} : vector<8x32xbf16>, vector<32x32xbf16>, vector<8x32xf32> -> vector<8x32xf32>
    %c0_18 = arith.constant 0 : index
    %c0_19 = arith.constant 0 : index
    %27 = vector.load %arg9[%c0_18, %c0_19] : memref<1x32xf32, #tpu.memory_space<vmem>>, vector<1x32xf32>
    %28 = vector.broadcast %27 : vector<1x32xf32> to vector<8x32xf32>
    %29 = arith.addf %26, %28 : vector<8x32xf32>
    %c0_20 = arith.constant 0 : index
    %c0_21 = arith.constant 0 : index
    %30 = vector.load %arg2[%c0_20, %c0_21] : memref<8x32xf32, #tpu.memory_space<vmem>>, vector<8x32xf32>
    %31 = vector.shape_cast %19 : vector<8x32xf32> to vector<1x8x32xf32>
    %32 = vector.shape_cast %30 : vector<8x32xf32> to vector<1x8x32xf32>
    %33 = arith.addf %31, %32 : vector<1x8x32xf32>
    %c0_22 = arith.constant 0 : index
    %c0_23 = arith.constant 0 : index
    %34 = vector.load %arg10[%c0_22, %c0_23] : memref<1x32xf32, #tpu.memory_space<vmem>>, vector<1x32xf32>
    %35 = arith.mulf %33, %33 : vector<1x8x32xf32>
    %cst_24 = arith.constant dense<0.000000e+00> : vector<1x8xf32>
    %36 = vector.multi_reduction <add>, %35, %cst_24 [2] : vector<1x8x32xf32> to vector<1x8xf32>
    %37 = vector.shape_cast %36 : vector<1x8xf32> to vector<1x8x1xf32>
    %cst_25 = arith.constant 3.200000e+01 : f32
    %38 = vector.broadcast %cst_25 : f32 to vector<1x8x1xf32>
    %39 = arith.divf %37, %38 : vector<1x8x1xf32>
    %cst_26 = arith.constant 9.99999974E-6 : f32
    %40 = vector.broadcast %cst_26 : f32 to vector<1x8x1xf32>
    %41 = arith.addf %39, %40 : vector<1x8x1xf32>
    %42 = math.rsqrt %41 : vector<1x8x1xf32>
    %43 = vector.broadcast %42 : vector<1x8x1xf32> to vector<1x8x32xf32>
    %44 = arith.mulf %33, %43 : vector<1x8x32xf32>
    %45 = vector.shape_cast %34 : vector<1x32xf32> to vector<1x1x32xf32>
    %46 = vector.broadcast %45 : vector<1x1x32xf32> to vector<1x8x32xf32>
    %47 = arith.mulf %44, %46 : vector<1x8x32xf32>
    %48 = vector.shape_cast %24 : vector<8x32xf32> to vector<1x8x32xf32>
    %49 = vector.shape_cast %30 : vector<8x32xf32> to vector<1x8x32xf32>
    %50 = arith.addf %48, %49 : vector<1x8x32xf32>
    %c0_27 = arith.constant 0 : index
    %c0_28 = arith.constant 0 : index
    %51 = vector.load %arg11[%c0_27, %c0_28] : memref<1x32xf32, #tpu.memory_space<vmem>>, vector<1x32xf32>
    %52 = arith.mulf %50, %50 : vector<1x8x32xf32>
    %cst_29 = arith.constant dense<0.000000e+00> : vector<1x8xf32>
    %53 = vector.multi_reduction <add>, %52, %cst_29 [2] : vector<1x8x32xf32> to vector<1x8xf32>
    %54 = vector.shape_cast %53 : vector<1x8xf32> to vector<1x8x1xf32>
    %cst_30 = arith.constant 3.200000e+01 : f32
    %55 = vector.broadcast %cst_30 : f32 to vector<1x8x1xf32>
    %56 = arith.divf %54, %55 : vector<1x8x1xf32>
    %cst_31 = arith.constant 9.99999974E-6 : f32
    %57 = vector.broadcast %cst_31 : f32 to vector<1x8x1xf32>
    %58 = arith.addf %56, %57 : vector<1x8x1xf32>
    %59 = math.rsqrt %58 : vector<1x8x1xf32>
    %60 = vector.broadcast %59 : vector<1x8x1xf32> to vector<1x8x32xf32>
    %61 = arith.mulf %50, %60 : vector<1x8x32xf32>
    %62 = vector.shape_cast %51 : vector<1x32xf32> to vector<1x1x32xf32>
    %63 = vector.broadcast %62 : vector<1x1x32xf32> to vector<1x8x32xf32>
    %64 = arith.mulf %61, %63 : vector<1x8x32xf32>
    %65 = vector.shape_cast %29 : vector<8x32xf32> to vector<1x8x32xf32>
    %66 = arith.truncf %47 : vector<1x8x32xf32> to vector<1x8x32xbf16>
    %67 = arith.truncf %64 : vector<1x8x32xf32> to vector<1x8x32xbf16>
    %68 = arith.truncf %65 : vector<1x8x32xf32> to vector<1x8x32xbf16>
    %69 = vector.extract_strided_slice %66 {offsets = [0, 0, 0], sizes = [1, 8, 8], strides = [1, 1, 1]} : vector<1x8x32xbf16> to vector<1x8x8xbf16>
    %70 = vector.extract_strided_slice %67 {offsets = [0, 0, 0], sizes = [1, 8, 8], strides = [1, 1, 1]} : vector<1x8x32xbf16> to vector<1x8x8xbf16>
    "tpu.trace_start"() <{level = 10 : i32, message = "bqd,bkd->bqk"}> : () -> ()
    %cst_32 = arith.constant dense<0.000000e+00> : vector<1x8x8xf32>
    %71 = tpu.matmul %69, %70, %cst_32 {dimension_numbers = #tpu.dot_dimension_numbers<[2], [2], [1], [1], [0, 0, 0, 1, 1, 1], [0], [0]>} : vector<1x8x8xbf16>, vector<1x8x8xbf16>, vector<1x8x8xf32> -> vector<1x8x8xf32>
    "tpu.trace_stop"() : () -> ()
    %cst_33 = arith.constant 0.353553385 : f32
    %72 = vector.broadcast %cst_33 : f32 to vector<1x8x8xf32>
    %73 = arith.mulf %71, %72 : vector<1x8x8xf32>
    %cst_34 = arith.constant dense<0xFF800000> : vector<1x8xf32>
    %74 = vector.multi_reduction <maximumf>, %73, %cst_34 [2] : vector<1x8x8xf32> to vector<1x8xf32>
    %75 = vector.shape_cast %74 : vector<1x8xf32> to vector<1x8x1xf32>
    %76 = vector.broadcast %75 : vector<1x8x1xf32> to vector<1x8x8xf32>
    %77 = arith.subf %73, %76 : vector<1x8x8xf32>
    %78 = math.exp %77 : vector<1x8x8xf32>
    %cst_35 = arith.constant dense<0.000000e+00> : vector<1x8xf32>
    %79 = vector.multi_reduction <add>, %78, %cst_35 [2] : vector<1x8x8xf32> to vector<1x8xf32>
    %80 = vector.shape_cast %79 : vector<1x8xf32> to vector<1x8x1xf32>
    %81 = tpu.reciprocal %80 {approx = true} : vector<1x8x1xf32> -> vector<1x8x1xf32>
    %82 = vector.broadcast %81 : vector<1x8x1xf32> to vector<1x8x8xf32>
    %83 = arith.mulf %78, %82 : vector<1x8x8xf32>
    %84 = arith.truncf %83 : vector<1x8x8xf32> to vector<1x8x8xbf16>
    %85 = vector.extract_strided_slice %68 {offsets = [0, 0, 0], sizes = [1, 8, 8], strides = [1, 1, 1]} : vector<1x8x32xbf16> to vector<1x8x8xbf16>
    "tpu.trace_start"() <{level = 10 : i32, message = "bqk,bkd->bqd"}> : () -> ()
    %cst_36 = arith.constant dense<0.000000e+00> : vector<1x8x8xf32>
    %86 = tpu.matmul %84, %85, %cst_36 {dimension_numbers = #tpu.dot_dimension_numbers<[2], [1], [1], [2], [0, 0, 0, 1, 1, 2], [0], [0]>} : vector<1x8x8xbf16>, vector<1x8x8xbf16>, vector<1x8x8xf32> -> vector<1x8x8xf32>
    "tpu.trace_stop"() : () -> ()
    %87 = vector.extract_strided_slice %66 {offsets = [0, 0, 8], sizes = [1, 8, 8], strides = [1, 1, 1]} : vector<1x8x32xbf16> to vector<1x8x8xbf16>
    %88 = vector.extract_strided_slice %67 {offsets = [0, 0, 8], sizes = [1, 8, 8], strides = [1, 1, 1]} : vector<1x8x32xbf16> to vector<1x8x8xbf16>
    "tpu.trace_start"() <{level = 10 : i32, message = "bqd,bkd->bqk"}> : () -> ()
    %cst_37 = arith.constant dense<0.000000e+00> : vector<1x8x8xf32>
    %89 = tpu.matmul %87, %88, %cst_37 {dimension_numbers = #tpu.dot_dimension_numbers<[2], [2], [1], [1], [0, 0, 0, 1, 1, 1], [0], [0]>} : vector<1x8x8xbf16>, vector<1x8x8xbf16>, vector<1x8x8xf32> -> vector<1x8x8xf32>
    "tpu.trace_stop"() : () -> ()
    %cst_38 = arith.constant 0.353553385 : f32
    %90 = vector.broadcast %cst_38 : f32 to vector<1x8x8xf32>
    %91 = arith.mulf %89, %90 : vector<1x8x8xf32>
    %cst_39 = arith.constant dense<0xFF800000> : vector<1x8xf32>
    %92 = vector.multi_reduction <maximumf>, %91, %cst_39 [2] : vector<1x8x8xf32> to vector<1x8xf32>
    %93 = vector.shape_cast %92 : vector<1x8xf32> to vector<1x8x1xf32>
    %94 = vector.broadcast %93 : vector<1x8x1xf32> to vector<1x8x8xf32>
    %95 = arith.subf %91, %94 : vector<1x8x8xf32>
    %96 = math.exp %95 : vector<1x8x8xf32>
    %cst_40 = arith.constant dense<0.000000e+00> : vector<1x8xf32>
    %97 = vector.multi_reduction <add>, %96, %cst_40 [2] : vector<1x8x8xf32> to vector<1x8xf32>
    %98 = vector.shape_cast %97 : vector<1x8xf32> to vector<1x8x1xf32>
    %99 = tpu.reciprocal %98 {approx = true} : vector<1x8x1xf32> -> vector<1x8x1xf32>
    %100 = vector.broadcast %99 : vector<1x8x1xf32> to vector<1x8x8xf32>
    %101 = arith.mulf %96, %100 : vector<1x8x8xf32>
    %102 = arith.truncf %101 : vector<1x8x8xf32> to vector<1x8x8xbf16>
    %103 = vector.extract_strided_slice %68 {offsets = [0, 0, 8], sizes = [1, 8, 8], strides = [1, 1, 1]} : vector<1x8x32xbf16> to vector<1x8x8xbf16>
    "tpu.trace_start"() <{level = 10 : i32, message = "bqk,bkd->bqd"}> : () -> ()
    %cst_41 = arith.constant dense<0.000000e+00> : vector<1x8x8xf32>
    %104 = tpu.matmul %102, %103, %cst_41 {dimension_numbers = #tpu.dot_dimension_numbers<[2], [1], [1], [2], [0, 0, 0, 1, 1, 2], [0], [0]>} : vector<1x8x8xbf16>, vector<1x8x8xbf16>, vector<1x8x8xf32> -> vector<1x8x8xf32>
    "tpu.trace_stop"() : () -> ()
    %105 = vector.extract_strided_slice %66 {offsets = [0, 0, 16], sizes = [1, 8, 8], strides = [1, 1, 1]} : vector<1x8x32xbf16> to vector<1x8x8xbf16>
    %106 = vector.extract_strided_slice %67 {offsets = [0, 0, 16], sizes = [1, 8, 8], strides = [1, 1, 1]} : vector<1x8x32xbf16> to vector<1x8x8xbf16>
    "tpu.trace_start"() <{level = 10 : i32, message = "bqd,bkd->bqk"}> : () -> ()
    %cst_42 = arith.constant dense<0.000000e+00> : vector<1x8x8xf32>
    %107 = tpu.matmul %105, %106, %cst_42 {dimension_numbers = #tpu.dot_dimension_numbers<[2], [2], [1], [1], [0, 0, 0, 1, 1, 1], [0], [0]>} : vector<1x8x8xbf16>, vector<1x8x8xbf16>, vector<1x8x8xf32> -> vector<1x8x8xf32>
    "tpu.trace_stop"() : () -> ()
    %cst_43 = arith.constant 0.353553385 : f32
    %108 = vector.broadcast %cst_43 : f32 to vector<1x8x8xf32>
    %109 = arith.mulf %107, %108 : vector<1x8x8xf32>
    %cst_44 = arith.constant dense<0xFF800000> : vector<1x8xf32>
    %110 = vector.multi_reduction <maximumf>, %109, %cst_44 [2] : vector<1x8x8xf32> to vector<1x8xf32>
    %111 = vector.shape_cast %110 : vector<1x8xf32> to vector<1x8x1xf32>
    %112 = vector.broadcast %111 : vector<1x8x1xf32> to vector<1x8x8xf32>
    %113 = arith.subf %109, %112 : vector<1x8x8xf32>
    %114 = math.exp %113 : vector<1x8x8xf32>
    %cst_45 = arith.constant dense<0.000000e+00> : vector<1x8xf32>
    %115 = vector.multi_reduction <add>, %114, %cst_45 [2] : vector<1x8x8xf32> to vector<1x8xf32>
    %116 = vector.shape_cast %115 : vector<1x8xf32> to vector<1x8x1xf32>
    %117 = tpu.reciprocal %116 {approx = true} : vector<1x8x1xf32> -> vector<1x8x1xf32>
    %118 = vector.broadcast %117 : vector<1x8x1xf32> to vector<1x8x8xf32>
    %119 = arith.mulf %114, %118 : vector<1x8x8xf32>
    %120 = arith.truncf %119 : vector<1x8x8xf32> to vector<1x8x8xbf16>
    %121 = vector.extract_strided_slice %68 {offsets = [0, 0, 16], sizes = [1, 8, 8], strides = [1, 1, 1]} : vector<1x8x32xbf16> to vector<1x8x8xbf16>
    "tpu.trace_start"() <{level = 10 : i32, message = "bqk,bkd->bqd"}> : () -> ()
    %cst_46 = arith.constant dense<0.000000e+00> : vector<1x8x8xf32>
    %122 = tpu.matmul %120, %121, %cst_46 {dimension_numbers = #tpu.dot_dimension_numbers<[2], [1], [1], [2], [0, 0, 0, 1, 1, 2], [0], [0]>} : vector<1x8x8xbf16>, vector<1x8x8xbf16>, vector<1x8x8xf32> -> vector<1x8x8xf32>
    "tpu.trace_stop"() : () -> ()
    %123 = vector.extract_strided_slice %66 {offsets = [0, 0, 24], sizes = [1, 8, 8], strides = [1, 1, 1]} : vector<1x8x32xbf16> to vector<1x8x8xbf16>
    %124 = vector.extract_strided_slice %67 {offsets = [0, 0, 24], sizes = [1, 8, 8], strides = [1, 1, 1]} : vector<1x8x32xbf16> to vector<1x8x8xbf16>
    "tpu.trace_start"() <{level = 10 : i32, message = "bqd,bkd->bqk"}> : () -> ()
    %cst_47 = arith.constant dense<0.000000e+00> : vector<1x8x8xf32>
    %125 = tpu.matmul %123, %124, %cst_47 {dimension_numbers = #tpu.dot_dimension_numbers<[2], [2], [1], [1], [0, 0, 0, 1, 1, 1], [0], [0]>} : vector<1x8x8xbf16>, vector<1x8x8xbf16>, vector<1x8x8xf32> -> vector<1x8x8xf32>
    "tpu.trace_stop"() : () -> ()
    %cst_48 = arith.constant 0.353553385 : f32
    %126 = vector.broadcast %cst_48 : f32 to vector<1x8x8xf32>
    %127 = arith.mulf %125, %126 : vector<1x8x8xf32>
    %cst_49 = arith.constant dense<0xFF800000> : vector<1x8xf32>
    %128 = vector.multi_reduction <maximumf>, %127, %cst_49 [2] : vector<1x8x8xf32> to vector<1x8xf32>
    %129 = vector.shape_cast %128 : vector<1x8xf32> to vector<1x8x1xf32>
    %130 = vector.broadcast %129 : vector<1x8x1xf32> to vector<1x8x8xf32>
    %131 = arith.subf %127, %130 : vector<1x8x8xf32>
    %132 = math.exp %131 : vector<1x8x8xf32>
    %cst_50 = arith.constant dense<0.000000e+00> : vector<1x8xf32>
    %133 = vector.multi_reduction <add>, %132, %cst_50 [2] : vector<1x8x8xf32> to vector<1x8xf32>
    %134 = vector.shape_cast %133 : vector<1x8xf32> to vector<1x8x1xf32>
    %135 = tpu.reciprocal %134 {approx = true} : vector<1x8x1xf32> -> vector<1x8x1xf32>
    %136 = vector.broadcast %135 : vector<1x8x1xf32> to vector<1x8x8xf32>
    %137 = arith.mulf %132, %136 : vector<1x8x8xf32>
    %138 = arith.truncf %137 : vector<1x8x8xf32> to vector<1x8x8xbf16>
    %139 = vector.extract_strided_slice %68 {offsets = [0, 0, 24], sizes = [1, 8, 8], strides = [1, 1, 1]} : vector<1x8x32xbf16> to vector<1x8x8xbf16>
    "tpu.trace_start"() <{level = 10 : i32, message = "bqk,bkd->bqd"}> : () -> ()
    %cst_51 = arith.constant dense<0.000000e+00> : vector<1x8x8xf32>
    %140 = tpu.matmul %138, %139, %cst_51 {dimension_numbers = #tpu.dot_dimension_numbers<[2], [1], [1], [2], [0, 0, 0, 1, 1, 2], [0], [0]>} : vector<1x8x8xbf16>, vector<1x8x8xbf16>, vector<1x8x8xf32> -> vector<1x8x8xf32>
    "tpu.trace_stop"() : () -> ()
    %141 = tpu.concatenate %86, %104, %122, %140 in 2 : vector<1x8x8xf32>, vector<1x8x8xf32>, vector<1x8x8xf32>, vector<1x8x8xf32> -> vector<1x8x32xf32>
    %142 = vector.shape_cast %141 : vector<1x8x32xf32> to vector<8x32xf32>
    %143 = arith.truncf %142 : vector<8x32xf32> to vector<8x32xbf16>
    %c0_52 = arith.constant 0 : index
    %c0_53 = arith.constant 0 : index
    %144 = vector.load %arg12[%c0_52, %c0_53] : memref<32x32xbf16, #tpu.memory_space<vmem>>, vector<32x32xbf16>
    %cst_54 = arith.constant dense<0.000000e+00> : vector<8x32xf32>
    %145 = tpu.matmul %143, %144, %cst_54 {dimension_numbers = #tpu.dot_dimension_numbers<[1], [0], [0], [1], [0, 0, 1, 1], [], []>} : vector<8x32xbf16>, vector<32x32xbf16>, vector<8x32xf32> -> vector<8x32xf32>
    %c0_55 = arith.constant 0 : index
    %c0_56 = arith.constant 0 : index
    %146 = vector.load %arg13[%c0_55, %c0_56] : memref<1x32xf32, #tpu.memory_space<vmem>>, vector<1x32xf32>
    %147 = vector.broadcast %146 : vector<1x32xf32> to vector<8x32xf32>
    %148 = arith.addf %145, %147 : vector<8x32xf32>
    %149 = arith.addf %0, %148 : vector<8x32xf32>
    %c0_57 = arith.constant 0 : index
    %c0_58 = arith.constant 0 : index
    %150 = vector.load %arg14[%c0_57, %c0_58] : memref<1x32xf32, #tpu.memory_space<vmem>>, vector<1x32xf32>
    %151 = arith.mulf %149, %149 : vector<8x32xf32>
    %cst_59 = arith.constant dense<0.000000e+00> : vector<8xf32>
    %152 = vector.multi_reduction <add>, %151, %cst_59 [1] : vector<8x32xf32> to vector<8xf32>
    %153 = vector.shape_cast %152 : vector<8xf32> to vector<8x1xf32>
    %cst_60 = arith.constant 3.200000e+01 : f32
    %154 = vector.broadcast %cst_60 : f32 to vector<8x1xf32>
    %155 = arith.divf %153, %154 : vector<8x1xf32>
    %cst_61 = arith.constant 9.99999974E-6 : f32
    %156 = vector.broadcast %cst_61 : f32 to vector<8x1xf32>
    %157 = arith.addf %155, %156 : vector<8x1xf32>
    %158 = math.rsqrt %157 : vector<8x1xf32>
    %159 = vector.broadcast %158 : vector<8x1xf32> to vector<8x32xf32>
    %160 = arith.mulf %149, %159 : vector<8x32xf32>
    %161 = vector.broadcast %150 : vector<1x32xf32> to vector<8x32xf32>
    %162 = arith.mulf %160, %161 : vector<8x32xf32>
    %163 = arith.truncf %162 : vector<8x32xf32> to vector<8x32xbf16>
    %c0_62 = arith.constant 0 : index
    %c0_63 = arith.constant 0 : index
    %164 = vector.load %arg15[%c0_62, %c0_63] : memref<32x128xbf16, #tpu.memory_space<vmem>>, vector<32x128xbf16>
    %cst_64 = arith.constant dense<0.000000e+00> : vector<8x128xf32>
    %165 = tpu.matmul %163, %164, %cst_64 {dimension_numbers = #tpu.dot_dimension_numbers<[1], [0], [0], [1], [0, 0, 1, 1], [], []>} : vector<8x32xbf16>, vector<32x128xbf16>, vector<8x128xf32> -> vector<8x128xf32>
    %c0_65 = arith.constant 0 : index
    %c0_66 = arith.constant 0 : index
    %166 = vector.load %arg16[%c0_65, %c0_66] : memref<1x128xf32, #tpu.memory_space<vmem>>, vector<1x128xf32>
    %167 = vector.broadcast %166 : vector<1x128xf32> to vector<8x128xf32>
    %168 = arith.addf %165, %167 : vector<8x128xf32>
    %169 = arith.truncf %168 : vector<8x128xf32> to vector<8x128xbf16>
    %cst_67 = arith.constant 0.000000e+00 : f32
    %170 = vector.broadcast %cst_67 : f32 to vector<8x32xf32>
    %c0_68 = arith.constant 0 : index
    %c0_69 = arith.constant 0 : index
    %171 = vector.load %arg23[%c0_68, %c0_69] : memref<8x32xf32, #tpu.memory_space<vmem>>, vector<8x32xf32>
    tpu.vector_store %arg23[%c0_68, %c0_69], %170 {strides = array<i32>} : memref<8x32xf32, #tpu.memory_space<vmem>>, vector<8x32xf32>,
    %c1_i32 = arith.constant 1 : i32
    %c1_i32_70 = arith.constant 1 : i32
    %172 = arith.muli %c1_i32, %c1_i32_70 : i32
    "tpu.region"() ({
      %alloca = memref.alloca() : memref<2x128x128xbf16, #tpu.memory_space<vmem>>
      %alloca_82 = memref.alloca() : memref<2x128xf32, #tpu.memory_space<vmem>>
      %alloca_83 = memref.alloca() : memref<128x32xbf16, #tpu.memory_space<vmem>>
      %c0_i32 = arith.constant 0 : i32
      %192 = arith.cmpi sgt, %172, %c0_i32 : i32
      %193 = arith.extui %192 : i1 to i32
      %c0_i32_84 = arith.constant 0 : i32
      %194 = arith.cmpi ne, %193, %c0_i32_84 : i32
      scf.if %194 {
        %c1_i32_85 = arith.constant 1 : i32
        %c1_i32_86 = arith.constant 1 : i32
        %195 = arith.muli %c1_i32_85, %c1_i32_86 : i32
        %c1_i32_87 = arith.constant 1 : i32
        %196 = arith.subi %195, %c1_i32_87 : i32
        %c0_i32_88 = arith.constant 0 : i32
        %197 = arith.cmpi eq, %196, %c0_i32_88 : i32
        %true = arith.constant true
        %c0_i32_89 = arith.constant 0 : i32
        %c-1_i32 = arith.constant -1 : i32
        %198 = arith.select %true, %c-1_i32, %c0_i32_89 : i32
        %c-1_i32_90 = arith.constant -1 : i32
        %199 = arith.cmpi eq, %198, %c-1_i32_90 : i32
        %c0_i32_91 = arith.constant 0 : i32
        %200 = arith.select %199, %c0_i32_91, %198 : i32
        %true_92 = arith.constant true
        %c0_i32_93 = arith.constant 0 : i32
        %c1_i32_94 = arith.constant 1 : i32
        %201 = arith.select %true_92, %c1_i32_94, %c0_i32_93 : i32
        %c1_i32_95 = arith.constant 1 : i32
        %202 = arith.cmpi eq, %201, %c1_i32_95 : i32
        %c0_i32_96 = arith.constant 0 : i32
        %203 = arith.select %202, %c0_i32_96, %201 : i32
        %true_97 = arith.constant true
        %c0_i32_98 = arith.constant 0 : i32
        %c1_i32_99 = arith.constant 1 : i32
        %204 = arith.select %true_97, %c1_i32_99, %c0_i32_98 : i32
        %c1_i32_100 = arith.constant 1 : i32
        %205 = arith.cmpi eq, %204, %c1_i32_100 : i32
        %c0_i32_101 = arith.constant 0 : i32
        %206 = arith.select %205, %c0_i32_101, %204 : i32
        "tpu.region"() ({
          %228 = tpu.sem_alloc : memref<!tpu.dma_semaphore, #tpu.memory_space<semaphore_mem>>
          tpu.enqueue_dma source(%arg19 : memref<2x128x128xbf16, #tpu.memory_space<any>>) target(%alloca : memref<2x128x128xbf16, #tpu.memory_space<vmem>>) target_semaphore(%228 : memref<!tpu.dma_semaphore, #tpu.memory_space<semaphore_mem>>)
          tpu.wait_dma2 semaphore(%228 : memref<!tpu.dma_semaphore, #tpu.memory_space<semaphore_mem>>) src(%arg19 : memref<2x128x128xbf16, #tpu.memory_space<any>>) dst(%alloca : memref<2x128x128xbf16, #tpu.memory_space<vmem>>)
          tpu.yield
        }) : () -> ()
        "tpu.region"() ({
          %228 = tpu.sem_alloc : memref<!tpu.dma_semaphore, #tpu.memory_space<semaphore_mem>>
          tpu.enqueue_dma source(%arg20 : memref<2x128xf32, #tpu.memory_space<any>>) target(%alloca_82 : memref<2x128xf32, #tpu.memory_space<vmem>>) target_semaphore(%228 : memref<!tpu.dma_semaphore, #tpu.memory_space<semaphore_mem>>)
          tpu.wait_dma2 semaphore(%228 : memref<!tpu.dma_semaphore, #tpu.memory_space<semaphore_mem>>) src(%arg20 : memref<2x128xf32, #tpu.memory_space<any>>) dst(%alloca_82 : memref<2x128xf32, #tpu.memory_space<vmem>>)
          tpu.yield
        }) : () -> ()
        "tpu.region"() ({
          %228 = tpu.sem_alloc : memref<!tpu.dma_semaphore, #tpu.memory_space<semaphore_mem>>
          tpu.enqueue_dma source(%arg21 : memref<128x32xbf16, #tpu.memory_space<any>>) target(%alloca_83 : memref<128x32xbf16, #tpu.memory_space<vmem>>) target_semaphore(%228 : memref<!tpu.dma_semaphore, #tpu.memory_space<semaphore_mem>>)
          tpu.wait_dma2 semaphore(%228 : memref<!tpu.dma_semaphore, #tpu.memory_space<semaphore_mem>>) src(%arg21 : memref<128x32xbf16, #tpu.memory_space<any>>) dst(%alloca_83 : memref<128x32xbf16, #tpu.memory_space<vmem>>)
          tpu.yield
        }) : () -> ()
        %c0_i32_102 = arith.constant 0 : i32
        %c0_i32_103 = arith.constant 0 : i32
        %c0_i32_104 = arith.constant 0 : i32
        %c0_i32_105 = arith.constant 0 : i32
        %c0_i32_106 = arith.constant 0 : i32
        %c0_i32_107 = arith.constant 0 : i32
        %c0_i32_108 = arith.constant 0 : i32
        %c0_i32_109 = arith.constant 0 : i32
        %207 = arith.subi %172, %c0_i32_105 : i32
        %208 = arith.addi %c0_i32_105, %207 : i32
        %c1_i32_110 = arith.constant 1 : i32
        %209:4 = scf.for %arg24 = %c0_i32_105 to %208 step %c1_i32_110 iter_args(%arg25 = %c0_i32_106, %arg26 = %c0_i32_107, %arg27 = %c0_i32_108, %arg28 = %c0_i32_109) -> (i32, i32, i32, i32)  : i32 {
          %c1_i32_135 = arith.constant 1 : i32
          %c1_i32_136 = arith.constant 1 : i32
          %228 = arith.muli %c1_i32_135, %c1_i32_136 : i32
          %c0_i32_137 = arith.constant 0 : i32
          %229 = arith.cmpi eq, %arg24, %c0_i32_137 : i32
          %c1_i32_138 = arith.constant 1 : i32
          %230 = arith.subi %228, %c1_i32_138 : i32
          %231 = arith.cmpi eq, %arg24, %230 : i32
          %true_139 = arith.constant true
          %c0_i32_140 = arith.constant 0 : i32
          %c-1_i32_141 = arith.constant -1 : i32
          %232 = arith.select %true_139, %c-1_i32_141, %c0_i32_140 : i32
          %c-1_i32_142 = arith.constant -1 : i32
          %233 = arith.cmpi eq, %232, %c-1_i32_142 : i32
          %c0_i32_143 = arith.constant 0 : i32
          %234 = arith.select %233, %c0_i32_143, %232 : i32
          %true_144 = arith.constant true
          %c0_i32_145 = arith.constant 0 : i32
          %c1_i32_146 = arith.constant 1 : i32
          %235 = arith.select %true_144, %c1_i32_146, %c0_i32_145 : i32
          %c1_i32_147 = arith.constant 1 : i32
          %236 = arith.cmpi eq, %235, %c1_i32_147 : i32
          %c0_i32_148 = arith.constant 0 : i32
          %237 = arith.select %236, %c0_i32_148, %235 : i32
          %true_149 = arith.constant true
          %c0_i32_150 = arith.constant 0 : i32
          %c1_i32_151 = arith.constant 1 : i32
          %238 = arith.select %true_149, %c1_i32_151, %c0_i32_150 : i32
          %c1_i32_152 = arith.constant 1 : i32
          %239 = arith.cmpi eq, %238, %c1_i32_152 : i32
          %c0_i32_153 = arith.constant 0 : i32
          %240 = arith.select %239, %c0_i32_153, %238 : i32
          "tpu.trace_start"() <{level = 10 : i32, message = "ep_run_kernel"}> : () -> ()
          %c0_154 = arith.constant 0 : index
          %c0_155 = arith.constant 0 : index
          %241 = vector.load %alloca_82[%c0_154, %c0_155] : memref<2x128xf32, #tpu.memory_space<vmem>>, vector<2x128xf32>
          %c0_156 = arith.constant 0 : index
          %c0_157 = arith.constant 0 : index
          %c0_158 = arith.constant 0 : index
          %242 = vector.load %alloca[%c0_156, %c0_157, %c0_158] : memref<2x128x128xbf16, #tpu.memory_space<vmem>>, vector<1x128x128xbf16>
          %243 = vector.shape_cast %242 : vector<1x128x128xbf16> to vector<128x128xbf16>
          %cst_159 = arith.constant dense<0.000000e+00> : vector<8x128xf32>
          %244 = tpu.matmul %169, %243, %cst_159 {dimension_numbers = #tpu.dot_dimension_numbers<[1], [0], [0], [1], [0, 0, 1, 1], [], []>} : vector<8x128xbf16>, vector<128x128xbf16>, vector<8x128xf32> -> vector<8x128xf32>
          %245 = vector.extract_strided_slice %241 {offsets = [0, 0], sizes = [1, 128], strides = [1, 1]} : vector<2x128xf32> to vector<1x128xf32>
          %246 = vector.broadcast %245 : vector<1x128xf32> to vector<8x128xf32>
          %247 = arith.addf %244, %246 : vector<8x128xf32>
          %c1 = arith.constant 1 : index
          %c0_160 = arith.constant 0 : index
          %c0_161 = arith.constant 0 : index
          %248 = vector.load %alloca[%c1, %c0_160, %c0_161] : memref<2x128x128xbf16, #tpu.memory_space<vmem>>, vector<1x128x128xbf16>
          %249 = vector.shape_cast %248 : vector<1x128x128xbf16> to vector<128x128xbf16>
          %cst_162 = arith.constant dense<0.000000e+00> : vector<8x128xf32>
          %250 = tpu.matmul %169, %249, %cst_162 {dimension_numbers = #tpu.dot_dimension_numbers<[1], [0], [0], [1], [0, 0, 1, 1], [], []>} : vector<8x128xbf16>, vector<128x128xbf16>, vector<8x128xf32> -> vector<8x128xf32>
          %251 = vector.extract_strided_slice %241 {offsets = [1, 0], sizes = [1, 128], strides = [1, 1]} : vector<2x128xf32> to vector<1x128xf32>
          %252 = vector.broadcast %251 : vector<1x128xf32> to vector<8x128xf32>
          %253 = arith.addf %250, %252 : vector<8x128xf32>
          %254 = arith.negf %247 : vector<8x128xf32>
          %255 = math.exp %254 : vector<8x128xf32>
          %cst_163 = arith.constant 1.000000e+00 : f32
          %256 = vector.broadcast %cst_163 : f32 to vector<8x128xf32>
          %257 = arith.addf %256, %255 : vector<8x128xf32>
          %258 = arith.divf %256, %257 : vector<8x128xf32>
          %259 = arith.mulf %247, %258 : vector<8x128xf32>
          %260 = arith.mulf %259, %253 : vector<8x128xf32>
          %c0_164 = arith.constant 0 : index
          %c0_165 = arith.constant 0 : index
          %261 = vector.load %arg23[%c0_164, %c0_165] : memref<8x32xf32, #tpu.memory_space<vmem>>, vector<8x32xf32>
          %262 = arith.truncf %260 : vector<8x128xf32> to vector<8x128xbf16>
          %c0_166 = arith.constant 0 : index
          %c0_167 = arith.constant 0 : index
          %263 = vector.load %alloca_83[%c0_166, %c0_167] : memref<128x32xbf16, #tpu.memory_space<vmem>>, vector<128x32xbf16>
          %cst_168 = arith.constant dense<0.000000e+00> : vector<8x32xf32>
          %264 = tpu.matmul %262, %263, %cst_168 {dimension_numbers = #tpu.dot_dimension_numbers<[1], [0], [0], [1], [0, 0, 1, 1], [], []>} : vector<8x128xbf16>, vector<128x32xbf16>, vector<8x32xf32> -> vector<8x32xf32>
          %265 = arith.addf %261, %264 : vector<8x32xf32>
          %c0_169 = arith.constant 0 : index
          %c0_170 = arith.constant 0 : index
          %266 = vector.load %arg23[%c0_169, %c0_170] : memref<8x32xf32, #tpu.memory_space<vmem>>, vector<8x32xf32>
          tpu.vector_store %arg23[%c0_169, %c0_170], %265 {strides = array<i32>} : memref<8x32xf32, #tpu.memory_space<vmem>>, vector<8x32xf32>,
          "tpu.trace_stop"() : () -> ()
          %false = arith.constant false
          %267 = arith.ori %false, %231 : i1
          %c1_i32_171 = arith.constant 1 : i32
          %268 = arith.addi %arg25, %c1_i32_171 : i32
          %269 = arith.select %267, %268, %arg25 : i32
          %false_172 = arith.constant false
          %270 = arith.ori %false_172, %231 : i1
          %c1_i32_173 = arith.constant 1 : i32
          %271 = arith.addi %arg26, %c1_i32_173 : i32
          %272 = arith.select %270, %271, %arg26 : i32
          %false_174 = arith.constant false
          %273 = arith.ori %false_174, %231 : i1
          %c1_i32_175 = arith.constant 1 : i32
          %274 = arith.addi %arg27, %c1_i32_175 : i32
          %275 = arith.select %273, %274, %arg27 : i32
          %true_176 = arith.constant true
          %c0_i32_177 = arith.constant 0 : i32
          %c1_i32_178 = arith.constant 1 : i32
          %276 = arith.select %true_176, %c1_i32_178, %c0_i32_177 : i32
          %c1_i32_179 = arith.constant 1 : i32
          %277 = arith.cmpi eq, %276, %c1_i32_179 : i32
          %c0_i32_180 = arith.constant 0 : i32
          %278 = arith.select %277, %c0_i32_180, %276 : i32
          %c0_i32_181 = arith.constant 0 : i32
          scf.yield %269, %272, %275, %c0_i32_181 : i32, i32, i32, i32
        }
        %c1_i32_111 = arith.constant 1 : i32
        %210 = arith.subi %209#3, %c1_i32_111 : i32
        %true_112 = arith.constant true
        %211 = arith.select %true_112, %210, %209#3 : i32
        %c-1_i32_113 = arith.constant -1 : i32
        %212 = arith.cmpi eq, %211, %c-1_i32_113 : i32
        %c0_i32_114 = arith.constant 0 : i32
        %213 = arith.select %212, %c0_i32_114, %211 : i32
        %c1_i32_115 = arith.constant 1 : i32
        %214 = arith.subi %172, %c1_i32_115 : i32
        %c1_i32_116 = arith.constant 1 : i32
        %c1_i32_117 = arith.constant 1 : i32
        %215 = arith.muli %c1_i32_116, %c1_i32_117 : i32
        %c0_i32_118 = arith.constant 0 : i32
        %216 = arith.cmpi eq, %214, %c0_i32_118 : i32
        %c1_i32_119 = arith.constant 1 : i32
        %217 = arith.subi %215, %c1_i32_119 : i32
        %218 = arith.cmpi eq, %214, %217 : i32
        %true_120 = arith.constant true
        %c0_i32_121 = arith.constant 0 : i32
        %c-1_i32_122 = arith.constant -1 : i32
        %219 = arith.select %true_120, %c-1_i32_122, %c0_i32_121 : i32
        %c-1_i32_123 = arith.constant -1 : i32
        %220 = arith.cmpi eq, %219, %c-1_i32_123 : i32
        %c0_i32_124 = arith.constant 0 : i32
        %221 = arith.select %220, %c0_i32_124, %219 : i32
        %true_125 = arith.constant true
        %c0_i32_126 = arith.constant 0 : i32
        %c1_i32_127 = arith.constant 1 : i32
        %222 = arith.select %true_125, %c1_i32_127, %c0_i32_126 : i32
        %c1_i32_128 = arith.constant 1 : i32
        %223 = arith.cmpi eq, %222, %c1_i32_128 : i32
        %c0_i32_129 = arith.constant 0 : i32
        %224 = arith.select %223, %c0_i32_129, %222 : i32
        %true_130 = arith.constant true
        %c0_i32_131 = arith.constant 0 : i32
        %c1_i32_132 = arith.constant 1 : i32
        %225 = arith.select %true_130, %c1_i32_132, %c0_i32_131 : i32
        %c1_i32_133 = arith.constant 1 : i32
        %226 = arith.cmpi eq, %225, %c1_i32_133 : i32
        %c0_i32_134 = arith.constant 0 : i32
        %227 = arith.select %226, %c0_i32_134, %225 : i32
      } else {
      }
      tpu.yield
    }) : () -> ()
    %c0_71 = arith.constant 0 : index
    %c0_72 = arith.constant 0 : index
    %173 = vector.load %arg23[%c0_71, %c0_72] : memref<8x32xf32, #tpu.memory_space<vmem>>, vector<8x32xf32>
    %c0_73 = arith.constant 0 : index
    %c0_74 = arith.constant 0 : index
    %174 = vector.load %arg17[%c0_73, %c0_74] : memref<1x32xf32, #tpu.memory_space<vmem>>, vector<1x32xf32>
    %175 = vector.broadcast %174 : vector<1x32xf32> to vector<8x32xf32>
    %176 = arith.addf %173, %175 : vector<8x32xf32>
    %c0_75 = arith.constant 0 : index
    %c0_76 = arith.constant 0 : index
    %177 = vector.load %arg18[%c0_75, %c0_76] : memref<1x32xf32, #tpu.memory_space<vmem>>, vector<1x32xf32>
    %178 = arith.mulf %176, %176 : vector<8x32xf32>
    %cst_77 = arith.constant dense<0.000000e+00> : vector<8xf32>
    %179 = vector.multi_reduction <add>, %178, %cst_77 [1] : vector<8x32xf32> to vector<8xf32>
    %180 = vector.shape_cast %179 : vector<8xf32> to vector<8x1xf32>
    %cst_78 = arith.constant 3.200000e+01 : f32
    %181 = vector.broadcast %cst_78 : f32 to vector<8x1xf32>
    %182 = arith.divf %180, %181 : vector<8x1xf32>
    %cst_79 = arith.constant 9.99999974E-6 : f32
    %183 = vector.broadcast %cst_79 : f32 to vector<8x1xf32>
    %184 = arith.addf %182, %183 : vector<8x1xf32>
    %185 = math.rsqrt %184 : vector<8x1xf32>
    %186 = vector.broadcast %185 : vector<8x1xf32> to vector<8x32xf32>
    %187 = arith.mulf %176, %186 : vector<8x32xf32>
    %188 = vector.broadcast %177 : vector<1x32xf32> to vector<8x32xf32>
    %189 = arith.mulf %187, %188 : vector<8x32xf32>
    %190 = arith.addf %149, %189 : vector<8x32xf32>
    %c0_80 = arith.constant 0 : index
    %c0_81 = arith.constant 0 : index
    %191 = vector.load %arg22[%c0_80, %c0_81] : memref<8x32xf32, #tpu.memory_space<vmem>>, vector<8x32xf32>
    tpu.vector_store %arg22[%c0_80, %c0_81], %190 {strides = array<i32>} : memref<8x32xf32, #tpu.memory_space<vmem>>, vector<8x32xf32>,
    return
  }
  func.func @transform_0(%arg0: i32) -> (i32, i32) {
    %c0_i32 = arith.constant 0 : i32
    %c0_i32_0 = arith.constant 0 : i32
    return %arg0, %c0_i32 : i32, i32
  }
  func.func @transform_1(%arg0: i32) -> (i32, i32) {
    %c0_i32 = arith.constant 0 : i32
    %c0_i32_0 = arith.constant 0 : i32
    %c0_i32_1 = arith.constant 0 : i32
    return %c0_i32, %c0_i32_0 : i32, i32
  }
  func.func @transform_2(%arg0: i32) -> (i32, i32) {
    %c0_i32 = arith.constant 0 : i32
    %c0_i32_0 = arith.constant 0 : i32
    %c0_i32_1 = arith.constant 0 : i32
    return %c0_i32, %c0_i32_0 : i32, i32
  }
  func.func @transform_3(%arg0: i32) -> (i32, i32) {
    %c0_i32 = arith.constant 0 : i32
    %c0_i32_0 = arith.constant 0 : i32
    %c0_i32_1 = arith.constant 0 : i32
    return %c0_i32, %c0_i32_0 : i32, i32
  }
  func.func @transform_4(%arg0: i32) -> (i32, i32) {
    %c0_i32 = arith.constant 0 : i32
    %c0_i32_0 = arith.constant 0 : i32
    %c0_i32_1 = arith.constant 0 : i32
    return %c0_i32, %c0_i32_0 : i32, i32
  }
  func.func @transform_5(%arg0: i32) -> (i32, i32) {
    %c0_i32 = arith.constant 0 : i32
    %c0_i32_0 = arith.constant 0 : i32
    %c0_i32_1 = arith.constant 0 : i32
    return %c0_i32, %c0_i32_0 : i32, i32
  }
  func.func @transform_6(%arg0: i32) -> (i32, i32) {
    %c0_i32 = arith.constant 0 : i32
    %c0_i32_0 = arith.constant 0 : i32
    %c0_i32_1 = arith.constant 0 : i32
    return %c0_i32, %c0_i32_0 : i32, i32
  }
  func.func @transform_7(%arg0: i32) -> (i32, i32) {
    %c0_i32 = arith.constant 0 : i32
    %c0_i32_0 = arith.constant 0 : i32
    %c0_i32_1 = arith.constant 0 : i32
    return %c0_i32, %c0_i32_0 : i32, i32
  }
  func.func @transform_8(%arg0: i32) -> (i32, i32) {
    %c0_i32 = arith.constant 0 : i32
    %c0_i32_0 = arith.constant 0 : i32
    %c0_i32_1 = arith.constant 0 : i32
    return %c0_i32, %c0_i32_0 : i32, i32
  }
  func.func @transform_9(%arg0: i32) -> (i32, i32) {
    %c0_i32 = arith.constant 0 : i32
    %c0_i32_0 = arith.constant 0 : i32
    %c0_i32_1 = arith.constant 0 : i32
    return %c0_i32, %c0_i32_0 : i32, i32
  }
  func.func @transform_10(%arg0: i32) -> (i32, i32) {
    %c0_i32 = arith.constant 0 : i32
    %c0_i32_0 = arith.constant 0 : i32
    %c0_i32_1 = arith.constant 0 : i32
    return %c0_i32, %c0_i32_0 : i32, i32
  }
  func.func @transform_11(%arg0: i32) -> (i32, i32) {
    %c0_i32 = arith.constant 0 : i32
    %c0_i32_0 = arith.constant 0 : i32
    %c0_i32_1 = arith.constant 0 : i32
    return %c0_i32, %c0_i32_0 : i32, i32
  }
  func.func @transform_12(%arg0: i32) -> (i32, i32) {
    %c0_i32 = arith.constant 0 : i32
    %c0_i32_0 = arith.constant 0 : i32
    %c0_i32_1 = arith.constant 0 : i32
    return %c0_i32, %c0_i32_0 : i32, i32
  }
  func.func @transform_13(%arg0: i32) -> (i32, i32) {
    %c0_i32 = arith.constant 0 : i32
    %c0_i32_0 = arith.constant 0 : i32
    %c0_i32_1 = arith.constant 0 : i32
    return %c0_i32, %c0_i32_0 : i32, i32
  }
  func.func @transform_14(%arg0: i32) -> (i32, i32) {
    %c0_i32 = arith.constant 0 : i32
    %c0_i32_0 = arith.constant 0 : i32
    %c0_i32_1 = arith.constant 0 : i32
    return %c0_i32, %c0_i32_0 : i32, i32
  }
  func.func @transform_15(%arg0: i32) -> (i32, i32) {
    %c0_i32 = arith.constant 0 : i32
    %c0_i32_0 = arith.constant 0 : i32
    %c0_i32_1 = arith.constant 0 : i32
    return %c0_i32, %c0_i32_0 : i32, i32
  }
  func.func @transform_16(%arg0: i32) -> (i32, i32) {
    %c0_i32 = arith.constant 0 : i32
    %c0_i32_0 = arith.constant 0 : i32
    %c0_i32_1 = arith.constant 0 : i32
    return %c0_i32, %c0_i32_0 : i32, i32
  }
  func.func @transform_17(%arg0: i32) -> (i32, i32) {
    %c0_i32 = arith.constant 0 : i32
    %c0_i32_0 = arith.constant 0 : i32
    %c0_i32_1 = arith.constant 0 : i32
    return %c0_i32, %c0_i32_0 : i32, i32
  }
  func.func @transform_21(%arg0: i32) -> (i32, i32) {
    %c0_i32 = arith.constant 0 : i32
    %c0_i32_0 = arith.constant 0 : i32
    return %arg0, %c0_i32 : i32, i32
  }
}

</mosaic_0001>

<llo_original>
// kernel: tpu_custom_call.1
$region0: #{tpu_custom_call.1}
  #allocation0 [shape = 'u32[]', space=smem, size = 0x4, offset = 0x4, fixed_abs, tag = 'smem constant byte address 0x4 - core index']
  #allocation1 [shape = 'u32[144,128]{1,0:T(1,128)}', space=vmem, size = 0x12000, scoped, tag = 'internal scratch']
  #allocation2 [shape = 'f32[8,32]{1,0:T(8,128)}', space=vmem, size = 0x1000, scoped, tag = 'scratch operand']
  #allocation29 [shape = 's32[]', space=sflag, size = 0x4, offset = 0, fixed_abs, tag = 'sflag constant byte address 0x0 - dummy sync flag']
  #allocation31 [shape = 's32[]', space=sflag, size = 0x4, offset = 0, fixed_abs, tag = 'sflag constant byte address 0x0 - dummy sync flag']
  #allocation33 [shape = 's32[]', space=sflag, size = 0x4, offset = 0, fixed_abs, tag = 'sflag constant byte address 0x0 - dummy sync flag']
  %s0 = inlined_call_operand.hbm [shape: f32[16,32], index: 0, kind: input, shape index: {}]
  %s1 = inlined_call_operand.hbm [shape: f32[8,32], index: 1, kind: input, shape index: {}]
  %s2 = inlined_call_operand.vmem [shape: f32[1,32], index: 2, kind: input, shape index: {}]
  %s3 = inlined_call_operand.hbm [shape: bf16[32,32], index: 3, kind: input, shape index: {}]
  %s4 = inlined_call_operand.vmem [shape: f32[1,32], index: 4, kind: input, shape index: {}]
  %s5 = inlined_call_operand.hbm [shape: bf16[32,32], index: 5, kind: input, shape index: {}]
  %s6 = inlined_call_operand.vmem [shape: f32[1,32], index: 6, kind: input, shape index: {}]
  %s7 = inlined_call_operand.hbm [shape: bf16[32,32], index: 7, kind: input, shape index: {}]
  %s8 = inlined_call_operand.vmem [shape: f32[1,32], index: 8, kind: input, shape index: {}]
  %s9 = inlined_call_operand.vmem [shape: f32[1,32], index: 9, kind: input, shape index: {}]
  %s10 = inlined_call_operand.hbm [shape: f32[1,32], index: 10, kind: input, shape index: {}]
  %s11 = inlined_call_operand.hbm [shape: bf16[32,32], index: 11, kind: input, shape index: {}]
  %s12 = inlined_call_operand.hbm [shape: f32[1,32], index: 12, kind: input, shape index: {}]
  %s13 = inlined_call_operand.hbm [shape: f32[1,32], index: 13, kind: input, shape index: {}]
  %s14 = inlined_call_operand.hbm [shape: bf16[32,128], index: 14, kind: input, shape index: {}]
  %s15 = inlined_call_operand.hbm [shape: f32[1,128], index: 15, kind: input, shape index: {}]
  %s16 = inlined_call_operand.hbm [shape: f32[1,32], index: 16, kind: input, shape index: {}]
  %s17 = inlined_call_operand.hbm [shape: f32[1,32], index: 17, kind: input, shape index: {}]
  %s18 = inlined_call_operand.vmem [shape: bf16[2,128,128], index: 18, kind: input, shape index: {}]
  %s19 = inlined_call_operand.vmem [shape: f32[2,128], index: 19, kind: input, shape index: {}]
  %s20 = inlined_call_operand.vmem [shape: bf16[128,32], index: 20, kind: input, shape index: {}]
  %s21 = inlined_call_operand.hbm [shape: f32[16,32], index: 21, kind: output, shape index: {}]
  %s22 = sld [smem:[#allocation0]]
  $region259: #{tpu_custom_call.1} parent=0
    _
  %s24 = ssub.s32 1, %s22
  %s25 = scalar_select 0, %s24, %s22
  $region1: #{tpu_custom_call.1} parent=0
    #allocation3 [shape = 'u8[8192]{0}', space=vmem, size = 0x2000, scoped, tag = 'input window, operand 0']
    #allocation4 [shape = 's32[2]{0}', space=sflag, size = 0x8, scoped, tag = 'scoped memory for tpu_custom_call.1']
    #allocation5 [shape = 's32[2]{0}', space=sflag, size = 0x8, scoped, tag = 'scoped memory for tpu_custom_call.1']
    #allocation6 [shape = 'u8[4096]{0}', space=vmem, size = 0x1000, scoped, tag = 'input window, operand 1, single buffered']
    #allocation7 [shape = 's32[1]{0}', space=sflag, size = 0x4, scoped, tag = 'scoped memory for tpu_custom_call.1']
    #allocation8 [shape = 'u8[8192]{0}', space=vmem, size = 0x2000, scoped, tag = 'input window, operand 3, single buffered']
    #allocation9 [shape = 'u8[8192]{0}', space=vmem, size = 0x2000, scoped, tag = 'input window, operand 5, single buffered']
    #allocation10 [shape = 's32[1]{0}', space=sflag, size = 0x4, scoped, tag = 'scoped memory for tpu_custom_call.1']
    #allocation11 [shape = 'u8[8192]{0}', space=vmem, size = 0x2000, scoped, tag = 'input window, operand 7, single buffered']
    #allocation12 [shape = 'u8[512]{0}', space=vmem, size = 0x400, scoped, tag = 'input window, operand 10, single buffered']
    #allocation13 [shape = 's32[1]{0}', space=sflag, size = 0x4, scoped, tag = 'scoped memory for tpu_custom_call.1']
    #allocation14 [shape = 'u8[8192]{0}', space=vmem, size = 0x2000, scoped, tag = 'input window, operand 11, single buffered']
    #allocation15 [shape = 'u8[512]{0}', space=vmem, size = 0x400, scoped, tag = 'input window, operand 12, single buffered']
    #allocation16 [shape = 's32[1]{0}', space=sflag, size = 0x4, scoped, tag = 'scoped memory for tpu_custom_call.1']
    #allocation17 [shape = 'u8[512]{0}', space=vmem, size = 0x400, scoped, tag = 'input window, operand 13, single buffered']
    #allocation18 [shape = 'u8[8192]{0}', space=vmem, size = 0x2000, scoped, tag = 'input window, operand 14, single buffered']
    #allocation19 [shape = 's32[1]{0}', space=sflag, size = 0x4, scoped, tag = 'scoped memory for tpu_custom_call.1']
    #allocation20 [shape = 'u8[512]{0}', space=vmem, size = 0x400, scoped, tag = 'input window, operand 15, single buffered']
    #allocation21 [shape = 'u8[512]{0}', space=vmem, size = 0x400, scoped, tag = 'input window, operand 16, single buffered']
    #allocation22 [shape = 's32[1]{0}', space=sflag, size = 0x4, scoped, tag = 'scoped memory for tpu_custom_call.1']
    #allocation23 [shape = 'u8[512]{0}', space=vmem, size = 0x400, scoped, tag = 'input window, operand 17, single buffered']
    #allocation24 [shape = 'u8[8192]{0}', space=vmem, size = 0x2000, scoped, tag = 'output window, operand 0']
    %26 = vsyncpa [#allocation4], 0
    %s27 = scalar_lea.sflag [#allocation4], 1
    %28 = vsyncpa %s27, 0
    %29 = vsyncpa [#allocation7], 0
    %30 = vsyncpa [#allocation10], 0
    %31 = vsyncpa [#allocation13], 0
    %32 = vsyncpa [#allocation16], 0
    %33 = vsyncpa [#allocation19], 0
    %34 = vsyncpa [#allocation22], 0
    %35 = vsyncpa [#allocation5], 0
    %s36 = scalar_lea.sflag [#allocation5], 1
    %37 = vsyncpa %s36, 0
    loop: start=0, step=1, limit=4
    $region2: #{tpu_custom_call.1} parent=1 // loop_pre_header
      _
    $region3: #{tpu_custom_call.1} parent=1 // loop_header
      %s39 = sphi 0, %s43
      %p40 = scmp.ge.s32.totalorder %s39, 4
      %s49 = sphi 0, %s51
      %s52 = sphi 0, %s49
      %s53 = sphi 0, %s52
      %s69 = sphi 0, %s53
      %s73 = sphi 0, %s73
      %s75 = sphi 0, %s73
      %s76 = sphi 0, %s75
      %s90 = sphi 0, %s76
      %s94 = sphi 0, %s94
      %s96 = sphi 0, %s94
      %s97 = sphi 0, %s96
      %s111 = sphi 0, %s97
      %s115 = sphi 0, %s115
      %s117 = sphi 0, %s115
      %s118 = sphi 0, %s117
      %s132 = sphi 0, %s118
      %s136 = sphi 0, %s136
      %s138 = sphi 0, %s136
      %s139 = sphi 0, %s138
      %s153 = sphi 0, %s139
      %s157 = sphi 0, %s157
      %s159 = sphi 0, %s157
      %s160 = sphi 0, %s159
      %s174 = sphi 0, %s160
      %s178 = sphi 0, %s178
      %s180 = sphi 0, %s178
      %s181 = sphi 0, %s180
      %s195 = sphi 0, %s181
      %s199 = sphi 0, %s199
      %s201 = sphi 0, %s199
      %s202 = sphi 0, %s201
      %s216 = sphi 0, %s202
      %s220 = sphi 0, %s220
      %s222 = sphi 0, %s220
      %s223 = sphi 0, %s222
      %s237 = sphi 0, %s223
      %s241 = sphi 0, %s241
      %s243 = sphi 0, %s241
      %s244 = sphi 0, %s243
      %s258 = sphi 0, %s244
      %s262 = sphi 0, %s262
      %s264 = sphi 0, %s262
      %s265 = sphi 0, %s264
      %s279 = sphi 0, %s265
      %s283 = sphi 0, %s283
      %s285 = sphi 0, %s283
      %s286 = sphi 0, %s285
      %s300 = sphi 0, %s286
      %s304 = sphi 0, %s304
      %s306 = sphi 0, %s304
      %s307 = sphi 0, %s306
      %s321 = sphi 0, %s307
      %s325 = sphi 0, %s325
      %s327 = sphi 0, %s325
      %s328 = sphi 0, %s327
      %s342 = sphi 0, %s328
      %s346 = sphi 0, %s346
      %s348 = sphi 0, %s346
      %s349 = sphi 0, %s348
      %s363 = sphi 0, %s349
      %s367 = sphi 0, %s367
      %s369 = sphi 0, %s367
      %s370 = sphi 0, %s369
      %s384 = sphi 0, %s370
      %s388 = sphi 0, %s388
      %s390 = sphi 0, %s388
      %s391 = sphi 0, %s390
      %s405 = sphi 0, %s391
      %s409 = sphi 0, %s409
      %s411 = sphi 0, %s409
      %s412 = sphi 0, %s411
      %s426 = sphi 0, %s412
      %s432 = sphi 0, %s434
      %s435 = sphi 0, %s432
      %s436 = sphi 0, %s435
      %s452 = sphi 0, %s436
    $region4: #{tpu_custom_call.1} parent=1 // loop_header_branch
      %42 = sbr.rel (%p40) target = $region8
    $region5: #{tpu_custom_call.1} parent=1 // loop_body
      %s44 = ssub.s32 %s39, 1
      %s45 = ssub.s32 %s39, 2
      %s46 = sadd.s32 %s39, 1
      %s47 = ssub.s32 %s39, %s46
      %p48 = scmp.eq.s32.totalorder %s47, 0
      %s50 = sadd.s32 %s49, 1
      %s51 = scalar_select %p48, %s49, %s50
      %p54 = pneg %p48
      %p55 = scmp.eq.s32.totalorder %s39, 1
      %p56 = por %p54, %p55
      %p57 = scmp.ne.s32.totalorder %s49, %s52
      %p58 = scmp.eq.s32.totalorder %s39, 0
      %p59 = por %p57, %p58
      %p60 = scmp.ne.s32.totalorder %s49, %s52
      %p61 = scmp.eq.s32.totalorder %s44, 1
      %p62 = por %p60, %p61
      %p63 = scmp.ne.s32.totalorder %s52, %s53
      %p64 = scmp.eq.s32.totalorder %s44, 0
      %p65 = por %p63, %p64
      %p66 = scmp.ne.s32.totalorder %s52, %s53
      %p67 = scmp.eq.s32.totalorder %s45, 1
      %p68 = por %p66, %p67
      %p70 = scmp.ne.s32.totalorder %s53, %s69
      %p71 = scmp.eq.s32.totalorder %s45, 0
      %p72 = por %p70, %p71
      %s74 = sadd.s32 %s73, 1
      %p77 = scmp.eq.s32.totalorder %s39, 1
      %p78 = scmp.ne.s32.totalorder %s73, %s75
      %p79 = scmp.eq.s32.totalorder %s39, 0
      %p80 = por %p78, %p79
      %p81 = scmp.ne.s32.totalorder %s73, %s75
      %p82 = scmp.eq.s32.totalorder %s44, 1
      %p83 = por %p81, %p82
      %p84 = scmp.ne.s32.totalorder %s75, %s76
      %p85 = scmp.eq.s32.totalorder %s44, 0
      %p86 = por %p84, %p85
      %p87 = scmp.ne.s32.totalorder %s75, %s76
      %p88 = scmp.eq.s32.totalorder %s45, 1
      %p89 = por %p87, %p88
      %p91 = scmp.ne.s32.totalorder %s76, %s90
      %p92 = scmp.eq.s32.totalorder %s45, 0
      %p93 = por %p91, %p92
      %s95 = sadd.s32 %s94, 1
      %p98 = scmp.eq.s32.totalorder %s39, 1
      %p99 = scmp.ne.s32.totalorder %s94, %s96
      %p100 = scmp.eq.s32.totalorder %s39, 0
      %p101 = por %p99, %p100
      %p102 = scmp.ne.s32.totalorder %s94, %s96
      %p103 = scmp.eq.s32.totalorder %s44, 1
      %p104 = por %p102, %p103
      %p105 = scmp.ne.s32.totalorder %s96, %s97
      %p106 = scmp.eq.s32.totalorder %s44, 0
      %p107 = por %p105, %p106
      %p108 = scmp.ne.s32.totalorder %s96, %s97
      %p109 = scmp.eq.s32.totalorder %s45, 1
      %p110 = por %p108, %p109
      %p112 = scmp.ne.s32.totalorder %s97, %s111
      %p113 = scmp.eq.s32.totalorder %s45, 0
      %p114 = por %p112, %p113
      %s116 = sadd.s32 %s115, 1
      %p119 = scmp.eq.s32.totalorder %s39, 1
      %p120 = scmp.ne.s32.totalorder %s115, %s117
      %p121 = scmp.eq.s32.totalorder %s39, 0
      %p122 = por %p120, %p121
      %p123 = scmp.ne.s32.totalorder %s115, %s117
      %p124 = scmp.eq.s32.totalorder %s44, 1
      %p125 = por %p123, %p124
      %p126 = scmp.ne.s32.totalorder %s117, %s118
      %p127 = scmp.eq.s32.totalorder %s44, 0
      %p128 = por %p126, %p127
      %p129 = scmp.ne.s32.totalorder %s117, %s118
      %p130 = scmp.eq.s32.totalorder %s45, 1
      %p131 = por %p129, %p130
      %p133 = scmp.ne.s32.totalorder %s118, %s132
      %p134 = scmp.eq.s32.totalorder %s45, 0
      %p135 = por %p133, %p134
      %s137 = sadd.s32 %s136, 1
      %p140 = scmp.eq.s32.totalorder %s39, 1
      %p141 = scmp.ne.s32.totalorder %s136, %s138
      %p142 = scmp.eq.s32.totalorder %s39, 0
      %p143 = por %p141, %p142
      %p144 = scmp.ne.s32.totalorder %s136, %s138
      %p145 = scmp.eq.s32.totalorder %s44, 1
      %p146 = por %p144, %p145
      %p147 = scmp.ne.s32.totalorder %s138, %s139
      %p148 = scmp.eq.s32.totalorder %s44, 0
      %p149 = por %p147, %p148
      %p150 = scmp.ne.s32.totalorder %s138, %s139
      %p151 = scmp.eq.s32.totalorder %s45, 1
      %p152 = por %p150, %p151
      %p154 = scmp.ne.s32.totalorder %s139, %s153
      %p155 = scmp.eq.s32.totalorder %s45, 0
      %p156 = por %p154, %p155
      %s158 = sadd.s32 %s157, 1
      %p161 = scmp.eq.s32.totalorder %s39, 1
      %p162 = scmp.ne.s32.totalorder %s157, %s159
      %p163 = scmp.eq.s32.totalorder %s39, 0
      %p164 = por %p162, %p163
      %p165 = scmp.ne.s32.totalorder %s157, %s159
      %p166 = scmp.eq.s32.totalorder %s44, 1
      %p167 = por %p165, %p166
      %p168 = scmp.ne.s32.totalorder %s159, %s160
      %p169 = scmp.eq.s32.totalorder %s44, 0
      %p170 = por %p168, %p169
      %p171 = scmp.ne.s32.totalorder %s159, %s160
      %p172 = scmp.eq.s32.totalorder %s45, 1
      %p173 = por %p171, %p172
      %p175 = scmp.ne.s32.totalorder %s160, %s174
      %p176 = scmp.eq.s32.totalorder %s45, 0
      %p177 = por %p175, %p176
      %s179 = sadd.s32 %s178, 1
      %p182 = scmp.eq.s32.totalorder %s39, 1
      %p183 = scmp.ne.s32.totalorder %s178, %s180
      %p184 = scmp.eq.s32.totalorder %s39, 0
      %p185 = por %p183, %p184
      %p186 = scmp.ne.s32.totalorder %s178, %s180
      %p187 = scmp.eq.s32.totalorder %s44, 1
      %p188 = por %p186, %p187
      %p189 = scmp.ne.s32.totalorder %s180, %s181
      %p190 = scmp.eq.s32.totalorder %s44, 0
      %p191 = por %p189, %p190
      %p192 = scmp.ne.s32.totalorder %s180, %s181
      %p193 = scmp.eq.s32.totalorder %s45, 1
      %p194 = por %p192, %p193
      %p196 = scmp.ne.s32.totalorder %s181, %s195
      %p197 = scmp.eq.s32.totalorder %s45, 0
      %p198 = por %p196, %p197
      %s200 = sadd.s32 %s199, 1
      %p203 = scmp.eq.s32.totalorder %s39, 1
      %p204 = scmp.ne.s32.totalorder %s199, %s201
      %p205 = scmp.eq.s32.totalorder %s39, 0
      %p206 = por %p204, %p205
      %p207 = scmp.ne.s32.totalorder %s199, %s201
      %p208 = scmp.eq.s32.totalorder %s44, 1
      %p209 = por %p207, %p208
      %p210 = scmp.ne.s32.totalorder %s201, %s202
      %p211 = scmp.eq.s32.totalorder %s44, 0
      %p212 = por %p210, %p211
      %p213 = scmp.ne.s32.totalorder %s201, %s202
      %p214 = scmp.eq.s32.totalorder %s45, 1
      %p215 = por %p213, %p214
      %p217 = scmp.ne.s32.totalorder %s202, %s216
      %p218 = scmp.eq.s32.totalorder %s45, 0
      %p219 = por %p217, %p218
      %s221 = sadd.s32 %s220, 1
      %p224 = scmp.eq.s32.totalorder %s39, 1
      %p225 = scmp.ne.s32.totalorder %s220, %s222
      %p226 = scmp.eq.s32.totalorder %s39, 0
      %p227 = por %p225, %p226
      %p228 = scmp.ne.s32.totalorder %s220, %s222
      %p229 = scmp.eq.s32.totalorder %s44, 1
      %p230 = por %p228, %p229
      %p231 = scmp.ne.s32.totalorder %s222, %s223
      %p232 = scmp.eq.s32.totalorder %s44, 0
      %p233 = por %p231, %p232
      %p234 = scmp.ne.s32.totalorder %s222, %s223
      %p235 = scmp.eq.s32.totalorder %s45, 1
      %p236 = por %p234, %p235
      %p238 = scmp.ne.s32.totalorder %s223, %s237
      %p239 = scmp.eq.s32.totalorder %s45, 0
      %p240 = por %p238, %p239
      %s242 = sadd.s32 %s241, 1
      %p245 = scmp.eq.s32.totalorder %s39, 1
      %p246 = scmp.ne.s32.totalorder %s241, %s243
      %p247 = scmp.eq.s32.totalorder %s39, 0
      %p248 = por %p246, %p247
      %p249 = scmp.ne.s32.totalorder %s241, %s243
      %p250 = scmp.eq.s32.totalorder %s44, 1
      %p251 = por %p249, %p250
      %p252 = scmp.ne.s32.totalorder %s243, %s244
      %p253 = scmp.eq.s32.totalorder %s44, 0
      %p254 = por %p252, %p253
      %p255 = scmp.ne.s32.totalorder %s243, %s244
      %p256 = scmp.eq.s32.totalorder %s45, 1
      %p257 = por %p255, %p256
      %p259 = scmp.ne.s32.totalorder %s244, %s258
      %p260 = scmp.eq.s32.totalorder %s45, 0
      %p261 = por %p259, %p260
      %s263 = sadd.s32 %s262, 1
      %p266 = scmp.eq.s32.totalorder %s39, 1
      %p267 = scmp.ne.s32.totalorder %s262, %s264
      %p268 = scmp.eq.s32.totalorder %s39, 0
      %p269 = por %p267, %p268
      %p270 = scmp.ne.s32.totalorder %s262, %s264
      %p271 = scmp.eq.s32.totalorder %s44, 1
      %p272 = por %p270, %p271
      %p273 = scmp.ne.s32.totalorder %s264, %s265
      %p274 = scmp.eq.s32.totalorder %s44, 0
      %p275 = por %p273, %p274
      %p276 = scmp.ne.s32.totalorder %s264, %s265
      %p277 = scmp.eq.s32.totalorder %s45, 1
      %p278 = por %p276, %p277
      %p280 = scmp.ne.s32.totalorder %s265, %s279
      %p281 = scmp.eq.s32.totalorder %s45, 0
      %p282 = por %p280, %p281
      %s284 = sadd.s32 %s283, 1
      %p287 = scmp.eq.s32.totalorder %s39, 1
      %p288 = scmp.ne.s32.totalorder %s283, %s285
      %p289 = scmp.eq.s32.totalorder %s39, 0
      %p290 = por %p288, %p289
      %p291 = scmp.ne.s32.totalorder %s283, %s285
      %p292 = scmp.eq.s32.totalorder %s44, 1
      %p293 = por %p291, %p292
      %p294 = scmp.ne.s32.totalorder %s285, %s286
      %p295 = scmp.eq.s32.totalorder %s44, 0
      %p296 = por %p294, %p295
      %p297 = scmp.ne.s32.totalorder %s285, %s286
      %p298 = scmp.eq.s32.totalorder %s45, 1
      %p299 = por %p297, %p298
      %p301 = scmp.ne.s32.totalorder %s286, %s300
      %p302 = scmp.eq.s32.totalorder %s45, 0
      %p303 = por %p301, %p302
      %s305 = sadd.s32 %s304, 1
      %p308 = scmp.eq.s32.totalorder %s39, 1
      %p309 = scmp.ne.s32.totalorder %s304, %s306
      %p310 = scmp.eq.s32.totalorder %s39, 0
      %p311 = por %p309, %p310
      %p312 = scmp.ne.s32.totalorder %s304, %s306
      %p313 = scmp.eq.s32.totalorder %s44, 1
      %p314 = por %p312, %p313
      %p315 = scmp.ne.s32.totalorder %s306, %s307
      %p316 = scmp.eq.s32.totalorder %s44, 0
      %p317 = por %p315, %p316
      %p318 = scmp.ne.s32.totalorder %s306, %s307
      %p319 = scmp.eq.s32.totalorder %s45, 1
      %p320 = por %p318, %p319
      %p322 = scmp.ne.s32.totalorder %s307, %s321
      %p323 = scmp.eq.s32.totalorder %s45, 0
      %p324 = por %p322, %p323
      %s326 = sadd.s32 %s325, 1
      %p329 = scmp.eq.s32.totalorder %s39, 1
      %p330 = scmp.ne.s32.totalorder %s325, %s327
      %p331 = scmp.eq.s32.totalorder %s39, 0
      %p332 = por %p330, %p331
      %p333 = scmp.ne.s32.totalorder %s325, %s327
      %p334 = scmp.eq.s32.totalorder %s44, 1
      %p335 = por %p333, %p334
      %p336 = scmp.ne.s32.totalorder %s327, %s328
      %p337 = scmp.eq.s32.totalorder %s44, 0
      %p338 = por %p336, %p337
      %p339 = scmp.ne.s32.totalorder %s327, %s328
      %p340 = scmp.eq.s32.totalorder %s45, 1
      %p341 = por %p339, %p340
      %p343 = scmp.ne.s32.totalorder %s328, %s342
      %p344 = scmp.eq.s32.totalorder %s45, 0
      %p345 = por %p343, %p344
      %s347 = sadd.s32 %s346, 1
      %p350 = scmp.eq.s32.totalorder %s39, 1
      %p351 = scmp.ne.s32.totalorder %s346, %s348
      %p352 = scmp.eq.s32.totalorder %s39, 0
      %p353 = por %p351, %p352
      %p354 = scmp.ne.s32.totalorder %s346, %s348
      %p355 = scmp.eq.s32.totalorder %s44, 1
      %p356 = por %p354, %p355
      %p357 = scmp.ne.s32.totalorder %s348, %s349
      %p358 = scmp.eq.s32.totalorder %s44, 0
      %p359 = por %p357, %p358
      %p360 = scmp.ne.s32.totalorder %s348, %s349
      %p361 = scmp.eq.s32.totalorder %s45, 1
      %p362 = por %p360, %p361
      %p364 = scmp.ne.s32.totalorder %s349, %s363
      %p365 = scmp.eq.s32.totalorder %s45, 0
      %p366 = por %p364, %p365
      %s368 = sadd.s32 %s367, 1
      %p371 = scmp.eq.s32.totalorder %s39, 1
      %p372 = scmp.ne.s32.totalorder %s367, %s369
      %p373 = scmp.eq.s32.totalorder %s39, 0
      %p374 = por %p372, %p373
      %p375 = scmp.ne.s32.totalorder %s367, %s369
      %p376 = scmp.eq.s32.totalorder %s44, 1
      %p377 = por %p375, %p376
      %p378 = scmp.ne.s32.totalorder %s369, %s370
      %p379 = scmp.eq.s32.totalorder %s44, 0
      %p380 = por %p378, %p379
      %p381 = scmp.ne.s32.totalorder %s369, %s370
      %p382 = scmp.eq.s32.totalorder %s45, 1
      %p383 = por %p381, %p382
      %p385 = scmp.ne.s32.totalorder %s370, %s384
      %p386 = scmp.eq.s32.totalorder %s45, 0
      %p387 = por %p385, %p386
      %s389 = sadd.s32 %s388, 1
      %p392 = scmp.eq.s32.totalorder %s39, 1
      %p393 = scmp.ne.s32.totalorder %s388, %s390
      %p394 = scmp.eq.s32.totalorder %s39, 0
      %p395 = por %p393, %p394
      %p396 = scmp.ne.s32.totalorder %s388, %s390
      %p397 = scmp.eq.s32.totalorder %s44, 1
      %p398 = por %p396, %p397
      %p399 = scmp.ne.s32.totalorder %s390, %s391
      %p400 = scmp.eq.s32.totalorder %s44, 0
      %p401 = por %p399, %p400
      %p402 = scmp.ne.s32.totalorder %s390, %s391
      %p403 = scmp.eq.s32.totalorder %s45, 1
      %p404 = por %p402, %p403
      %p406 = scmp.ne.s32.totalorder %s391, %s405
      %p407 = scmp.eq.s32.totalorder %s45, 0
      %p408 = por %p406, %p407
      %s410 = sadd.s32 %s409, 1
      %p413 = scmp.eq.s32.totalorder %s39, 1
      %p414 = scmp.ne.s32.totalorder %s409, %s411
      %p415 = scmp.eq.s32.totalorder %s39, 0
      %p416 = por %p414, %p415
      %p417 = scmp.ne.s32.totalorder %s409, %s411
      %p418 = scmp.eq.s32.totalorder %s44, 1
      %p419 = por %p417, %p418
      %p420 = scmp.ne.s32.totalorder %s411, %s412
      %p421 = scmp.eq.s32.totalorder %s44, 0
      %p422 = por %p420, %p421
      %p423 = scmp.ne.s32.totalorder %s411, %s412
      %p424 = scmp.eq.s32.totalorder %s45, 1
      %p425 = por %p423, %p424
      %p427 = scmp.ne.s32.totalorder %s412, %s426
      %p428 = scmp.eq.s32.totalorder %s45, 0
      %p429 = por %p427, %p428
      %s430 = ssub.s32 %s39, %s46
      %p431 = scmp.eq.s32.totalorder %s430, 0
      %s433 = sadd.s32 %s432, 1
      %s434 = scalar_select %p431, %s432, %s433
      %p437 = pneg %p431
      %p438 = scmp.eq.s32.totalorder %s39, 1
      %p439 = por %p437, %p438
      %p440 = scmp.ne.s32.totalorder %s432, %s435
      %p441 = scmp.eq.s32.totalorder %s39, 0
      %p442 = por %p440, %p441
      %p443 = scmp.ne.s32.totalorder %s432, %s435
      %p444 = scmp.eq.s32.totalorder %s44, 1
      %p445 = por %p443, %p444
      %p446 = scmp.ne.s32.totalorder %s435, %s436
      %p447 = scmp.eq.s32.totalorder %s44, 0
      %p448 = por %p446, %p447
      %p449 = scmp.ne.s32.totalorder %s435, %s436
      %p450 = scmp.eq.s32.totalorder %s45, 1
      %p451 = por %p449, %p450
      %p453 = scmp.ne.s32.totalorder %s436, %s452
      %p454 = scmp.eq.s32.totalorder %s45, 0
      %p455 = por %p453, %p454
      %p456 = scmp.le.s32.totalorder 1, %s39
      %p457 = scmp.lt.s32.totalorder %s39, 3
      %p458 = pnand %p456, %p457
      %p459 = pneg %p458
      // Predicated region
      $region9: #{tpu_custom_call.1} parent=5 // pred_check
        _
      $region10: #{tpu_custom_call.1} parent=5 // pred_check_branch
        %461 = sbr.rel (%p458) target = $region12
      $region11: #{tpu_custom_call.1} parent=5 // pred_region
        %s462 = ssub.s32 %s39, 1
        // Predicated region
        $region13: #{tpu_custom_call.1} parent=11 // pred_check
          %p463 = pneg %p86
        $region14: #{tpu_custom_call.1} parent=11 // pred_check_branch
          %465 = sbr.rel (%p463) target = $region16
        $region15: #{tpu_custom_call.1} parent=11 // pred_region
          %s467 = ssub.s32 128, 128
          %468 = vsyncadd [#allocation7], %s467
          %s470 = sshll.u32 [#allocation6], 4
          %s471 = int_to_ptr.vmem [resolvable:$true] %s470
          %473 = dma.hbm_to_vmem [thread:$0]  %s1, 128, %s471, [#allocation7]
        $region16: #{tpu_custom_call.1} parent=11 // pred_fallthru
          _
        // Predicated region
        $region17: #{tpu_custom_call.1} parent=11 // pred_check
          %p474 = pneg %p107
        $region18: #{tpu_custom_call.1} parent=11 // pred_check_branch
          %476 = sbr.rel (%p474) target = $region20
        $region19: #{tpu_custom_call.1} parent=11 // pred_region
          _
        $region20: #{tpu_custom_call.1} parent=11 // pred_fallthru
          _
        // Predicated region
        $region21: #{tpu_custom_call.1} parent=11 // pred_check
          %p477 = pneg %p128
        $region22: #{tpu_custom_call.1} parent=11 // pred_check_branch
          %479 = sbr.rel (%p477) target = $region24
        $region23: #{tpu_custom_call.1} parent=11 // pred_region
          %s481 = ssub.s32 256, 256
          %482 = vsyncadd [#allocation7], %s481
          %s483 = sshll.u32 [#allocation8], 4
          %s484 = int_to_ptr.vmem [resolvable:$true] %s483
          %489 = dma.hbm_to_vmem [thread:$0]  %s3, 256, %s484, [#allocation7], 64, 64, 4
        $region24: #{tpu_custom_call.1} parent=11 // pred_fallthru
          _
        // Predicated region
        $region25: #{tpu_custom_call.1} parent=11 // pred_check
          %p490 = pneg %p149
        $region26: #{tpu_custom_call.1} parent=11 // pred_check_branch
          %492 = sbr.rel (%p490) target = $region28
        $region27: #{tpu_custom_call.1} parent=11 // pred_region
          _
        $region28: #{tpu_custom_call.1} parent=11 // pred_fallthru
          _
        // Predicated region
        $region29: #{tpu_custom_call.1} parent=11 // pred_check
          %p493 = pneg %p170
        $region30: #{tpu_custom_call.1} parent=11 // pred_check_branch
          %495 = sbr.rel (%p493) target = $region32
        $region31: #{tpu_custom_call.1} parent=11 // pred_region
          %s497 = ssub.s32 256, 256
          %498 = vsyncadd [#allocation10], %s497
          %s499 = sshll.u32 [#allocation9], 4
          %s500 = int_to_ptr.vmem [resolvable:$true] %s499
          %505 = dma.hbm_to_vmem [thread:$0]  %s5, 256, %s500, [#allocation10], 64, 64, 4
        $region32: #{tpu_custom_call.1} parent=11 // pred_fallthru
          _
        // Predicated region
        $region33: #{tpu_custom_call.1} parent=11 // pred_check
          %p506 = pneg %p191
        $region34: #{tpu_custom_call.1} parent=11 // pred_check_branch
          %508 = sbr.rel (%p506) target = $region36
        $region35: #{tpu_custom_call.1} parent=11 // pred_region
          _
        $region36: #{tpu_custom_call.1} parent=11 // pred_fallthru
          _
        // Predicated region
        $region37: #{tpu_custom_call.1} parent=11 // pred_check
          %p509 = pneg %p212
        $region38: #{tpu_custom_call.1} parent=11 // pred_check_branch
          %511 = sbr.rel (%p509) target = $region40
        $region39: #{tpu_custom_call.1} parent=11 // pred_region
          %s513 = ssub.s32 256, 256
          %514 = vsyncadd [#allocation10], %s513
          %s515 = sshll.u32 [#allocation11], 4
          %s516 = int_to_ptr.vmem [resolvable:$true] %s515
          %521 = dma.hbm_to_vmem [thread:$0]  %s7, 256, %s516, [#allocation10], 64, 64, 4
        $region40: #{tpu_custom_call.1} parent=11 // pred_fallthru
          _
        // Predicated region
        $region41: #{tpu_custom_call.1} parent=11 // pred_check
          %p522 = pneg %p233
        $region42: #{tpu_custom_call.1} parent=11 // pred_check_branch
          %524 = sbr.rel (%p522) target = $region44
        $region43: #{tpu_custom_call.1} parent=11 // pred_region
          _
        $region44: #{tpu_custom_call.1} parent=11 // pred_fallthru
          _
        // Predicated region
        $region45: #{tpu_custom_call.1} parent=11 // pred_check
          %p525 = pneg %p254
        $region46: #{tpu_custom_call.1} parent=11 // pred_check_branch
          %527 = sbr.rel (%p525) target = $region48
        $region47: #{tpu_custom_call.1} parent=11 // pred_region
          _
        $region48: #{tpu_custom_call.1} parent=11 // pred_fallthru
          _
        // Predicated region
        $region49: #{tpu_custom_call.1} parent=11 // pred_check
          %p528 = pneg %p275
        $region50: #{tpu_custom_call.1} parent=11 // pred_check_branch
          %530 = sbr.rel (%p528) target = $region52
        $region51: #{tpu_custom_call.1} parent=11 // pred_region
          %s532 = ssub.s32 16, 16
          %533 = vsyncadd [#allocation13], %s532
          %s535 = sshll.u32 [#allocation12], 4
          %s536 = int_to_ptr.vmem [resolvable:$true] %s535
          %538 = dma.hbm_to_vmem [thread:$0]  %s10, 16, %s536, [#allocation13]
        $region52: #{tpu_custom_call.1} parent=11 // pred_fallthru
          _
        // Predicated region
        $region53: #{tpu_custom_call.1} parent=11 // pred_check
          %p539 = pneg %p296
        $region54: #{tpu_custom_call.1} parent=11 // pred_check_branch
          %541 = sbr.rel (%p539) target = $region56
        $region55: #{tpu_custom_call.1} parent=11 // pred_region
          %s543 = ssub.s32 256, 256
          %544 = vsyncadd [#allocation13], %s543
          %s545 = sshll.u32 [#allocation14], 4
          %s546 = int_to_ptr.vmem [resolvable:$true] %s545
          %551 = dma.hbm_to_vmem [thread:$0]  %s11, 256, %s546, [#allocation13], 64, 64, 4
        $region56: #{tpu_custom_call.1} parent=11 // pred_fallthru
          _
        // Predicated region
        $region57: #{tpu_custom_call.1} parent=11 // pred_check
          %p552 = pneg %p317
        $region58: #{tpu_custom_call.1} parent=11 // pred_check_branch
          %554 = sbr.rel (%p552) target = $region60
        $region59: #{tpu_custom_call.1} parent=11 // pred_region
          %s556 = ssub.s32 16, 16
          %557 = vsyncadd [#allocation16], %s556
          %s559 = sshll.u32 [#allocation15], 4
          %s560 = int_to_ptr.vmem [resolvable:$true] %s559
          %562 = dma.hbm_to_vmem [thread:$0]  %s12, 16, %s560, [#allocation16]
        $region60: #{tpu_custom_call.1} parent=11 // pred_fallthru
          _
        // Predicated region
        $region61: #{tpu_custom_call.1} parent=11 // pred_check
          %p563 = pneg %p338
        $region62: #{tpu_custom_call.1} parent=11 // pred_check_branch
          %565 = sbr.rel (%p563) target = $region64
        $region63: #{tpu_custom_call.1} parent=11 // pred_region
          %s567 = ssub.s32 16, 16
          %568 = vsyncadd [#allocation16], %s567
          %s570 = sshll.u32 [#allocation17], 4
          %s571 = int_to_ptr.vmem [resolvable:$true] %s570
          %573 = dma.hbm_to_vmem [thread:$0]  %s13, 16, %s571, [#allocation16]
        $region64: #{tpu_custom_call.1} parent=11 // pred_fallthru
          _
        // Predicated region
        $region65: #{tpu_custom_call.1} parent=11 // pred_check
          %p574 = pneg %p359
        $region66: #{tpu_custom_call.1} parent=11 // pred_check_branch
          %576 = sbr.rel (%p574) target = $region68
        $region67: #{tpu_custom_call.1} parent=11 // pred_region
          %s578 = ssub.s32 256, 256
          %579 = vsyncadd [#allocation19], %s578
          %s580 = sshll.u32 [#allocation18], 4
          %s581 = int_to_ptr.vmem [resolvable:$true] %s580
          %586 = dma.hbm_to_vmem [thread:$0]  %s14, 256, %s581, [#allocation19], 64, 64, 4
        $region68: #{tpu_custom_call.1} parent=11 // pred_fallthru
          _
        // Predicated region
        $region69: #{tpu_custom_call.1} parent=11 // pred_check
          %p587 = pneg %p380
        $region70: #{tpu_custom_call.1} parent=11 // pred_check_branch
          %589 = sbr.rel (%p587) target = $region72
        $region71: #{tpu_custom_call.1} parent=11 // pred_region
          %s591 = ssub.s32 16, 16
          %592 = vsyncadd [#allocation19], %s591
          %s594 = sshll.u32 [#allocation20], 4
          %s595 = int_to_ptr.vmem [resolvable:$true] %s594
          %597 = dma.hbm_to_vmem [thread:$0]  %s15, 16, %s595, [#allocation19]
        $region72: #{tpu_custom_call.1} parent=11 // pred_fallthru
          _
        // Predicated region
        $region73: #{tpu_custom_call.1} parent=11 // pred_check
          %p598 = pneg %p401
        $region74: #{tpu_custom_call.1} parent=11 // pred_check_branch
          %600 = sbr.rel (%p598) target = $region76
        $region75: #{tpu_custom_call.1} parent=11 // pred_region
          %s602 = ssub.s32 16, 16
          %603 = vsyncadd [#allocation22], %s602
          %s605 = sshll.u32 [#allocation21], 4
          %s606 = int_to_ptr.vmem [resolvable:$true] %s605
          %608 = dma.hbm_to_vmem [thread:$0]  %s16, 16, %s606, [#allocation22]
        $region76: #{tpu_custom_call.1} parent=11 // pred_fallthru
          _
        // Predicated region
        $region77: #{tpu_custom_call.1} parent=11 // pred_check
          %p609 = pneg %p422
        $region78: #{tpu_custom_call.1} parent=11 // pred_check_branch
          %611 = sbr.rel (%p609) target = $region80
        $region79: #{tpu_custom_call.1} parent=11 // pred_region
          %s613 = ssub.s32 16, 16
          %614 = vsyncadd [#allocation22], %s613
          %s616 = sshll.u32 [#allocation23], 4
          %s617 = int_to_ptr.vmem [resolvable:$true] %s616
          %619 = dma.hbm_to_vmem [thread:$0]  %s17, 16, %s617, [#allocation22]
        $region80: #{tpu_custom_call.1} parent=11 // pred_fallthru
          _
      $region12: #{tpu_custom_call.1} parent=5 // pred_fallthru
        _
      %p620 = scmp.lt.s32.totalorder %s39, 2
      // Predicated region
      $region81: #{tpu_custom_call.1} parent=5 // pred_check
        %p621 = pneg %p620
      $region82: #{tpu_custom_call.1} parent=5 // pred_check_branch
        %623 = sbr.rel (%p621) target = $region84
      $region83: #{tpu_custom_call.1} parent=5 // pred_region
        // Predicated region
        $region85: #{tpu_custom_call.1} parent=83 // pred_check
          %p624 = pneg %p59
        $region86: #{tpu_custom_call.1} parent=83 // pred_check_branch
          %626 = sbr.rel (%p624) target = $region88
        $region87: #{tpu_custom_call.1} parent=83 // pred_region
          %s627 = sand.u32 %s49, 1
          %s628 = scalar_lea.sflag [#allocation4], %s627
          %s629 = sand.u32 %s49, 1
          %s630 = smul.addr %s629, 8
          %s631 = scalar_lea.vmem [#allocation3], %s630
          %s633 = ssub.s32 128, 128
          %634 = vsyncadd %s628, %s633
          %s635 = smul.addr %s39, 128
          %s636 = scalar_lea.hbm %s0, %s635
          %s638 = sshll.u32 %s631, 4
          %s639 = int_to_ptr.vmem [resolvable:$true] %s638
          %641 = dma.hbm_to_vmem [thread:$0]  %s636, 128, %s639, %s628
        $region88: #{tpu_custom_call.1} parent=83 // pred_fallthru
          _
      $region84: #{tpu_custom_call.1} parent=5 // pred_fallthru
        _
      %p642 = scmp.le.s32.totalorder 1, %s39
      %p643 = scmp.lt.s32.totalorder %s39, 3
      %p644 = pnand %p642, %p643
      %p645 = pneg %p644
      // Predicated region
      $region89: #{tpu_custom_call.1} parent=5 // pred_check
        _
      $region90: #{tpu_custom_call.1} parent=5 // pred_check_branch
        %647 = sbr.rel (%p644) target = $region92
      $region91: #{tpu_custom_call.1} parent=5 // pred_region
        %s648 = ssub.s32 %s39, 1
        %s649 = sand.u32 %s52, 1
        %s650 = scalar_lea.sflag [#allocation4], %s649
        %s651 = sand.u32 %s52, 1
        %s652 = smul.addr %s651, 8
        %s653 = scalar_lea.vmem [#allocation3], %s652
        // Predicated region
        $region93: #{tpu_custom_call.1} parent=91 // pred_check
          %p654 = pneg %p65
        $region94: #{tpu_custom_call.1} parent=91 // pred_check_branch
          %656 = sbr.rel (%p654) target = $region96
        $region95: #{tpu_custom_call.1} parent=91 // pred_region
          %657 = dma.done %s650, 128
        $region96: #{tpu_custom_call.1} parent=91 // pred_fallthru
          _
        // Predicated region
        $region97: #{tpu_custom_call.1} parent=91 // pred_check
          %p658 = pneg %p86
        $region98: #{tpu_custom_call.1} parent=91 // pred_check_branch
          %660 = sbr.rel (%p658) target = $region100
        $region99: #{tpu_custom_call.1} parent=91 // pred_region
          %661 = dma.done [#allocation7], 128
        $region100: #{tpu_custom_call.1} parent=91 // pred_fallthru
          _
        // Predicated region
        $region101: #{tpu_custom_call.1} parent=91 // pred_check
          %p662 = pneg %p128
        $region102: #{tpu_custom_call.1} parent=91 // pred_check_branch
          %664 = sbr.rel (%p662) target = $region104
        $region103: #{tpu_custom_call.1} parent=91 // pred_region
          %665 = dma.done [#allocation7], 256
        $region104: #{tpu_custom_call.1} parent=91 // pred_fallthru
          _
        // Predicated region
        $region105: #{tpu_custom_call.1} parent=91 // pred_check
          %p666 = pneg %p170
        $region106: #{tpu_custom_call.1} parent=91 // pred_check_branch
          %668 = sbr.rel (%p666) target = $region108
        $region107: #{tpu_custom_call.1} parent=91 // pred_region
          %669 = dma.done [#allocation10], 256
        $region108: #{tpu_custom_call.1} parent=91 // pred_fallthru
          _
        // Predicated region
        $region109: #{tpu_custom_call.1} parent=91 // pred_check
          %p670 = pneg %p212
        $region110: #{tpu_custom_call.1} parent=91 // pred_check_branch
          %672 = sbr.rel (%p670) target = $region112
        $region111: #{tpu_custom_call.1} parent=91 // pred_region
          %673 = dma.done [#allocation10], 256
        $region112: #{tpu_custom_call.1} parent=91 // pred_fallthru
          _
        // Predicated region
        $region113: #{tpu_custom_call.1} parent=91 // pred_check
          %p674 = pneg %p275
        $region114: #{tpu_custom_call.1} parent=91 // pred_check_branch
          %676 = sbr.rel (%p674) target = $region116
        $region115: #{tpu_custom_call.1} parent=91 // pred_region
          %677 = dma.done [#allocation13], 16
        $region116: #{tpu_custom_call.1} parent=91 // pred_fallthru
          _
        // Predicated region
        $region117: #{tpu_custom_call.1} parent=91 // pred_check
          %p678 = pneg %p296
        $region118: #{tpu_custom_call.1} parent=91 // pred_check_branch
          %680 = sbr.rel (%p678) target = $region120
        $region119: #{tpu_custom_call.1} parent=91 // pred_region
          %681 = dma.done [#allocation13], 256
        $region120: #{tpu_custom_call.1} parent=91 // pred_fallthru
          _
        // Predicated region
        $region121: #{tpu_custom_call.1} parent=91 // pred_check
          %p682 = pneg %p317
        $region122: #{tpu_custom_call.1} parent=91 // pred_check_branch
          %684 = sbr.rel (%p682) target = $region124
        $region123: #{tpu_custom_call.1} parent=91 // pred_region
          %685 = dma.done [#allocation16], 16
        $region124: #{tpu_custom_call.1} parent=91 // pred_fallthru
          _
        // Predicated region
        $region125: #{tpu_custom_call.1} parent=91 // pred_check
          %p686 = pneg %p338
        $region126: #{tpu_custom_call.1} parent=91 // pred_check_branch
          %688 = sbr.rel (%p686) target = $region128
        $region127: #{tpu_custom_call.1} parent=91 // pred_region
          %689 = dma.done [#allocation16], 16
        $region128: #{tpu_custom_call.1} parent=91 // pred_fallthru
          _
        // Predicated region
        $region129: #{tpu_custom_call.1} parent=91 // pred_check
          %p690 = pneg %p359
        $region130: #{tpu_custom_call.1} parent=91 // pred_check_branch
          %692 = sbr.rel (%p690) target = $region132
        $region131: #{tpu_custom_call.1} parent=91 // pred_region
          %693 = dma.done [#allocation19], 256
        $region132: #{tpu_custom_call.1} parent=91 // pred_fallthru
          _
        // Predicated region
        $region133: #{tpu_custom_call.1} parent=91 // pred_check
          %p694 = pneg %p380
        $region134: #{tpu_custom_call.1} parent=91 // pred_check_branch
          %696 = sbr.rel (%p694) target = $region136
        $region135: #{tpu_custom_call.1} parent=91 // pred_region
          %697 = dma.done [#allocation19], 16
        $region136: #{tpu_custom_call.1} parent=91 // pred_fallthru
          _
        // Predicated region
        $region137: #{tpu_custom_call.1} parent=91 // pred_check
          %p698 = pneg %p401
        $region138: #{tpu_custom_call.1} parent=91 // pred_check_branch
          %700 = sbr.rel (%p698) target = $region140
        $region139: #{tpu_custom_call.1} parent=91 // pred_region
          %701 = dma.done [#allocation22], 16
        $region140: #{tpu_custom_call.1} parent=91 // pred_fallthru
          _
        // Predicated region
        $region141: #{tpu_custom_call.1} parent=91 // pred_check
          %p702 = pneg %p422
        $region142: #{tpu_custom_call.1} parent=91 // pred_check_branch
          %704 = sbr.rel (%p702) target = $region144
        $region143: #{tpu_custom_call.1} parent=91 // pred_region
          %705 = dma.done [#allocation22], 16
        $region144: #{tpu_custom_call.1} parent=91 // pred_fallthru
          _
        %s706 = sand.u32 %s52, 1
        %s707 = scalar_lea.sflag [#allocation4], %s706
        %s708 = sand.u32 %s52, 1
        %s709 = smul.addr %s708, 8
        %s710 = scalar_lea.vmem [#allocation3], %s709
        %p711 = pneg %p65
        %p712 = pneg %p62
        %p713 = pneg %p86
        %p714 = pneg %p83
        %p715 = pneg %p107
        %p716 = pneg %p104
        %p717 = pneg %p128
        %p718 = pneg %p125
        %p719 = pneg %p149
        %p720 = pneg %p146
        %p721 = pneg %p170
        %p722 = pneg %p167
        %p723 = pneg %p191
        %p724 = pneg %p188
        %p725 = pneg %p212
        %p726 = pneg %p209
        %p727 = pneg %p233
        %p728 = pneg %p230
        %p729 = pneg %p254
        %p730 = pneg %p251
        %p731 = pneg %p275
        %p732 = pneg %p272
        %p733 = pneg %p296
        %p734 = pneg %p293
        %p735 = pneg %p317
        %p736 = pneg %p314
        %p737 = pneg %p338
        %p738 = pneg %p335
        %p739 = pneg %p359
        %p740 = pneg %p356
        %p741 = pneg %p380
        %p742 = pneg %p377
        %p743 = pneg %p401
        %p744 = pneg %p398
        %p745 = pneg %p422
        %p746 = pneg %p419
        %p747 = pneg %p448
        %p748 = pneg %p445
        %s749 = sand.u32 %s435, 1
        %s750 = scalar_lea.sflag [#allocation5], %s749
        %s751 = sand.u32 %s435, 1
        %s752 = smul.addr %s751, 8
        %s753 = scalar_lea.vmem [#allocation24], %s752
        %v755 = vld [vmem:[%s653] sm:$0xff]
        %v756 = vld [vmem:[%s2] sm:$0x1]
        %v757 = vmul.f32 %v755, %v755
        %vm758 = vcmask 261120
        %v759 = vsel %vm758, %v757, 0.0
        %760 = vadd.xlane.f32.xlu0 %v759
        %v761 = vpop.xlane.xlu0 %760
        %v762 = vrcp.pop 32.0
        %v763 = vmul.f32 %v761, %v762
        %v764 = vadd.f32 %v763, 1e-05
        %v765 = vrsqrt.pop %v764
        %v766 = vmul.f32 %v755, %v765
        %v768 = vlaneseq
        %v769 = vshrl.u32 %v768, 7
        %v770 = vsub.s32 0, %v769
        %v771 = vrot.slane %v756, %v770
        %v773 = vmul.f32 %v766, %v771
        %v774 = vpack.c.bf16 %v773, %v773
        %v775 = vld [vmem:[#allocation8] sm:$0xf]
        %v776 = vld [vmem:[#allocation8 + $0x4] sm:$0xf]
        %v777 = vld [vmem:[#allocation8 + $0x8] sm:$0xf]
        %v778 = vld [vmem:[#allocation8 + $0xc] sm:$0xf]
        %v779 = vld [vmem:[%s4] sm:$0x1]
        %v781 = vlaneseq
        %v782 = vshrl.u32 %v781, 7
        %v783 = vsub.s32 0, %v782
        %v784 = vrot.slane %v779, %v783
        %v790 = vunpack.c.l.b16 %v775
        %v791 = vunpack.c.l.b16 %v776
        %v792 = vunpack.c.l.b16 %v777
        %v793 = vunpack.c.l.b16 %v778
        %v794 = vpack.c.b16 %v791, %v790
        %v795 = vpack.c.b16 %v793, %v792
        %v799 = vsel %vm758, %v774, 0
        %801 = vmatprep.subr.bf16.mxu0 0
        %802 = vmatpush1.bf16.msra.mxu0 %v794
        %803 = vmatprep.subr.bf16.mxu0 0
        %804 = vmatpush1.bf16.msra.mxu0 %v795
        %805 = vmatprep.subr.bf16.mxu0 0
        %806 = vmatpush1.bf16.msra.mxu0 0
        %807 = vmatprep.subr.bf16.mxu0 0
        %808 = vmatpush1.bf16.msra.mxu0 0
        %809 = vmatprep.subr.bf16.mxu0 0
        %810 = vmatpush1.bf16.msra.mxu0 0
        %811 = vmatprep.subr.bf16.mxu0 0
        %812 = vmatpush1.bf16.msra.mxu0 0
        %813 = vmatprep.subr.bf16.mxu0 0
        %814 = vmatpush1.bf16.msra.mxu0 0
        %815 = vmatprep.subr.bf16.mxu0 0
        %816 = vmatpush1.bf16.msra.mxu0 0
        %817 = vmatprep.subr.bf16.mxu0 0
        %818 = vmatpush1.bf16.msra.mxu0 0
        %819 = vmatprep.subr.bf16.mxu0 0
        %820 = vmatpush1.bf16.msra.mxu0 0
        %821 = vmatprep.subr.bf16.mxu0 0
        %822 = vmatpush1.bf16.msra.mxu0 0
        %823 = vmatprep.subr.bf16.mxu0 0
        %824 = vmatpush1.bf16.msra.mxu0 0
        %825 = vmatprep.subr.bf16.mxu0 0
        %826 = vmatpush1.bf16.msra.mxu0 0
        %827 = vmatprep.subr.bf16.mxu0 0
        %828 = vmatpush1.bf16.msra.mxu0 0
        %829 = vmatprep.subr.bf16.mxu0 0
        %830 = vmatpush1.bf16.msra.mxu0 0
        %831 = vmatprep.subr.bf16.mxu0 0
        %832 = vmatpush1.bf16.msra.mxu0 0
        %833 = vmatprep.mubr.bf16.mxu0 0
        %834 = vmatmul.mubr.bf16.gmra.mrb[0].mxu0 %v799
        %v835 = vpop.f32.mrb[0].mxu0
        %v836 = vadd.f32 %v784, %v835
        %v837 = vpop.f32.mrb[0].mxu0
        %v838 = vpop.f32.mrb[0].mxu0
        %v839 = vpop.f32.mrb[0].mxu0
        %840 = vdwg.mxu0
        %v841 = vld [vmem:[#allocation9] sm:$0xf]
        %v842 = vld [vmem:[#allocation9 + $0x4] sm:$0xf]
        %v843 = vld [vmem:[#allocation9 + $0x8] sm:$0xf]
        %v844 = vld [vmem:[#allocation9 + $0xc] sm:$0xf]
        %v845 = vld [vmem:[%s6] sm:$0x1]
        %v847 = vlaneseq
        %v848 = vshrl.u32 %v847, 7
        %v849 = vsub.s32 0, %v848
        %v850 = vrot.slane %v845, %v849
        %v856 = vunpack.c.l.b16 %v841
        %v857 = vunpack.c.l.b16 %v842
        %v858 = vunpack.c.l.b16 %v843
        %v859 = vunpack.c.l.b16 %v844
        %v860 = vpack.c.b16 %v857, %v856
        %v861 = vpack.c.b16 %v859, %v858
        %864 = vmatprep.subr.bf16.mxu0 0
        %865 = vmatpush1.bf16.msra.mxu0 %v860
        %866 = vmatprep.subr.bf16.mxu0 0
        %867 = vmatpush1.bf16.msra.mxu0 %v861
        %868 = vmatprep.subr.bf16.mxu0 0
        %869 = vmatpush1.bf16.msra.mxu0 0
        %870 = vmatprep.subr.bf16.mxu0 0
        %871 = vmatpush1.bf16.msra.mxu0 0
        %872 = vmatprep.subr.bf16.mxu0 0
        %873 = vmatpush1.bf16.msra.mxu0 0
        %874 = vmatprep.subr.bf16.mxu0 0
        %875 = vmatpush1.bf16.msra.mxu0 0
        %876 = vmatprep.subr.bf16.mxu0 0
        %877 = vmatpush1.bf16.msra.mxu0 0
        %878 = vmatprep.subr.bf16.mxu0 0
        %879 = vmatpush1.bf16.msra.mxu0 0
        %880 = vmatprep.subr.bf16.mxu0 0
        %881 = vmatpush1.bf16.msra.mxu0 0
        %882 = vmatprep.subr.bf16.mxu0 0
        %883 = vmatpush1.bf16.msra.mxu0 0
        %884 = vmatprep.subr.bf16.mxu0 0
        %885 = vmatpush1.bf16.msra.mxu0 0
        %886 = vmatprep.subr.bf16.mxu0 0
        %887 = vmatpush1.bf16.msra.mxu0 0
        %888 = vmatprep.subr.bf16.mxu0 0
        %889 = vmatpush1.bf16.msra.mxu0 0
        %890 = vmatprep.subr.bf16.mxu0 0
        %891 = vmatpush1.bf16.msra.mxu0 0
        %892 = vmatprep.subr.bf16.mxu0 0
        %893 = vmatpush1.bf16.msra.mxu0 0
        %894 = vmatprep.subr.bf16.mxu0 0
        %895 = vmatpush1.bf16.msra.mxu0 0
        %896 = vmatprep.mubr.bf16.mxu0 0
        %897 = vmatmul.mubr.bf16.gmra.mrb[0].mxu0 %v799
        %v898 = vpop.f32.mrb[0].mxu0
        %v899 = vadd.f32 %v850, %v898
        %v900 = vpop.f32.mrb[0].mxu0
        %v901 = vpop.f32.mrb[0].mxu0
        %v902 = vpop.f32.mrb[0].mxu0
        %903 = vdwg.mxu0
        %v904 = vld [vmem:[#allocation11] sm:$0xf]
        %v905 = vld [vmem:[#allocation11 + $0x4] sm:$0xf]
        %v906 = vld [vmem:[#allocation11 + $0x8] sm:$0xf]
        %v907 = vld [vmem:[#allocation11 + $0xc] sm:$0xf]
        %v908 = vld [vmem:[%s8] sm:$0x1]
        %v910 = vlaneseq
        %v911 = vshrl.u32 %v910, 7
        %v912 = vsub.s32 0, %v911
        %v913 = vrot.slane %v908, %v912
        %v919 = vunpack.c.l.b16 %v904
        %v920 = vunpack.c.l.b16 %v905
        %v921 = vunpack.c.l.b16 %v906
        %v922 = vunpack.c.l.b16 %v907
        %v923 = vpack.c.b16 %v920, %v919
        %v924 = vpack.c.b16 %v922, %v921
        %927 = vmatprep.subr.bf16.mxu0 0
        %928 = vmatpush1.bf16.msra.mxu0 %v923
        %929 = vmatprep.subr.bf16.mxu0 0
        %930 = vmatpush1.bf16.msra.mxu0 %v924
        %931 = vmatprep.subr.bf16.mxu0 0
        %932 = vmatpush1.bf16.msra.mxu0 0
        %933 = vmatprep.subr.bf16.mxu0 0
        %934 = vmatpush1.bf16.msra.mxu0 0
        %935 = vmatprep.subr.bf16.mxu0 0
        %936 = vmatpush1.bf16.msra.mxu0 0
        %937 = vmatprep.subr.bf16.mxu0 0
        %938 = vmatpush1.bf16.msra.mxu0 0
        %939 = vmatprep.subr.bf16.mxu0 0
        %940 = vmatpush1.bf16.msra.mxu0 0
        %941 = vmatprep.subr.bf16.mxu0 0
        %942 = vmatpush1.bf16.msra.mxu0 0
        %943 = vmatprep.subr.bf16.mxu0 0
        %944 = vmatpush1.bf16.msra.mxu0 0
        %945 = vmatprep.subr.bf16.mxu0 0
        %946 = vmatpush1.bf16.msra.mxu0 0
        %947 = vmatprep.subr.bf16.mxu0 0
        %948 = vmatpush1.bf16.msra.mxu0 0
        %949 = vmatprep.subr.bf16.mxu0 0
        %950 = vmatpush1.bf16.msra.mxu0 0
        %951 = vmatprep.subr.bf16.mxu0 0
        %952 = vmatpush1.bf16.msra.mxu0 0
        %953 = vmatprep.subr.bf16.mxu0 0
        %954 = vmatpush1.bf16.msra.mxu0 0
        %955 = vmatprep.subr.bf16.mxu0 0
        %956 = vmatpush1.bf16.msra.mxu0 0
        %957 = vmatprep.subr.bf16.mxu0 0
        %958 = vmatpush1.bf16.msra.mxu0 0
        %959 = vmatprep.mubr.bf16.mxu0 0
        %960 = vmatmul.mubr.bf16.gmra.mrb[0].mxu0 %v799
        %v961 = vpop.f32.mrb[0].mxu0
        %v962 = vadd.f32 %v913, %v961
        %v963 = vpop.f32.mrb[0].mxu0
        %v964 = vpop.f32.mrb[0].mxu0
        %v965 = vpop.f32.mrb[0].mxu0
        %966 = vdwg.mxu0
        %v967 = vld [vmem:[#allocation6] sm:$0xff]
        %v968 = vadd.f32 %v836, %v967
        %v969 = vld [vmem:[%s9] sm:$0x1]
        %v970 = vmul.f32 %v968, %v968
        %v971 = vsel %vm758, %v970, 0.0
        %972 = vadd.xlane.f32.xlu0 %v971
        %v973 = vpop.xlane.xlu0 %972
        %v974 = vmul.f32 %v973, %v762
        %v975 = vadd.f32 %v974, 1e-05
        %v976 = vrsqrt.pop %v975
        %v977 = vmul.f32 %v968, %v976
        %v979 = vlaneseq
        %v980 = vshrl.u32 %v979, 7
        %v981 = vsub.s32 0, %v980
        %v982 = vrot.slane %v969, %v981
        %v984 = vmul.f32 %v977, %v982
        %v985 = vadd.f32 %v899, %v967
        %v986 = vld [vmem:[#allocation12] sm:$0x1]
        %v987 = vmul.f32 %v985, %v985
        %v988 = vsel %vm758, %v987, 0.0
        %989 = vadd.xlane.f32.xlu0 %v988
        %v990 = vpop.xlane.xlu0 %989
        %v991 = vmul.f32 %v990, %v762
        %v992 = vadd.f32 %v991, 1e-05
        %v993 = vrsqrt.pop %v992
        %v994 = vmul.f32 %v985, %v993
        %v996 = vlaneseq
        %v997 = vshrl.u32 %v996, 7
        %v998 = vsub.s32 0, %v997
        %v999 = vrot.slane %v986, %v998
        %v1001 = vmul.f32 %v994, %v999
        %v1002 = vpack.c.bf16 %v984, %v984
        %v1003 = vpack.c.bf16 %v1001, %v1001
        %v1004 = vpack.c.bf16 %v962, %v962
        %vm1005 = vcmask 64512
        %v1007 = vsel %vm1005, %v1002, 0
        %v1010 = vsel %vm1005, %v1003, 0
        %1012 = vmatprep.subr.bf16.mxu0 0
        %1013 = vmatpush1.bf16.xpose.msra.mxu0 %v1010
        %1014 = vmatprep.subr.bf16.mxu0 0
        %1015 = vmatpush1.bf16.xpose.msra.mxu0 0
        %1016 = vmatprep.subr.bf16.mxu0 0
        %1017 = vmatpush1.bf16.xpose.msra.mxu0 0
        %1018 = vmatprep.subr.bf16.mxu0 0
        %1019 = vmatpush1.bf16.xpose.msra.mxu0 0
        %1020 = vmatprep.subr.bf16.mxu0 0
        %1021 = vmatpush1.bf16.xpose.msra.mxu0 0
        %1022 = vmatprep.subr.bf16.mxu0 0
        %1023 = vmatpush1.bf16.xpose.msra.mxu0 0
        %1024 = vmatprep.subr.bf16.mxu0 0
        %1025 = vmatpush1.bf16.xpose.msra.mxu0 0
        %1026 = vmatprep.subr.bf16.mxu0 0
        %1027 = vmatpush1.bf16.xpose.msra.mxu0 0
        %1028 = vmatprep.subr.bf16.mxu0 0
        %1029 = vmatpush1.bf16.xpose.msra.mxu0 0
        %1030 = vmatprep.subr.bf16.mxu0 0
        %1031 = vmatpush1.bf16.xpose.msra.mxu0 0
        %1032 = vmatprep.subr.bf16.mxu0 0
        %1033 = vmatpush1.bf16.xpose.msra.mxu0 0
        %1034 = vmatprep.subr.bf16.mxu0 0
        %1035 = vmatpush1.bf16.xpose.msra.mxu0 0
        %1036 = vmatprep.subr.bf16.mxu0 0
        %1037 = vmatpush1.bf16.xpose.msra.mxu0 0
        %1038 = vmatprep.subr.bf16.mxu0 0
        %1039 = vmatpush1.bf16.xpose.msra.mxu0 0
        %1040 = vmatprep.subr.bf16.mxu0 0
        %1041 = vmatpush1.bf16.xpose.msra.mxu0 0
        %1042 = vmatprep.subr.bf16.mxu0 0
        %1043 = vmatpush1.bf16.xpose.msra.mxu0 0
        %1044 = vmatprep.mubr.bf16.mxu0 0
        %1045 = vmatmul.mubr.bf16.gmra.mrb[0].mxu0 %v1007
        %v1046 = vpop.f32.mrb[0].mxu0
        %v1047 = vadd.f32 0.0, %v1046
        %v1048 = vpop.f32.mrb[0].mxu0
        %v1049 = vpop.f32.mrb[0].mxu0
        %v1050 = vpop.f32.mrb[0].mxu0
        %1051 = vdwg.mxu0
        %v1052 = vmul.f32 %v1047, 0.35355338
        %v1053 = vsel %vm1005, %v1052, -inf
        %1054 = vmax.xlane.f32.xlu0 %v1053
        %v1055 = vpop.xlane.xlu0 %1054
        %v1056 = vsub.f32 %v1052, %v1055
        %v1057 = vmul.f32 %v1056, 1.442695
        %v1058 = vpow.pop %v1057
        %v1059 = vsel %vm1005, %v1058, 0.0
        %1060 = vadd.xlane.f32.xlu0 %v1059
        %v1061 = vpop.xlane.xlu0 %1060
        %v1062 = vrcp.pop %v1061
        %v1063 = vmul.f32 %v1058, %v1062
        %v1064 = vpack.c.bf16 %v1063, %v1063
        %v1066 = vsel %vm1005, %v1064, 0
        %vm1068 = vcmask 1043456
        %v1070 = vsel %vm1068, %v1004, 0
        %1072 = vmatprep.subr.bf16.mxu0 0
        %1073 = vmatpush1.bf16.msra.mxu0 %v1070
        %1074 = vmatprep.subr.bf16.mxu0 0
        %1075 = vmatpush1.bf16.msra.mxu0 0
        %1076 = vmatprep.subr.bf16.mxu0 0
        %1077 = vmatpush1.bf16.msra.mxu0 0
        %1078 = vmatprep.subr.bf16.mxu0 0
        %1079 = vmatpush1.bf16.msra.mxu0 0
        %1080 = vmatprep.subr.bf16.mxu0 0
        %1081 = vmatpush1.bf16.msra.mxu0 0
        %1082 = vmatprep.subr.bf16.mxu0 0
        %1083 = vmatpush1.bf16.msra.mxu0 0
        %1084 = vmatprep.subr.bf16.mxu0 0
        %1085 = vmatpush1.bf16.msra.mxu0 0
        %1086 = vmatprep.subr.bf16.mxu0 0
        %1087 = vmatpush1.bf16.msra.mxu0 0
        %1088 = vmatprep.subr.bf16.mxu0 0
        %1089 = vmatpush1.bf16.msra.mxu0 0
        %1090 = vmatprep.subr.bf16.mxu0 0
        %1091 = vmatpush1.bf16.msra.mxu0 0
        %1092 = vmatprep.subr.bf16.mxu0 0
        %1093 = vmatpush1.bf16.msra.mxu0 0
        %1094 = vmatprep.subr.bf16.mxu0 0
        %1095 = vmatpush1.bf16.msra.mxu0 0
        %1096 = vmatprep.subr.bf16.mxu0 0
        %1097 = vmatpush1.bf16.msra.mxu0 0
        %1098 = vmatprep.subr.bf16.mxu0 0
        %1099 = vmatpush1.bf16.msra.mxu0 0
        %1100 = vmatprep.subr.bf16.mxu0 0
        %1101 = vmatpush1.bf16.msra.mxu0 0
        %1102 = vmatprep.subr.bf16.mxu0 0
        %1103 = vmatpush1.bf16.msra.mxu0 0
        %1104 = vmatprep.mubr.bf16.mxu0 0
        %1105 = vmatmul.mubr.bf16.gmra.mrb[0].mxu0 %v1066
        %v1106 = vpop.f32.mrb[0].mxu0
        %v1107 = vadd.f32 0.0, %v1106
        %v1108 = vpop.f32.mrb[0].mxu0
        %v1109 = vpop.f32.mrb[0].mxu0
        %v1110 = vpop.f32.mrb[0].mxu0
        %1111 = vdwg.mxu0
        %1113 = vrot.lane.b32.xlu0 %v1002, 120
        %v1114 = vpop.permute.xlu0 %1113
        %1116 = vrot.lane.b32.xlu0 %v1003, 120
        %v1117 = vpop.permute.xlu0 %1116
        %v1119 = vsel %vm1005, %v1114, 0
        %v1122 = vsel %vm1005, %v1117, 0
        %1124 = vmatprep.subr.bf16.mxu0 0
        %1125 = vmatpush1.bf16.xpose.msra.mxu0 %v1122
        %1126 = vmatprep.subr.bf16.mxu0 0
        %1127 = vmatpush1.bf16.xpose.msra.mxu0 0
        %1128 = vmatprep.subr.bf16.mxu0 0
        %1129 = vmatpush1.bf16.xpose.msra.mxu0 0
        %1130 = vmatprep.subr.bf16.mxu0 0
        %1131 = vmatpush1.bf16.xpose.msra.mxu0 0
        %1132 = vmatprep.subr.bf16.mxu0 0
        %1133 = vmatpush1.bf16.xpose.msra.mxu0 0
        %1134 = vmatprep.subr.bf16.mxu0 0
        %1135 = vmatpush1.bf16.xpose.msra.mxu0 0
        %1136 = vmatprep.subr.bf16.mxu0 0
        %1137 = vmatpush1.bf16.xpose.msra.mxu0 0
        %1138 = vmatprep.subr.bf16.mxu0 0
        %1139 = vmatpush1.bf16.xpose.msra.mxu0 0
        %1140 = vmatprep.subr.bf16.mxu0 0
        %1141 = vmatpush1.bf16.xpose.msra.mxu0 0
        %1142 = vmatprep.subr.bf16.mxu0 0
        %1143 = vmatpush1.bf16.xpose.msra.mxu0 0
        %1144 = vmatprep.subr.bf16.mxu0 0
        %1145 = vmatpush1.bf16.xpose.msra.mxu0 0
        %1146 = vmatprep.subr.bf16.mxu0 0
        %1147 = vmatpush1.bf16.xpose.msra.mxu0 0
        %1148 = vmatprep.subr.bf16.mxu0 0
        %1149 = vmatpush1.bf16.xpose.msra.mxu0 0
        %1150 = vmatprep.subr.bf16.mxu0 0
        %1151 = vmatpush1.bf16.xpose.msra.mxu0 0
        %1152 = vmatprep.subr.bf16.mxu0 0
        %1153 = vmatpush1.bf16.xpose.msra.mxu0 0
        %1154 = vmatprep.subr.bf16.mxu0 0
        %1155 = vmatpush1.bf16.xpose.msra.mxu0 0
        %1156 = vmatprep.mubr.bf16.mxu0 0
        %1157 = vmatmul.mubr.bf16.gmra.mrb[0].mxu0 %v1119
        %v1158 = vpop.f32.mrb[0].mxu0
        %v1159 = vadd.f32 0.0, %v1158
        %v1160 = vpop.f32.mrb[0].mxu0
        %v1161 = vpop.f32.mrb[0].mxu0
        %v1162 = vpop.f32.mrb[0].mxu0
        %1163 = vdwg.mxu0
        %v1164 = vmul.f32 %v1159, 0.35355338
        %v1165 = vsel %vm1005, %v1164, -inf
        %1166 = vmax.xlane.f32.xlu0 %v1165
        %v1167 = vpop.xlane.xlu0 %1166
        %v1168 = vsub.f32 %v1164, %v1167
        %v1169 = vmul.f32 %v1168, 1.442695
        %v1170 = vpow.pop %v1169
        %v1171 = vsel %vm1005, %v1170, 0.0
        %1172 = vadd.xlane.f32.xlu0 %v1171
        %v1173 = vpop.xlane.xlu0 %1172
        %v1174 = vrcp.pop %v1173
        %v1175 = vmul.f32 %v1170, %v1174
        %v1176 = vpack.c.bf16 %v1175, %v1175
        %1178 = vrot.lane.b32.xlu0 %v1004, 120
        %v1179 = vpop.permute.xlu0 %1178
        %v1181 = vsel %vm1005, %v1176, 0
        %v1184 = vsel %vm1068, %v1179, 0
        %1186 = vmatprep.subr.bf16.mxu0 0
        %1187 = vmatpush1.bf16.msra.mxu0 %v1184
        %1188 = vmatprep.subr.bf16.mxu0 0
        %1189 = vmatpush1.bf16.msra.mxu0 0
        %1190 = vmatprep.subr.bf16.mxu0 0
        %1191 = vmatpush1.bf16.msra.mxu0 0
        %1192 = vmatprep.subr.bf16.mxu0 0
        %1193 = vmatpush1.bf16.msra.mxu0 0
        %1194 = vmatprep.subr.bf16.mxu0 0
        %1195 = vmatpush1.bf16.msra.mxu0 0
        %1196 = vmatprep.subr.bf16.mxu0 0
        %1197 = vmatpush1.bf16.msra.mxu0 0
        %1198 = vmatprep.subr.bf16.mxu0 0
        %1199 = vmatpush1.bf16.msra.mxu0 0
        %1200 = vmatprep.subr.bf16.mxu0 0
        %1201 = vmatpush1.bf16.msra.mxu0 0
        %1202 = vmatprep.subr.bf16.mxu0 0
        %1203 = vmatpush1.bf16.msra.mxu0 0
        %1204 = vmatprep.subr.bf16.mxu0 0
        %1205 = vmatpush1.bf16.msra.mxu0 0
        %1206 = vmatprep.subr.bf16.mxu0 0
        %1207 = vmatpush1.bf16.msra.mxu0 0
        %1208 = vmatprep.subr.bf16.mxu0 0
        %1209 = vmatpush1.bf16.msra.mxu0 0
        %1210 = vmatprep.subr.bf16.mxu0 0
        %1211 = vmatpush1.bf16.msra.mxu0 0
        %1212 = vmatprep.subr.bf16.mxu0 0
        %1213 = vmatpush1.bf16.msra.mxu0 0
        %1214 = vmatprep.subr.bf16.mxu0 0
        %1215 = vmatpush1.bf16.msra.mxu0 0
        %1216 = vmatprep.subr.bf16.mxu0 0
        %1217 = vmatpush1.bf16.msra.mxu0 0
        %1218 = vmatprep.mubr.bf16.mxu0 0
        %1219 = vmatmul.mubr.bf16.gmra.mrb[0].mxu0 %v1181
        %v1220 = vpop.f32.mrb[0].mxu0
        %v1221 = vadd.f32 0.0, %v1220
        %v1222 = vpop.f32.mrb[0].mxu0
        %v1223 = vpop.f32.mrb[0].mxu0
        %v1224 = vpop.f32.mrb[0].mxu0
        %1225 = vdwg.mxu0
        %1226 = vrot.lane.b32.xlu0 %v1002, 112
        %v1227 = vpop.permute.xlu0 %1226
        %1228 = vrot.lane.b32.xlu0 %v1003, 112
        %v1229 = vpop.permute.xlu0 %1228
        %v1231 = vsel %vm1005, %v1227, 0
        %v1234 = vsel %vm1005, %v1229, 0
        %1236 = vmatprep.subr.bf16.mxu0 0
        %1237 = vmatpush1.bf16.xpose.msra.mxu0 %v1234
        %1238 = vmatprep.subr.bf16.mxu0 0
        %1239 = vmatpush1.bf16.xpose.msra.mxu0 0
        %1240 = vmatprep.subr.bf16.mxu0 0
        %1241 = vmatpush1.bf16.xpose.msra.mxu0 0
        %1242 = vmatprep.subr.bf16.mxu0 0
        %1243 = vmatpush1.bf16.xpose.msra.mxu0 0
        %1244 = vmatprep.subr.bf16.mxu0 0
        %1245 = vmatpush1.bf16.xpose.msra.mxu0 0
        %1246 = vmatprep.subr.bf16.mxu0 0
        %1247 = vmatpush1.bf16.xpose.msra.mxu0 0
        %1248 = vmatprep.subr.bf16.mxu0 0
        %1249 = vmatpush1.bf16.xpose.msra.mxu0 0
        %1250 = vmatprep.subr.bf16.mxu0 0
        %1251 = vmatpush1.bf16.xpose.msra.mxu0 0
        %1252 = vmatprep.subr.bf16.mxu0 0
        %1253 = vmatpush1.bf16.xpose.msra.mxu0 0
        %1254 = vmatprep.subr.bf16.mxu0 0
        %1255 = vmatpush1.bf16.xpose.msra.mxu0 0
        %1256 = vmatprep.subr.bf16.mxu0 0
        %1257 = vmatpush1.bf16.xpose.msra.mxu0 0
        %1258 = vmatprep.subr.bf16.mxu0 0
        %1259 = vmatpush1.bf16.xpose.msra.mxu0 0
        %1260 = vmatprep.subr.bf16.mxu0 0
        %1261 = vmatpush1.bf16.xpose.msra.mxu0 0
        %1262 = vmatprep.subr.bf16.mxu0 0
        %1263 = vmatpush1.bf16.xpose.msra.mxu0 0
        %1264 = vmatprep.subr.bf16.mxu0 0
        %1265 = vmatpush1.bf16.xpose.msra.mxu0 0
        %1266 = vmatprep.subr.bf16.mxu0 0
        %1267 = vmatpush1.bf16.xpose.msra.mxu0 0
        %1268 = vmatprep.mubr.bf16.mxu0 0
        %1269 = vmatmul.mubr.bf16.gmra.mrb[0].mxu0 %v1231
        %v1270 = vpop.f32.mrb[0].mxu0
        %v1271 = vadd.f32 0.0, %v1270
        %v1272 = vpop.f32.mrb[0].mxu0
        %v1273 = vpop.f32.mrb[0].mxu0
        %v1274 = vpop.f32.mrb[0].mxu0
        %1275 = vdwg.mxu0
        %v1276 = vmul.f32 %v1271, 0.35355338
        %v1277 = vsel %vm1005, %v1276, -inf
        %1278 = vmax.xlane.f32.xlu0 %v1277
        %v1279 = vpop.xlane.xlu0 %1278
        %v1280 = vsub.f32 %v1276, %v1279
        %v1281 = vmul.f32 %v1280, 1.442695
        %v1282 = vpow.pop %v1281
        %v1283 = vsel %vm1005, %v1282, 0.0
        %1284 = vadd.xlane.f32.xlu0 %v1283
        %v1285 = vpop.xlane.xlu0 %1284
        %v1286 = vrcp.pop %v1285
        %v1287 = vmul.f32 %v1282, %v1286
        %v1288 = vpack.c.bf16 %v1287, %v1287
        %1289 = vrot.lane.b32.xlu0 %v1004, 112
        %v1290 = vpop.permute.xlu0 %1289
        %v1292 = vsel %vm1005, %v1288, 0
        %v1295 = vsel %vm1068, %v1290, 0
        %1297 = vmatprep.subr.bf16.mxu0 0
        %1298 = vmatpush1.bf16.msra.mxu0 %v1295
        %1299 = vmatprep.subr.bf16.mxu0 0
        %1300 = vmatpush1.bf16.msra.mxu0 0
        %1301 = vmatprep.subr.bf16.mxu0 0
        %1302 = vmatpush1.bf16.msra.mxu0 0
        %1303 = vmatprep.subr.bf16.mxu0 0
        %1304 = vmatpush1.bf16.msra.mxu0 0
        %1305 = vmatprep.subr.bf16.mxu0 0
        %1306 = vmatpush1.bf16.msra.mxu0 0
        %1307 = vmatprep.subr.bf16.mxu0 0
        %1308 = vmatpush1.bf16.msra.mxu0 0
        %1309 = vmatprep.subr.bf16.mxu0 0
        %1310 = vmatpush1.bf16.msra.mxu0 0
        %1311 = vmatprep.subr.bf16.mxu0 0
        %1312 = vmatpush1.bf16.msra.mxu0 0
        %1313 = vmatprep.subr.bf16.mxu0 0
        %1314 = vmatpush1.bf16.msra.mxu0 0
        %1315 = vmatprep.subr.bf16.mxu0 0
        %1316 = vmatpush1.bf16.msra.mxu0 0
        %1317 = vmatprep.subr.bf16.mxu0 0
        %1318 = vmatpush1.bf16.msra.mxu0 0
        %1319 = vmatprep.subr.bf16.mxu0 0
        %1320 = vmatpush1.bf16.msra.mxu0 0
        %1321 = vmatprep.subr.bf16.mxu0 0
        %1322 = vmatpush1.bf16.msra.mxu0 0
        %1323 = vmatprep.subr.bf16.mxu0 0
        %1324 = vmatpush1.bf16.msra.mxu0 0
        %1325 = vmatprep.subr.bf16.mxu0 0
        %1326 = vmatpush1.bf16.msra.mxu0 0
        %1327 = vmatprep.subr.bf16.mxu0 0
        %1328 = vmatpush1.bf16.msra.mxu0 0
        %1329 = vmatprep.mubr.bf16.mxu0 0
        %1330 = vmatmul.mubr.bf16.gmra.mrb[0].mxu0 %v1292
        %v1331 = vpop.f32.mrb[0].mxu0
        %v1332 = vadd.f32 0.0, %v1331
        %v1333 = vpop.f32.mrb[0].mxu0
        %v1334 = vpop.f32.mrb[0].mxu0
        %v1335 = vpop.f32.mrb[0].mxu0
        %1336 = vdwg.mxu0
        %1337 = vrot.lane.b32.xlu0 %v1002, 104
        %v1338 = vpop.permute.xlu0 %1337
        %1339 = vrot.lane.b32.xlu0 %v1003, 104
        %v1340 = vpop.permute.xlu0 %1339
        %v1342 = vsel %vm1005, %v1338, 0
        %v1345 = vsel %vm1005, %v1340, 0
        %1347 = vmatprep.subr.bf16.mxu0 0
        %1348 = vmatpush1.bf16.xpose.msra.mxu0 %v1345
        %1349 = vmatprep.subr.bf16.mxu0 0
        %1350 = vmatpush1.bf16.xpose.msra.mxu0 0
        %1351 = vmatprep.subr.bf16.mxu0 0
        %1352 = vmatpush1.bf16.xpose.msra.mxu0 0
        %1353 = vmatprep.subr.bf16.mxu0 0
        %1354 = vmatpush1.bf16.xpose.msra.mxu0 0
        %1355 = vmatprep.subr.bf16.mxu0 0
        %1356 = vmatpush1.bf16.xpose.msra.mxu0 0
        %1357 = vmatprep.subr.bf16.mxu0 0
        %1358 = vmatpush1.bf16.xpose.msra.mxu0 0
        %1359 = vmatprep.subr.bf16.mxu0 0
        %1360 = vmatpush1.bf16.xpose.msra.mxu0 0
        %1361 = vmatprep.subr.bf16.mxu0 0
        %1362 = vmatpush1.bf16.xpose.msra.mxu0 0
        %1363 = vmatprep.subr.bf16.mxu0 0
        %1364 = vmatpush1.bf16.xpose.msra.mxu0 0
        %1365 = vmatprep.subr.bf16.mxu0 0
        %1366 = vmatpush1.bf16.xpose.msra.mxu0 0
        %1367 = vmatprep.subr.bf16.mxu0 0
        %1368 = vmatpush1.bf16.xpose.msra.mxu0 0
        %1369 = vmatprep.subr.bf16.mxu0 0
        %1370 = vmatpush1.bf16.xpose.msra.mxu0 0
        %1371 = vmatprep.subr.bf16.mxu0 0
        %1372 = vmatpush1.bf16.xpose.msra.mxu0 0
        %1373 = vmatprep.subr.bf16.mxu0 0
        %1374 = vmatpush1.bf16.xpose.msra.mxu0 0
        %1375 = vmatprep.subr.bf16.mxu0 0
        %1376 = vmatpush1.bf16.xpose.msra.mxu0 0
        %1377 = vmatprep.subr.bf16.mxu0 0
        %1378 = vmatpush1.bf16.xpose.msra.mxu0 0
        %1379 = vmatprep.mubr.bf16.mxu0 0
        %1380 = vmatmul.mubr.bf16.gmra.mrb[0].mxu0 %v1342
        %v1381 = vpop.f32.mrb[0].mxu0
        %v1382 = vadd.f32 0.0, %v1381
        %v1383 = vpop.f32.mrb[0].mxu0
        %v1384 = vpop.f32.mrb[0].mxu0
        %v1385 = vpop.f32.mrb[0].mxu0
        %1386 = vdwg.mxu0
        %v1387 = vmul.f32 %v1382, 0.35355338
        %v1388 = vsel %vm1005, %v1387, -inf
        %1389 = vmax.xlane.f32.xlu0 %v1388
        %v1390 = vpop.xlane.xlu0 %1389
        %v1391 = vsub.f32 %v1387, %v1390
        %v1392 = vmul.f32 %v1391, 1.442695
        %v1393 = vpow.pop %v1392
        %v1394 = vsel %vm1005, %v1393, 0.0
        %1395 = vadd.xlane.f32.xlu0 %v1394
        %v1396 = vpop.xlane.xlu0 %1395
        %v1397 = vrcp.pop %v1396
        %v1398 = vmul.f32 %v1393, %v1397
        %v1399 = vpack.c.bf16 %v1398, %v1398
        %1400 = vrot.lane.b32.xlu0 %v1004, 104
        %v1401 = vpop.permute.xlu0 %1400
        %v1403 = vsel %vm1005, %v1399, 0
        %v1406 = vsel %vm1068, %v1401, 0
        %1408 = vmatprep.subr.bf16.mxu0 0
        %1409 = vmatpush1.bf16.msra.mxu0 %v1406
        %1410 = vmatprep.subr.bf16.mxu0 0
        %1411 = vmatpush1.bf16.msra.mxu0 0
        %1412 = vmatprep.subr.bf16.mxu0 0
        %1413 = vmatpush1.bf16.msra.mxu0 0
        %1414 = vmatprep.subr.bf16.mxu0 0
        %1415 = vmatpush1.bf16.msra.mxu0 0
        %1416 = vmatprep.subr.bf16.mxu0 0
        %1417 = vmatpush1.bf16.msra.mxu0 0
        %1418 = vmatprep.subr.bf16.mxu0 0
        %1419 = vmatpush1.bf16.msra.mxu0 0
        %1420 = vmatprep.subr.bf16.mxu0 0
        %1421 = vmatpush1.bf16.msra.mxu0 0
        %1422 = vmatprep.subr.bf16.mxu0 0
        %1423 = vmatpush1.bf16.msra.mxu0 0
        %1424 = vmatprep.subr.bf16.mxu0 0
        %1425 = vmatpush1.bf16.msra.mxu0 0
        %1426 = vmatprep.subr.bf16.mxu0 0
        %1427 = vmatpush1.bf16.msra.mxu0 0
        %1428 = vmatprep.subr.bf16.mxu0 0
        %1429 = vmatpush1.bf16.msra.mxu0 0
        %1430 = vmatprep.subr.bf16.mxu0 0
        %1431 = vmatpush1.bf16.msra.mxu0 0
        %1432 = vmatprep.subr.bf16.mxu0 0
        %1433 = vmatpush1.bf16.msra.mxu0 0
        %1434 = vmatprep.subr.bf16.mxu0 0
        %1435 = vmatpush1.bf16.msra.mxu0 0
        %1436 = vmatprep.subr.bf16.mxu0 0
        %1437 = vmatpush1.bf16.msra.mxu0 0
        %1438 = vmatprep.subr.bf16.mxu0 0
        %1439 = vmatpush1.bf16.msra.mxu0 0
        %1440 = vmatprep.mubr.bf16.mxu0 0
        %1441 = vmatmul.mubr.bf16.gmra.mrb[0].mxu0 %v1403
        %v1442 = vpop.f32.mrb[0].mxu0
        %v1443 = vadd.f32 0.0, %v1442
        %v1444 = vpop.f32.mrb[0].mxu0
        %v1445 = vpop.f32.mrb[0].mxu0
        %v1446 = vpop.f32.mrb[0].mxu0
        %1447 = vdwg.mxu0
        %1449 = vrot.lane.b32.xlu0 %v1221, 8
        %v1450 = vpop.permute.xlu0 %1449
        %1453 = vrot.lane.b32.xlu0 %v1332, 16
        %v1454 = vpop.permute.xlu0 %1453
        %1457 = vrot.lane.b32.xlu0 %v1443, 24
        %v1458 = vpop.permute.xlu0 %1457
        %v1460 = vsel %vm1005, %v1107, %v1450
        %vm1461 = vcmask 130048
        %v1462 = vsel %vm1461, %v1460, %v1454
        %vm1463 = vcmask 195584
        %v1464 = vsel %vm1463, %v1462, %v1458
        %v1465 = vpack.c.bf16 %v1464, %v1464
        %v1466 = vld [vmem:[#allocation14] sm:$0xf]
        %v1467 = vld [vmem:[#allocation14 + $0x4] sm:$0xf]
        %v1468 = vld [vmem:[#allocation14 + $0x8] sm:$0xf]
        %v1469 = vld [vmem:[#allocation14 + $0xc] sm:$0xf]
        %v1470 = vld [vmem:[#allocation15] sm:$0x1]
        %v1472 = vlaneseq
        %v1473 = vshrl.u32 %v1472, 7
        %v1474 = vsub.s32 0, %v1473
        %v1475 = vrot.slane %v1470, %v1474
        %v1481 = vunpack.c.l.b16 %v1466
        %v1482 = vunpack.c.l.b16 %v1467
        %v1483 = vunpack.c.l.b16 %v1468
        %v1484 = vunpack.c.l.b16 %v1469
        %v1485 = vpack.c.b16 %v1482, %v1481
        %v1486 = vpack.c.b16 %v1484, %v1483
        %v1490 = vsel %vm758, %v1465, 0
        %1492 = vmatprep.subr.bf16.mxu0 0
        %1493 = vmatpush1.bf16.msra.mxu0 %v1485
        %1494 = vmatprep.subr.bf16.mxu0 0
        %1495 = vmatpush1.bf16.msra.mxu0 %v1486
        %1496 = vmatprep.subr.bf16.mxu0 0
        %1497 = vmatpush1.bf16.msra.mxu0 0
        %1498 = vmatprep.subr.bf16.mxu0 0
        %1499 = vmatpush1.bf16.msra.mxu0 0
        %1500 = vmatprep.subr.bf16.mxu0 0
        %1501 = vmatpush1.bf16.msra.mxu0 0
        %1502 = vmatprep.subr.bf16.mxu0 0
        %1503 = vmatpush1.bf16.msra.mxu0 0
        %1504 = vmatprep.subr.bf16.mxu0 0
        %1505 = vmatpush1.bf16.msra.mxu0 0
        %1506 = vmatprep.subr.bf16.mxu0 0
        %1507 = vmatpush1.bf16.msra.mxu0 0
        %1508 = vmatprep.subr.bf16.mxu0 0
        %1509 = vmatpush1.bf16.msra.mxu0 0
        %1510 = vmatprep.subr.bf16.mxu0 0
        %1511 = vmatpush1.bf16.msra.mxu0 0
        %1512 = vmatprep.subr.bf16.mxu0 0
        %1513 = vmatpush1.bf16.msra.mxu0 0
        %1514 = vmatprep.subr.bf16.mxu0 0
        %1515 = vmatpush1.bf16.msra.mxu0 0
        %1516 = vmatprep.subr.bf16.mxu0 0
        %1517 = vmatpush1.bf16.msra.mxu0 0
        %1518 = vmatprep.subr.bf16.mxu0 0
        %1519 = vmatpush1.bf16.msra.mxu0 0
        %1520 = vmatprep.subr.bf16.mxu0 0
        %1521 = vmatpush1.bf16.msra.mxu0 0
        %1522 = vmatprep.subr.bf16.mxu0 0
        %1523 = vmatpush1.bf16.msra.mxu0 0
        %1524 = vmatprep.mubr.bf16.mxu0 0
        %1525 = vmatmul.mubr.bf16.gmra.mrb[0].mxu0 %v1490
        %v1526 = vpop.f32.mrb[0].mxu0
        %v1527 = vadd.f32 %v1475, %v1526
        %v1528 = vpop.f32.mrb[0].mxu0
        %v1529 = vpop.f32.mrb[0].mxu0
        %v1530 = vpop.f32.mrb[0].mxu0
        %1531 = vdwg.mxu0
        %v1532 = vadd.f32 %v755, %v1527
        %v1533 = vld [vmem:[#allocation17] sm:$0x1]
        %v1534 = vmul.f32 %v1532, %v1532
        %v1535 = vsel %vm758, %v1534, 0.0
        %1536 = vadd.xlane.f32.xlu0 %v1535
        %v1537 = vpop.xlane.xlu0 %1536
        %v1538 = vmul.f32 %v1537, %v762
        %v1539 = vadd.f32 %v1538, 1e-05
        %v1540 = vrsqrt.pop %v1539
        %v1541 = vmul.f32 %v1532, %v1540
        %v1543 = vlaneseq
        %v1544 = vshrl.u32 %v1543, 7
        %v1545 = vsub.s32 0, %v1544
        %v1546 = vrot.slane %v1533, %v1545
        %v1548 = vmul.f32 %v1541, %v1546
        %v1549 = vpack.c.bf16 %v1548, %v1548
        %v1550 = vld [vmem:[#allocation18] sm:$0xf]
        %v1551 = vld [vmem:[#allocation18 + $0x4] sm:$0xf]
        %v1552 = vld [vmem:[#allocation18 + $0x8] sm:$0xf]
        %v1553 = vld [vmem:[#allocation18 + $0xc] sm:$0xf]
        %v1554 = vld [vmem:[#allocation20] sm:$0x1]
        %v1556 = vlaneseq
        %v1557 = vshrl.u32 %v1556, 7
        %v1558 = vsub.s32 0, %v1557
        %v1559 = vrot.slane %v1554, %v1558
        %v1565 = vunpack.c.l.b16 %v1550
        %v1566 = vunpack.c.l.b16 %v1551
        %v1567 = vunpack.c.l.b16 %v1552
        %v1568 = vunpack.c.l.b16 %v1553
        %v1569 = vpack.c.b16 %v1566, %v1565
        %v1570 = vpack.c.b16 %v1568, %v1567
        %v1574 = vsel %vm758, %v1549, 0
        %1576 = vmatprep.subr.bf16.mxu0 0
        %1577 = vmatpush1.bf16.msra.mxu0 %v1569
        %1578 = vmatprep.subr.bf16.mxu0 0
        %1579 = vmatpush1.bf16.msra.mxu0 %v1570
        %1580 = vmatprep.subr.bf16.mxu0 0
        %1581 = vmatpush1.bf16.msra.mxu0 0
        %1582 = vmatprep.subr.bf16.mxu0 0
        %1583 = vmatpush1.bf16.msra.mxu0 0
        %1584 = vmatprep.subr.bf16.mxu0 0
        %1585 = vmatpush1.bf16.msra.mxu0 0
        %1586 = vmatprep.subr.bf16.mxu0 0
        %1587 = vmatpush1.bf16.msra.mxu0 0
        %1588 = vmatprep.subr.bf16.mxu0 0
        %1589 = vmatpush1.bf16.msra.mxu0 0
        %1590 = vmatprep.subr.bf16.mxu0 0
        %1591 = vmatpush1.bf16.msra.mxu0 0
        %1592 = vmatprep.subr.bf16.mxu0 0
        %1593 = vmatpush1.bf16.msra.mxu0 0
        %1594 = vmatprep.subr.bf16.mxu0 0
        %1595 = vmatpush1.bf16.msra.mxu0 0
        %1596 = vmatprep.subr.bf16.mxu0 0
        %1597 = vmatpush1.bf16.msra.mxu0 0
        %1598 = vmatprep.subr.bf16.mxu0 0
        %1599 = vmatpush1.bf16.msra.mxu0 0
        %1600 = vmatprep.subr.bf16.mxu0 0
        %1601 = vmatpush1.bf16.msra.mxu0 0
        %1602 = vmatprep.subr.bf16.mxu0 0
        %1603 = vmatpush1.bf16.msra.mxu0 0
        %1604 = vmatprep.subr.bf16.mxu0 0
        %1605 = vmatpush1.bf16.msra.mxu0 0
        %1606 = vmatprep.subr.bf16.mxu0 0
        %1607 = vmatpush1.bf16.msra.mxu0 0
        %1608 = vmatprep.mubr.bf16.mxu0 0
        %1609 = vmatmul.mubr.bf16.gmra.mrb[0].mxu0 %v1574
        %v1610 = vpop.f32.mrb[0].mxu0
        %v1611 = vadd.f32 %v1559, %v1610
        %v1612 = vpop.f32.mrb[0].mxu0
        %v1613 = vpop.f32.mrb[0].mxu0
        %v1614 = vpop.f32.mrb[0].mxu0
        %1615 = vdwg.mxu0
        %v1616 = vpack.c.bf16 %v1611, %v1611
        %1617 = vst.msk [vmem:[#allocation2] sm:$0xff] %vm758, 0.0
        $region145: #{tpu_custom_call.1} parent=91
          #allocation25 [shape = 'u8[65536]{0}', space=vmem, size = 0x10000, scoped, tag = 'scoped memory for tpu_custom_call.1']
          #allocation26 [shape = 'u8[1024]{0}', space=vmem, size = 0x400, scoped, tag = 'scoped memory for tpu_custom_call.1']
          #allocation27 [shape = 'u8[32768]{0}', space=vmem, size = 0x8000, scoped, tag = 'scoped memory for tpu_custom_call.1']
          $region146: #{tpu_custom_call.1} parent=145
            #allocation28 [shape = 's32[1]{0}', space=sflag, size = 0x4, scoped, tag = 'scoped memory for tpu_custom_call.1']
            %p1619 = scmp.lt.u32.totalorder 128, 8
            %p1620 = pneg %p1619
            // Predicated region
            $region147: #{tpu_custom_call.1} parent=146 // pred_check
              _
            $region148: #{tpu_custom_call.1} parent=146 // pred_check_branch
              %1622 = sbr.rel (%p1619) target = $region150
            $region149: #{tpu_custom_call.1} parent=146 // pred_region
              %s1637 = sand.u32 128, 7
              %p1638 = scmp.eq.s32.totalorder %s1637, 0
              // Predicated region
              $region162: #{tpu_custom_call.1} parent=149 // pred_check
                %p1639 = pneg %p1638
              $region163: #{tpu_custom_call.1} parent=149 // pred_check_branch
                %1641 = sbr.rel (%p1639) target = $region165
              $region164: #{tpu_custom_call.1} parent=149 // pred_region
                loop: start=0, step=1, limit=1
                $region166: #{tpu_custom_call.1} parent=164 // loop_pre_header
                  _
                $region167: #{tpu_custom_call.1} parent=164 // loop_header
                  %s1643 = sphi 0, %s1647
                  %p1644 = scmp.ge.s32.totalorder %s1643, 1
                  %s1648 = sphi %s18, %s18
                  %s1649 = sphi [#allocation25], [#allocation25]
                $region168: #{tpu_custom_call.1} parent=164 // loop_header_branch
                  %1646 = sbr.rel (%p1644) target = $region172
                $region169: #{tpu_custom_call.1} parent=164 // loop_body
                  %v1650 = vld [vmem:[%s1648] sm:$0xff]
                  %1651 = vst [vmem:[%s1649] sm:$0xff] %v1650
                  %v1652 = vld [vmem:[%s1648 + $0x8] sm:$0xff]
                  %1653 = vst [vmem:[%s1649 + $0x8] sm:$0xff] %v1652
                  %v1654 = vld [vmem:[%s1648 + $0x10] sm:$0xff]
                  %1655 = vst [vmem:[%s1649 + $0x10] sm:$0xff] %v1654
                  %v1656 = vld [vmem:[%s1648 + $0x18] sm:$0xff]
                  %1657 = vst [vmem:[%s1649 + $0x18] sm:$0xff] %v1656
                  %v1658 = vld [vmem:[%s1648 + $0x20] sm:$0xff]
                  %1659 = vst [vmem:[%s1649 + $0x20] sm:$0xff] %v1658
                  %v1660 = vld [vmem:[%s1648 + $0x28] sm:$0xff]
                  %1661 = vst [vmem:[%s1649 + $0x28] sm:$0xff] %v1660
                  %v1662 = vld [vmem:[%s1648 + $0x30] sm:$0xff]
                  %1663 = vst [vmem:[%s1649 + $0x30] sm:$0xff] %v1662
                  %v1664 = vld [vmem:[%s1648 + $0x38] sm:$0xff]
                  %1665 = vst [vmem:[%s1649 + $0x38] sm:$0xff] %v1664
                  %v1666 = vld [vmem:[%s1648 + $0x40] sm:$0xff]
                  %1667 = vst [vmem:[%s1649 + $0x40] sm:$0xff] %v1666
                  %v1668 = vld [vmem:[%s1648 + $0x48] sm:$0xff]
                  %1669 = vst [vmem:[%s1649 + $0x48] sm:$0xff] %v1668
                  %v1670 = vld [vmem:[%s1648 + $0x50] sm:$0xff]
                  %1671 = vst [vmem:[%s1649 + $0x50] sm:$0xff] %v1670
                  %v1672 = vld [vmem:[%s1648 + $0x58] sm:$0xff]
                  %1673 = vst [vmem:[%s1649 + $0x58] sm:$0xff] %v1672
                  %v1674 = vld [vmem:[%s1648 + $0x60] sm:$0xff]
                  %1675 = vst [vmem:[%s1649 + $0x60] sm:$0xff] %v1674
                  %v1676 = vld [vmem:[%s1648 + $0x68] sm:$0xff]
                  %1677 = vst [vmem:[%s1649 + $0x68] sm:$0xff] %v1676
                  %v1678 = vld [vmem:[%s1648 + $0x70] sm:$0xff]
                  %1679 = vst [vmem:[%s1649 + $0x70] sm:$0xff] %v1678
                  %v1680 = vld [vmem:[%s1648 + $0x78] sm:$0xff]
                  %1681 = vst [vmem:[%s1649 + $0x78] sm:$0xff] %v1680
                $region170: #{tpu_custom_call.1} parent=164 // loop_footer
                  %s1647 = sadd.s32 1, %s1643
                $region171: #{tpu_custom_call.1} parent=164 // loop_footer_branch
                  %1642 = sbr.rel target = $region167
                $region172: #{tpu_custom_call.1} parent=164 // loop_exit
                  _
              $region165: #{tpu_custom_call.1} parent=149 // pred_fallthru
                _
              %p1682 = pneg %p1638
              // Predicated region
              $region173: #{tpu_custom_call.1} parent=149 // pred_check
                _
              $region174: #{tpu_custom_call.1} parent=149 // pred_check_branch
                %1684 = sbr.rel (%p1638) target = $region176
              $region175: #{tpu_custom_call.1} parent=149 // pred_region
                %s1685 = sand.u32 128, 7
              $region176: #{tpu_custom_call.1} parent=149 // pred_fallthru
                _
            $region150: #{tpu_custom_call.1} parent=146 // pred_fallthru
              _
            // Predicated region
            $region151: #{tpu_custom_call.1} parent=146 // pred_check
              %p1623 = pneg %p1619
            $region152: #{tpu_custom_call.1} parent=146 // pred_check_branch
              %1625 = sbr.rel (%p1623) target = $region154
            $region153: #{tpu_custom_call.1} parent=146 // pred_region
              %s1626 = sshllo.u32 0, 128
              loop: start=0, step=1, limit=1
              $region155: #{tpu_custom_call.1} parent=153 // loop_pre_header
                _
              $region156: #{tpu_custom_call.1} parent=153 // loop_header
                %s1628 = sphi 0, %s1632
                %p1629 = scmp.ge.s32.totalorder %s1628, 1
                %s1633 = sphi %s18, %s18
                %s1634 = sphi [#allocation25], [#allocation25]
              $region157: #{tpu_custom_call.1} parent=153 // loop_header_branch
                %1631 = sbr.rel (%p1629) target = $region161
              $region158: #{tpu_custom_call.1} parent=153 // loop_body
                %v1635 = vld [vmem:[%s1633] sm:%s1626]
                %1636 = vst [vmem:[%s1634] sm:%s1626] %v1635
              $region159: #{tpu_custom_call.1} parent=153 // loop_footer
                %s1632 = sadd.s32 1, %s1628
              $region160: #{tpu_custom_call.1} parent=153 // loop_footer_branch
                %1627 = sbr.rel target = $region156
              $region161: #{tpu_custom_call.1} parent=153 // loop_exit
                _
            $region154: #{tpu_custom_call.1} parent=146 // pred_fallthru
              _
            // Predicated region
            $region177: #{tpu_custom_call.1} parent=146 // pred_check
              _
            $region178: #{tpu_custom_call.1} parent=146 // pred_check_branch
              %1688 = sbr.rel (0) target = $region180
            $region179: #{tpu_custom_call.1} parent=146 // pred_region
              %1689 = vsyncadd [#allocation28], 2048
            $region180: #{tpu_custom_call.1} parent=146 // pred_fallthru
              _
            %s1690 = smul.u32 4, 2
            %s1691 = smul.u32 %s1690, 16
            %s1692 = smul.u32 %s1691, 1
            %s1693 = sshll.u32 %s1692, 4
            %1694 = dma.done [#allocation28], %s1693
          $region181: #{tpu_custom_call.1} parent=145
            #allocation30 [shape = 's32[1]{0}', space=sflag, size = 0x4, scoped, tag = 'scoped memory for tpu_custom_call.1']
            %p1696 = scmp.lt.u32.totalorder 2, 8
            %p1697 = pneg %p1696
            // Predicated region
            $region182: #{tpu_custom_call.1} parent=181 // pred_check
              _
            $region183: #{tpu_custom_call.1} parent=181 // pred_check_branch
              %1699 = sbr.rel (%p1696) target = $region185
            $region184: #{tpu_custom_call.1} parent=181 // pred_region
              %s1714 = sand.u32 2, 7
              %p1715 = scmp.eq.s32.totalorder %s1714, 0
              %p1716 = pneg %p1715
              // Predicated region
              $region197: #{tpu_custom_call.1} parent=184 // pred_check
                _
              $region198: #{tpu_custom_call.1} parent=184 // pred_check_branch
                %1718 = sbr.rel (%p1715) target = $region200
              $region199: #{tpu_custom_call.1} parent=184 // pred_region
                %s1719 = sand.u32 2, 7
                %s1720 = ssub.s32 2, %s1719
                %s1721 = scalar_lea.vmem %s19, %s1720
                %s1722 = ssub.s32 2, %s1719
                %s1723 = scalar_lea.vmem [#allocation26], %s1722
                %s1724 = sshllo.u32 0, %s1719
                loop: start=0, step=1, limit=1
                $region201: #{tpu_custom_call.1} parent=199 // loop_pre_header
                  _
                $region202: #{tpu_custom_call.1} parent=199 // loop_header
                  %s1726 = sphi 0, %s1730
                  %p1727 = scmp.ge.s32.totalorder %s1726, 1
                  %s1731 = sphi %s1721, %s1721
                  %s1732 = sphi %s1723, %s1723
                $region203: #{tpu_custom_call.1} parent=199 // loop_header_branch
                  %1729 = sbr.rel (%p1727) target = $region207
                $region204: #{tpu_custom_call.1} parent=199 // loop_body
                  %v1733 = vld [vmem:[%s1731] sm:%s1724]
                  %1734 = vst [vmem:[%s1732] sm:%s1724] %v1733
                $region205: #{tpu_custom_call.1} parent=199 // loop_footer
                  %s1730 = sadd.s32 1, %s1726
                $region206: #{tpu_custom_call.1} parent=199 // loop_footer_branch
                  %1725 = sbr.rel target = $region202
                $region207: #{tpu_custom_call.1} parent=199 // loop_exit
                  _
              $region200: #{tpu_custom_call.1} parent=184 // pred_fallthru
                _
            $region185: #{tpu_custom_call.1} parent=181 // pred_fallthru
              _
            // Predicated region
            $region186: #{tpu_custom_call.1} parent=181 // pred_check
              %p1700 = pneg %p1696
            $region187: #{tpu_custom_call.1} parent=181 // pred_check_branch
              %1702 = sbr.rel (%p1700) target = $region189
            $region188: #{tpu_custom_call.1} parent=181 // pred_region
              %s1703 = sshllo.u32 0, 2
              loop: start=0, step=1, limit=1
              $region190: #{tpu_custom_call.1} parent=188 // loop_pre_header
                _
              $region191: #{tpu_custom_call.1} parent=188 // loop_header
                %s1705 = sphi 0, %s1709
                %p1706 = scmp.ge.s32.totalorder %s1705, 1
                %s1710 = sphi %s19, %s19
                %s1711 = sphi [#allocation26], [#allocation26]
              $region192: #{tpu_custom_call.1} parent=188 // loop_header_branch
                %1708 = sbr.rel (%p1706) target = $region196
              $region193: #{tpu_custom_call.1} parent=188 // loop_body
                %v1712 = vld [vmem:[%s1710] sm:%s1703]
                %1713 = vst [vmem:[%s1711] sm:%s1703] %v1712
              $region194: #{tpu_custom_call.1} parent=188 // loop_footer
                %s1709 = sadd.s32 1, %s1705
              $region195: #{tpu_custom_call.1} parent=188 // loop_footer_branch
                %1704 = sbr.rel target = $region191
              $region196: #{tpu_custom_call.1} parent=188 // loop_exit
                _
            $region189: #{tpu_custom_call.1} parent=181 // pred_fallthru
              _
            // Predicated region
            $region208: #{tpu_custom_call.1} parent=181 // pred_check
              _
            $region209: #{tpu_custom_call.1} parent=181 // pred_check_branch
              %1737 = sbr.rel (0) target = $region211
            $region210: #{tpu_custom_call.1} parent=181 // pred_region
              %1738 = vsyncadd [#allocation30], 32
            $region211: #{tpu_custom_call.1} parent=181 // pred_fallthru
              _
            %s1739 = smul.u32 2, 1
            %s1740 = sshll.u32 %s1739, 4
            %1741 = dma.done [#allocation30], %s1740
          $region212: #{tpu_custom_call.1} parent=145
            #allocation32 [shape = 's32[1]{0}', space=sflag, size = 0x4, scoped, tag = 'scoped memory for tpu_custom_call.1']
            %p1743 = scmp.lt.u32.totalorder 64, 8
            %p1744 = pneg %p1743
            // Predicated region
            $region213: #{tpu_custom_call.1} parent=212 // pred_check
              _
            $region214: #{tpu_custom_call.1} parent=212 // pred_check_branch
              %1746 = sbr.rel (%p1743) target = $region216
            $region215: #{tpu_custom_call.1} parent=212 // pred_region
              %s1761 = sand.u32 64, 7
              %p1762 = scmp.eq.s32.totalorder %s1761, 0
              // Predicated region
              $region228: #{tpu_custom_call.1} parent=215 // pred_check
                %p1763 = pneg %p1762
              $region229: #{tpu_custom_call.1} parent=215 // pred_check_branch
                %1765 = sbr.rel (%p1763) target = $region231
              $region230: #{tpu_custom_call.1} parent=215 // pred_region
                loop: start=0, step=1, limit=1
                $region232: #{tpu_custom_call.1} parent=230 // loop_pre_header
                  _
                $region233: #{tpu_custom_call.1} parent=230 // loop_header
                  %s1767 = sphi 0, %s1771
                  %p1768 = scmp.ge.s32.totalorder %s1767, 1
                  %s1772 = sphi %s20, %s20
                  %s1773 = sphi [#allocation27], [#allocation27]
                $region234: #{tpu_custom_call.1} parent=230 // loop_header_branch
                  %1770 = sbr.rel (%p1768) target = $region238
                $region235: #{tpu_custom_call.1} parent=230 // loop_body
                  %v1774 = vld [vmem:[%s1772] sm:$0xff]
                  %1775 = vst [vmem:[%s1773] sm:$0xff] %v1774
                  %v1776 = vld [vmem:[%s1772 + $0x8] sm:$0xff]
                  %1777 = vst [vmem:[%s1773 + $0x8] sm:$0xff] %v1776
                  %v1778 = vld [vmem:[%s1772 + $0x10] sm:$0xff]
                  %1779 = vst [vmem:[%s1773 + $0x10] sm:$0xff] %v1778
                  %v1780 = vld [vmem:[%s1772 + $0x18] sm:$0xff]
                  %1781 = vst [vmem:[%s1773 + $0x18] sm:$0xff] %v1780
                  %v1782 = vld [vmem:[%s1772 + $0x20] sm:$0xff]
                  %1783 = vst [vmem:[%s1773 + $0x20] sm:$0xff] %v1782
                  %v1784 = vld [vmem:[%s1772 + $0x28] sm:$0xff]
                  %1785 = vst [vmem:[%s1773 + $0x28] sm:$0xff] %v1784
                  %v1786 = vld [vmem:[%s1772 + $0x30] sm:$0xff]
                  %1787 = vst [vmem:[%s1773 + $0x30] sm:$0xff] %v1786
                  %v1788 = vld [vmem:[%s1772 + $0x38] sm:$0xff]
                  %1789 = vst [vmem:[%s1773 + $0x38] sm:$0xff] %v1788
                $region236: #{tpu_custom_call.1} parent=230 // loop_footer
                  %s1771 = sadd.s32 1, %s1767
                $region237: #{tpu_custom_call.1} parent=230 // loop_footer_branch
                  %1766 = sbr.rel target = $region233
                $region238: #{tpu_custom_call.1} parent=230 // loop_exit
                  _
              $region231: #{tpu_custom_call.1} parent=215 // pred_fallthru
                _
              %p1790 = pneg %p1762
              // Predicated region
              $region239: #{tpu_custom_call.1} parent=215 // pred_check
                _
              $region240: #{tpu_custom_call.1} parent=215 // pred_check_branch
                %1792 = sbr.rel (%p1762) target = $region242
              $region241: #{tpu_custom_call.1} parent=215 // pred_region
                %s1793 = sand.u32 64, 7
              $region242: #{tpu_custom_call.1} parent=215 // pred_fallthru
                _
            $region216: #{tpu_custom_call.1} parent=212 // pred_fallthru
              _
            // Predicated region
            $region217: #{tpu_custom_call.1} parent=212 // pred_check
              %p1747 = pneg %p1743
            $region218: #{tpu_custom_call.1} parent=212 // pred_check_branch
              %1749 = sbr.rel (%p1747) target = $region220
            $region219: #{tpu_custom_call.1} parent=212 // pred_region
              %s1750 = sshllo.u32 0, 64
              loop: start=0, step=1, limit=1
              $region221: #{tpu_custom_call.1} parent=219 // loop_pre_header
                _
              $region222: #{tpu_custom_call.1} parent=219 // loop_header
                %s1752 = sphi 0, %s1756
                %p1753 = scmp.ge.s32.totalorder %s1752, 1
                %s1757 = sphi %s20, %s20
                %s1758 = sphi [#allocation27], [#allocation27]
              $region223: #{tpu_custom_call.1} parent=219 // loop_header_branch
                %1755 = sbr.rel (%p1753) target = $region227
              $region224: #{tpu_custom_call.1} parent=219 // loop_body
                %v1759 = vld [vmem:[%s1757] sm:%s1750]
                %1760 = vst [vmem:[%s1758] sm:%s1750] %v1759
              $region225: #{tpu_custom_call.1} parent=219 // loop_footer
                %s1756 = sadd.s32 1, %s1752
              $region226: #{tpu_custom_call.1} parent=219 // loop_footer_branch
                %1751 = sbr.rel target = $region222
              $region227: #{tpu_custom_call.1} parent=219 // loop_exit
                _
            $region220: #{tpu_custom_call.1} parent=212 // pred_fallthru
              _
            // Predicated region
            $region243: #{tpu_custom_call.1} parent=212 // pred_check
              _
            $region244: #{tpu_custom_call.1} parent=212 // pred_check_branch
              %1796 = sbr.rel (0) target = $region246
            $region245: #{tpu_custom_call.1} parent=212 // pred_region
              %1797 = vsyncadd [#allocation32], 1024
            $region246: #{tpu_custom_call.1} parent=212 // pred_fallthru
              _
            %s1798 = smul.u32 4, 16
            %s1799 = smul.u32 %s1798, 1
            %s1800 = sshll.u32 %s1799, 4
            %1801 = dma.done [#allocation32], %s1800
          %v1802 = vld [vmem:[#allocation26] sm:$0x3]
          %v1803 = vld [vmem:[#allocation25] sm:$0xff]
          %v1804 = vld [vmem:[#allocation25 + $0x8] sm:$0xff]
          %v1805 = vld [vmem:[#allocation25 + $0x10] sm:$0xff]
          %v1806 = vld [vmem:[#allocation25 + $0x18] sm:$0xff]
          %v1807 = vld [vmem:[#allocation25 + $0x20] sm:$0xff]
          %v1808 = vld [vmem:[#allocation25 + $0x28] sm:$0xff]
          %v1809 = vld [vmem:[#allocation25 + $0x30] sm:$0xff]
          %v1810 = vld [vmem:[#allocation25 + $0x38] sm:$0xff]
          %v1811 = vlaneseq
          %v1812 = vshrl.u32 %v1811, 7
          %v1813 = vsub.s32 0, %v1812
          %v1814 = vrot.slane %v1802, %v1813
          %1815 = vmatprep.subr.bf16.mxu0 0
          %1816 = vmatpush1.bf16.msra.mxu0 %v1803
          %1817 = vmatprep.subr.bf16.mxu0 0
          %1818 = vmatpush1.bf16.msra.mxu0 %v1804
          %1819 = vmatprep.subr.bf16.mxu0 0
          %1820 = vmatpush1.bf16.msra.mxu0 %v1805
          %1821 = vmatprep.subr.bf16.mxu0 0
          %1822 = vmatpush1.bf16.msra.mxu0 %v1806
          %1823 = vmatprep.subr.bf16.mxu0 0
          %1824 = vmatpush1.bf16.msra.mxu0 %v1807
          %1825 = vmatprep.subr.bf16.mxu0 0
          %1826 = vmatpush1.bf16.msra.mxu0 %v1808
          %1827 = vmatprep.subr.bf16.mxu0 0
          %1828 = vmatpush1.bf16.msra.mxu0 %v1809
          %1829 = vmatprep.subr.bf16.mxu0 0
          %1830 = vmatpush1.bf16.msra.mxu0 %v1810
          %1831 = vmatprep.subr.bf16.mxu0 0
          %1832 = vmatpush1.bf16.msra.mxu0 0
          %1833 = vmatprep.subr.bf16.mxu0 0
          %1834 = vmatpush1.bf16.msra.mxu0 0
          %1835 = vmatprep.subr.bf16.mxu0 0
          %1836 = vmatpush1.bf16.msra.mxu0 0
          %1837 = vmatprep.subr.bf16.mxu0 0
          %1838 = vmatpush1.bf16.msra.mxu0 0
          %1839 = vmatprep.subr.bf16.mxu0 0
          %1840 = vmatpush1.bf16.msra.mxu0 0
          %1841 = vmatprep.subr.bf16.mxu0 0
          %1842 = vmatpush1.bf16.msra.mxu0 0
          %1843 = vmatprep.subr.bf16.mxu0 0
          %1844 = vmatpush1.bf16.msra.mxu0 0
          %1845 = vmatprep.subr.bf16.mxu0 0
          %1846 = vmatpush1.bf16.msra.mxu0 0
          %1847 = vmatprep.mubr.bf16.mxu0 0
          %1848 = vmatmul.mubr.bf16.gmra.mrb[0].mxu0 %v1616
          %v1849 = vpop.f32.mrb[0].mxu0
          %v1850 = vadd.f32 %v1814, %v1849
          %v1851 = vpop.f32.mrb[0].mxu0
          %v1852 = vpop.f32.mrb[0].mxu0
          %v1853 = vpop.f32.mrb[0].mxu0
          %1854 = vdwg.mxu0
          %s1855 = scalar_lea.vmem [#allocation25], 64
          %v1856 = vld [vmem:[%s1855] sm:$0xff]
          %v1857 = vld [vmem:[%s1855 + $0x8] sm:$0xff]
          %v1858 = vld [vmem:[%s1855 + $0x10] sm:$0xff]
          %v1859 = vld [vmem:[%s1855 + $0x18] sm:$0xff]
          %v1860 = vld [vmem:[%s1855 + $0x20] sm:$0xff]
          %v1861 = vld [vmem:[%s1855 + $0x28] sm:$0xff]
          %v1862 = vld [vmem:[%s1855 + $0x30] sm:$0xff]
          %v1863 = vld [vmem:[%s1855 + $0x38] sm:$0xff]
          %v1864 = vlaneseq
          %v1865 = vshrl.u32 %v1864, 7
          %v1866 = vsub.s32 1, %v1865
          %v1867 = vrot.slane %v1802, %v1866
          %1868 = vmatprep.subr.bf16.mxu0 0
          %1869 = vmatpush1.bf16.msra.mxu0 %v1856
          %1870 = vmatprep.subr.bf16.mxu0 0
          %1871 = vmatpush1.bf16.msra.mxu0 %v1857
          %1872 = vmatprep.subr.bf16.mxu0 0
          %1873 = vmatpush1.bf16.msra.mxu0 %v1858
          %1874 = vmatprep.subr.bf16.mxu0 0
          %1875 = vmatpush1.bf16.msra.mxu0 %v1859
          %1876 = vmatprep.subr.bf16.mxu0 0
          %1877 = vmatpush1.bf16.msra.mxu0 %v1860
          %1878 = vmatprep.subr.bf16.mxu0 0
          %1879 = vmatpush1.bf16.msra.mxu0 %v1861
          %1880 = vmatprep.subr.bf16.mxu0 0
          %1881 = vmatpush1.bf16.msra.mxu0 %v1862
          %1882 = vmatprep.subr.bf16.mxu0 0
          %1883 = vmatpush1.bf16.msra.mxu0 %v1863
          %1884 = vmatprep.subr.bf16.mxu0 0
          %1885 = vmatpush1.bf16.msra.mxu0 0
          %1886 = vmatprep.subr.bf16.mxu0 0
          %1887 = vmatpush1.bf16.msra.mxu0 0
          %1888 = vmatprep.subr.bf16.mxu0 0
          %1889 = vmatpush1.bf16.msra.mxu0 0
          %1890 = vmatprep.subr.bf16.mxu0 0
          %1891 = vmatpush1.bf16.msra.mxu0 0
          %1892 = vmatprep.subr.bf16.mxu0 0
          %1893 = vmatpush1.bf16.msra.mxu0 0
          %1894 = vmatprep.subr.bf16.mxu0 0
          %1895 = vmatpush1.bf16.msra.mxu0 0
          %1896 = vmatprep.subr.bf16.mxu0 0
          %1897 = vmatpush1.bf16.msra.mxu0 0
          %1898 = vmatprep.subr.bf16.mxu0 0
          %1899 = vmatpush1.bf16.msra.mxu0 0
          %1900 = vmatprep.mubr.bf16.mxu0 0
          %1901 = vmatmul.mubr.bf16.gmra.mrb[0].mxu0 %v1616
          %v1902 = vpop.f32.mrb[0].mxu0
          %v1903 = vadd.f32 %v1867, %v1902
          %v1904 = vpop.f32.mrb[0].mxu0
          %v1905 = vpop.f32.mrb[0].mxu0
          %v1906 = vpop.f32.mrb[0].mxu0
          %1907 = vdwg.mxu0
          %v1908 = vxor.u32 %v1850, 2147483648
          %v1909 = vmul.f32 %v1908, 1.442695
          %v1910 = vpow.pop %v1909
          %v1911 = vadd.f32 %v1910, 1.0
          %v1912 = vrcp.pop %v1911
          %v1913 = vmul.f32 1.0, %v1912
          %v1914 = vmul.f32 %v1850, %v1913
          %v1915 = vmul.f32 %v1914, %v1903
          %v1916 = vld [vmem:[#allocation2] sm:$0xff]
          %v1917 = vpack.c.bf16 %v1915, %v1915
          %v1918 = vld [vmem:[#allocation27] sm:$0xff]
          %v1919 = vld [vmem:[#allocation27 + $0x8] sm:$0xff]
          %v1920 = vld [vmem:[#allocation27 + $0x10] sm:$0xff]
          %v1921 = vld [vmem:[#allocation27 + $0x18] sm:$0xff]
          %v1922 = vld [vmem:[#allocation27 + $0x20] sm:$0xff]
          %v1923 = vld [vmem:[#allocation27 + $0x28] sm:$0xff]
          %v1924 = vld [vmem:[#allocation27 + $0x30] sm:$0xff]
          %v1925 = vld [vmem:[#allocation27 + $0x38] sm:$0xff]
          %1926 = vmatprep.subr.bf16.mxu0 0
          %1927 = vmatpush1.bf16.msra.mxu0 %v1918
          %1928 = vmatprep.subr.bf16.mxu0 0
          %1929 = vmatpush1.bf16.msra.mxu0 %v1919
          %1930 = vmatprep.subr.bf16.mxu0 0
          %1931 = vmatpush1.bf16.msra.mxu0 %v1920
          %1932 = vmatprep.subr.bf16.mxu0 0
          %1933 = vmatpush1.bf16.msra.mxu0 %v1921
          %1934 = vmatprep.subr.bf16.mxu0 0
          %1935 = vmatpush1.bf16.msra.mxu0 %v1922
          %1936 = vmatprep.subr.bf16.mxu0 0
          %1937 = vmatpush1.bf16.msra.mxu0 %v1923
          %1938 = vmatprep.subr.bf16.mxu0 0
          %1939 = vmatpush1.bf16.msra.mxu0 %v1924
          %1940 = vmatprep.subr.bf16.mxu0 0
          %1941 = vmatpush1.bf16.msra.mxu0 %v1925
          %1942 = vmatprep.subr.bf16.mxu0 0
          %1943 = vmatpush1.bf16.msra.mxu0 0
          %1944 = vmatprep.subr.bf16.mxu0 0
          %1945 = vmatpush1.bf16.msra.mxu0 0
          %1946 = vmatprep.subr.bf16.mxu0 0
          %1947 = vmatpush1.bf16.msra.mxu0 0
          %1948 = vmatprep.subr.bf16.mxu0 0
          %1949 = vmatpush1.bf16.msra.mxu0 0
          %1950 = vmatprep.subr.bf16.mxu0 0
          %1951 = vmatpush1.bf16.msra.mxu0 0
          %1952 = vmatprep.subr.bf16.mxu0 0
          %1953 = vmatpush1.bf16.msra.mxu0 0
          %1954 = vmatprep.subr.bf16.mxu0 0
          %1955 = vmatpush1.bf16.msra.mxu0 0
          %1956 = vmatprep.subr.bf16.mxu0 0
          %1957 = vmatpush1.bf16.msra.mxu0 0
          %1958 = vmatprep.mubr.bf16.mxu0 0
          %1959 = vmatmul.mubr.bf16.gmra.mrb[0].mxu0 %v1917
          %v1960 = vpop.f32.mrb[0].mxu0
          %v1961 = vadd.f32 0.0, %v1960
          %v1962 = vpop.f32.mrb[0].mxu0
          %v1963 = vpop.f32.mrb[0].mxu0
          %v1964 = vpop.f32.mrb[0].mxu0
          %1965 = vdwg.mxu0
          %v1966 = vadd.f32 %v1916, %v1961
          %1967 = vst.msk [vmem:[#allocation2] sm:$0xff] %vm758, %v1966
        %v1968 = vld [vmem:[#allocation2] sm:$0xff]
        %v1969 = vld [vmem:[#allocation21] sm:$0x1]
        %v1971 = vlaneseq
        %v1972 = vshrl.u32 %v1971, 7
        %v1973 = vsub.s32 0, %v1972
        %v1974 = vrot.slane %v1969, %v1973
        %v1976 = vadd.f32 %v1968, %v1974
        %v1977 = vld [vmem:[#allocation23] sm:$0x1]
        %v1978 = vmul.f32 %v1976, %v1976
        %v1979 = vsel %vm758, %v1978, 0.0
        %1980 = vadd.xlane.f32.xlu0 %v1979
        %v1981 = vpop.xlane.xlu0 %1980
        %v1982 = vmul.f32 %v1981, %v762
        %v1983 = vadd.f32 %v1982, 1e-05
        %v1984 = vrsqrt.pop %v1983
        %v1985 = vmul.f32 %v1976, %v1984
        %v1987 = vlaneseq
        %v1988 = vshrl.u32 %v1987, 7
        %v1989 = vsub.s32 0, %v1988
        %v1990 = vrot.slane %v1977, %v1989
        %v1992 = vmul.f32 %v1985, %v1990
        %v1993 = vadd.f32 %v1532, %v1992
        %1994 = vst.msk [vmem:[%s753] sm:$0xff] %vm758, %v1993
        %s1995 = sand.u32 %s435, 1
        %s1996 = scalar_lea.sflag [#allocation5], %s1995
        %s1997 = sand.u32 %s435, 1
        %s1998 = smul.addr %s1997, 8
        %s1999 = scalar_lea.vmem [#allocation24], %s1998
        // Predicated region
        $region247: #{tpu_custom_call.1} parent=91 // pred_check
          %p2000 = pneg %p445
        $region248: #{tpu_custom_call.1} parent=91 // pred_check_branch
          %2002 = sbr.rel (%p2000) target = $region250
        $region249: #{tpu_custom_call.1} parent=91 // pred_region
          %s2004 = ssub.s32 128, 128
          %2005 = vsyncadd %s1996, %s2004
          %s2006 = smul.addr %s44, 128
          %s2007 = scalar_lea.hbm %s21, %s2006
          %s2009 = sshll.u32 %s1999, 4
          %s2010 = int_to_ptr.vmem [resolvable:$true] %s2009
          %2012 = dma.vmem_to_hbm [thread:$0]  %s2010, 128, %s2007, %s1996
        $region250: #{tpu_custom_call.1} parent=91 // pred_fallthru
          _
      $region92: #{tpu_custom_call.1} parent=5 // pred_fallthru
        _
      %p2013 = scmp.le.s32.totalorder 2, %s39
      // Predicated region
      $region251: #{tpu_custom_call.1} parent=5 // pred_check
        %p2014 = pneg %p2013
      $region252: #{tpu_custom_call.1} parent=5 // pred_check_branch
        %2016 = sbr.rel (%p2014) target = $region254
      $region253: #{tpu_custom_call.1} parent=5 // pred_region
        %s2017 = ssub.s32 %s39, 2
        // Predicated region
        $region255: #{tpu_custom_call.1} parent=253 // pred_check
          %p2018 = pneg %p451
        $region256: #{tpu_custom_call.1} parent=253 // pred_check_branch
          %2020 = sbr.rel (%p2018) target = $region258
        $region257: #{tpu_custom_call.1} parent=253 // pred_region
          %s2021 = sand.u32 %s436, 1
          %s2022 = scalar_lea.sflag [#allocation5], %s2021
          %s2023 = sand.u32 %s436, 1
          %s2024 = smul.addr %s2023, 8
          %s2025 = scalar_lea.vmem [#allocation24], %s2024
          %2026 = dma.done %s2022, 128
        $region258: #{tpu_custom_call.1} parent=253 // pred_fallthru
          _
      $region254: #{tpu_custom_call.1} parent=5 // pred_fallthru
        _
    $region6: #{tpu_custom_call.1} parent=1 // loop_footer
      %s43 = sadd.s32 1, %s39
    $region7: #{tpu_custom_call.1} parent=1 // loop_footer_branch
      %38 = sbr.rel target = $region3
    $region8: #{tpu_custom_call.1} parent=1 // loop_exit
      _
    %2027 = vsyncpa [#allocation4], 1
    %s2028 = scalar_lea.sflag [#allocation4], 1
    %2029 = vsyncpa %s2028, 1
    %2030 = vsyncpa [#allocation7], 1
    %2031 = vsyncpa [#allocation10], 1
    %2032 = vsyncpa [#allocation13], 1
    %2033 = vsyncpa [#allocation16], 1
    %2034 = vsyncpa [#allocation19], 1
    %2035 = vsyncpa [#allocation22], 1
    %2036 = vsyncpa [#allocation5], 1
    %s2037 = scalar_lea.sflag [#allocation5], 1
    %2038 = vsyncpa %s2037, 1

// kernel: tpu_custom_call.1
$region0: #{tpu_custom_call.1}
  #allocation0 [shape = 'u32[]', space=smem, size = 0x4, offset = 0x4, fixed_abs, tag = 'smem constant byte address 0x4 - core index']
  #allocation1 [shape = 'u32[144,128]{1,0:T(1,128)}', space=vmem, size = 0x12000, scoped, tag = 'internal scratch']
  #allocation2 [shape = 'f32[8,32]{1,0:T(8,128)}', space=vmem, size = 0x1000, scoped, tag = 'scratch operand']
  #allocation29 [shape = 's32[]', space=sflag, size = 0x4, offset = 0, fixed_abs, tag = 'sflag constant byte address 0x0 - dummy sync flag']
  #allocation31 [shape = 's32[]', space=sflag, size = 0x4, offset = 0, fixed_abs, tag = 'sflag constant byte address 0x0 - dummy sync flag']
  #allocation33 [shape = 's32[]', space=sflag, size = 0x4, offset = 0, fixed_abs, tag = 'sflag constant byte address 0x0 - dummy sync flag']
  %s0 = inlined_call_operand.hbm [shape: f32[16,32], index: 0, kind: input, shape index: {}]
  %s1 = inlined_call_operand.hbm [shape: f32[8,32], index: 1, kind: input, shape index: {}]
  %s2 = inlined_call_operand.vmem [shape: f32[1,32], index: 2, kind: input, shape index: {}]
  %s3 = inlined_call_operand.hbm [shape: bf16[32,32], index: 3, kind: input, shape index: {}]
  %s4 = inlined_call_operand.vmem [shape: f32[1,32], index: 4, kind: input, shape index: {}]
  %s5 = inlined_call_operand.hbm [shape: bf16[32,32], index: 5, kind: input, shape index: {}]
  %s6 = inlined_call_operand.vmem [shape: f32[1,32], index: 6, kind: input, shape index: {}]
  %s7 = inlined_call_operand.hbm [shape: bf16[32,32], index: 7, kind: input, shape index: {}]
  %s8 = inlined_call_operand.vmem [shape: f32[1,32], index: 8, kind: input, shape index: {}]
  %s9 = inlined_call_operand.vmem [shape: f32[1,32], index: 9, kind: input, shape index: {}]
  %s10 = inlined_call_operand.hbm [shape: f32[1,32], index: 10, kind: input, shape index: {}]
  %s11 = inlined_call_operand.hbm [shape: bf16[32,32], index: 11, kind: input, shape index: {}]
  %s12 = inlined_call_operand.hbm [shape: f32[1,32], index: 12, kind: input, shape index: {}]
  %s13 = inlined_call_operand.hbm [shape: f32[1,32], index: 13, kind: input, shape index: {}]
  %s14 = inlined_call_operand.hbm [shape: bf16[32,128], index: 14, kind: input, shape index: {}]
  %s15 = inlined_call_operand.hbm [shape: f32[1,128], index: 15, kind: input, shape index: {}]
  %s16 = inlined_call_operand.hbm [shape: f32[1,32], index: 16, kind: input, shape index: {}]
  %s17 = inlined_call_operand.hbm [shape: f32[1,32], index: 17, kind: input, shape index: {}]
  %s18 = inlined_call_operand.vmem [shape: bf16[2,128,128], index: 18, kind: input, shape index: {}]
  %s19 = inlined_call_operand.vmem [shape: f32[2,128], index: 19, kind: input, shape index: {}]
  %s20 = inlined_call_operand.vmem [shape: bf16[128,32], index: 20, kind: input, shape index: {}]
  %s21 = inlined_call_operand.hbm [shape: f32[16,32], index: 21, kind: output, shape index: {}]
  %s22 = sld [smem:[#allocation0]]
  $region259: #{tpu_custom_call.1} parent=0
    _
  %s24 = ssub.s32 1, %s22
  %s25 = scalar_select 0, %s24, %s22
  $region1: #{tpu_custom_call.1} parent=0
    #allocation3 [shape = 'u8[8192]{0}', space=vmem, size = 0x2000, scoped, tag = 'input window, operand 0']
    #allocation4 [shape = 's32[2]{0}', space=sflag, size = 0x8, scoped, tag = 'scoped memory for tpu_custom_call.1']
    #allocation5 [shape = 's32[2]{0}', space=sflag, size = 0x8, scoped, tag = 'scoped memory for tpu_custom_call.1']
    #allocation6 [shape = 'u8[4096]{0}', space=vmem, size = 0x1000, scoped, tag = 'input window, operand 1, single buffered']
    #allocation7 [shape = 's32[1]{0}', space=sflag, size = 0x4, scoped, tag = 'scoped memory for tpu_custom_call.1']
    #allocation8 [shape = 'u8[8192]{0}', space=vmem, size = 0x2000, scoped, tag = 'input window, operand 3, single buffered']
    #allocation9 [shape = 'u8[8192]{0}', space=vmem, size = 0x2000, scoped, tag = 'input window, operand 5, single buffered']
    #allocation10 [shape = 's32[1]{0}', space=sflag, size = 0x4, scoped, tag = 'scoped memory for tpu_custom_call.1']
    #allocation11 [shape = 'u8[8192]{0}', space=vmem, size = 0x2000, scoped, tag = 'input window, operand 7, single buffered']
    #allocation12 [shape = 'u8[512]{0}', space=vmem, size = 0x400, scoped, tag = 'input window, operand 10, single buffered']
    #allocation13 [shape = 's32[1]{0}', space=sflag, size = 0x4, scoped, tag = 'scoped memory for tpu_custom_call.1']
    #allocation14 [shape = 'u8[8192]{0}', space=vmem, size = 0x2000, scoped, tag = 'input window, operand 11, single buffered']
    #allocation15 [shape = 'u8[512]{0}', space=vmem, size = 0x400, scoped, tag = 'input window, operand 12, single buffered']
    #allocation16 [shape = 's32[1]{0}', space=sflag, size = 0x4, scoped, tag = 'scoped memory for tpu_custom_call.1']
    #allocation17 [shape = 'u8[512]{0}', space=vmem, size = 0x400, scoped, tag = 'input window, operand 13, single buffered']
    #allocation18 [shape = 'u8[8192]{0}', space=vmem, size = 0x2000, scoped, tag = 'input window, operand 14, single buffered']
    #allocation19 [shape = 's32[1]{0}', space=sflag, size = 0x4, scoped, tag = 'scoped memory for tpu_custom_call.1']
    #allocation20 [shape = 'u8[512]{0}', space=vmem, size = 0x400, scoped, tag = 'input window, operand 15, single buffered']
    #allocation21 [shape = 'u8[512]{0}', space=vmem, size = 0x400, scoped, tag = 'input window, operand 16, single buffered']
    #allocation22 [shape = 's32[1]{0}', space=sflag, size = 0x4, scoped, tag = 'scoped memory for tpu_custom_call.1']
    #allocation23 [shape = 'u8[512]{0}', space=vmem, size = 0x400, scoped, tag = 'input window, operand 17, single buffered']
    #allocation24 [shape = 'u8[8192]{0}', space=vmem, size = 0x2000, scoped, tag = 'output window, operand 0']
    %26 = vsyncpa [#allocation4], 0
    %s27 = scalar_lea.sflag [#allocation4], 1
    %28 = vsyncpa %s27, 0
    %29 = vsyncpa [#allocation7], 0
    %30 = vsyncpa [#allocation10], 0
    %31 = vsyncpa [#allocation13], 0
    %32 = vsyncpa [#allocation16], 0
    %33 = vsyncpa [#allocation19], 0
    %34 = vsyncpa [#allocation22], 0
    %35 = vsyncpa [#allocation5], 0
    %s36 = scalar_lea.sflag [#allocation5], 1
    %37 = vsyncpa %s36, 0
    loop: start=0, step=1, limit=4
    $region2: #{tpu_custom_call.1} parent=1 // loop_pre_header
      _
    $region3: #{tpu_custom_call.1} parent=1 // loop_header
      %s39 = sphi 0, %s43
      %p40 = scmp.ge.s32.totalorder %s39, 4
      %s49 = sphi 0, %s51
      %s52 = sphi 0, %s49
      %s53 = sphi 0, %s52
      %s69 = sphi 0, %s53
      %s73 = sphi 0, %s73
      %s75 = sphi 0, %s73
      %s76 = sphi 0, %s75
      %s90 = sphi 0, %s76
      %s94 = sphi 0, %s94
      %s96 = sphi 0, %s94
      %s97 = sphi 0, %s96
      %s111 = sphi 0, %s97
      %s115 = sphi 0, %s115
      %s117 = sphi 0, %s115
      %s118 = sphi 0, %s117
      %s132 = sphi 0, %s118
      %s136 = sphi 0, %s136
      %s138 = sphi 0, %s136
      %s139 = sphi 0, %s138
      %s153 = sphi 0, %s139
      %s157 = sphi 0, %s157
      %s159 = sphi 0, %s157
      %s160 = sphi 0, %s159
      %s174 = sphi 0, %s160
      %s178 = sphi 0, %s178
      %s180 = sphi 0, %s178
      %s181 = sphi 0, %s180
      %s195 = sphi 0, %s181
      %s199 = sphi 0, %s199
      %s201 = sphi 0, %s199
      %s202 = sphi 0, %s201
      %s216 = sphi 0, %s202
      %s220 = sphi 0, %s220
      %s222 = sphi 0, %s220
      %s223 = sphi 0, %s222
      %s237 = sphi 0, %s223
      %s241 = sphi 0, %s241
      %s243 = sphi 0, %s241
      %s244 = sphi 0, %s243
      %s258 = sphi 0, %s244
      %s262 = sphi 0, %s262
      %s264 = sphi 0, %s262
      %s265 = sphi 0, %s264
      %s279 = sphi 0, %s265
      %s283 = sphi 0, %s283
      %s285 = sphi 0, %s283
      %s286 = sphi 0, %s285
      %s300 = sphi 0, %s286
      %s304 = sphi 0, %s304
      %s306 = sphi 0, %s304
      %s307 = sphi 0, %s306
      %s321 = sphi 0, %s307
      %s325 = sphi 0, %s325
      %s327 = sphi 0, %s325
      %s328 = sphi 0, %s327
      %s342 = sphi 0, %s328
      %s346 = sphi 0, %s346
      %s348 = sphi 0, %s346
      %s349 = sphi 0, %s348
      %s363 = sphi 0, %s349
      %s367 = sphi 0, %s367
      %s369 = sphi 0, %s367
      %s370 = sphi 0, %s369
      %s384 = sphi 0, %s370
      %s388 = sphi 0, %s388
      %s390 = sphi 0, %s388
      %s391 = sphi 0, %s390
      %s405 = sphi 0, %s391
      %s409 = sphi 0, %s409
      %s411 = sphi 0, %s409
      %s412 = sphi 0, %s411
      %s426 = sphi 0, %s412
      %s432 = sphi 0, %s434
      %s435 = sphi 0, %s432
      %s436 = sphi 0, %s435
      %s452 = sphi 0, %s436
    $region4: #{tpu_custom_call.1} parent=1 // loop_header_branch
      %42 = sbr.rel (%p40) target = $region8
    $region5: #{tpu_custom_call.1} parent=1 // loop_body
      %s44 = ssub.s32 %s39, 1
      %s45 = ssub.s32 %s39, 2
      %s46 = sadd.s32 %s39, 1
      %s47 = ssub.s32 %s39, %s46
      %p48 = scmp.eq.s32.totalorder %s47, 0
      %s50 = sadd.s32 %s49, 1
      %s51 = scalar_select %p48, %s49, %s50
      %p54 = pneg %p48
      %p55 = scmp.eq.s32.totalorder %s39, 1
      %p56 = por %p54, %p55
      %p57 = scmp.ne.s32.totalorder %s49, %s52
      %p58 = scmp.eq.s32.totalorder %s39, 0
      %p59 = por %p57, %p58
      %p60 = scmp.ne.s32.totalorder %s49, %s52
      %p61 = scmp.eq.s32.totalorder %s44, 1
      %p62 = por %p60, %p61
      %p63 = scmp.ne.s32.totalorder %s52, %s53
      %p64 = scmp.eq.s32.totalorder %s44, 0
      %p65 = por %p63, %p64
      %p66 = scmp.ne.s32.totalorder %s52, %s53
      %p67 = scmp.eq.s32.totalorder %s45, 1
      %p68 = por %p66, %p67
      %p70 = scmp.ne.s32.totalorder %s53, %s69
      %p71 = scmp.eq.s32.totalorder %s45, 0
      %p72 = por %p70, %p71
      %s74 = sadd.s32 %s73, 1
      %p77 = scmp.eq.s32.totalorder %s39, 1
      %p78 = scmp.ne.s32.totalorder %s73, %s75
      %p79 = scmp.eq.s32.totalorder %s39, 0
      %p80 = por %p78, %p79
      %p81 = scmp.ne.s32.totalorder %s73, %s75
      %p82 = scmp.eq.s32.totalorder %s44, 1
      %p83 = por %p81, %p82
      %p84 = scmp.ne.s32.totalorder %s75, %s76
      %p85 = scmp.eq.s32.totalorder %s44, 0
      %p86 = por %p84, %p85
      %p87 = scmp.ne.s32.totalorder %s75, %s76
      %p88 = scmp.eq.s32.totalorder %s45, 1
      %p89 = por %p87, %p88
      %p91 = scmp.ne.s32.totalorder %s76, %s90
      %p92 = scmp.eq.s32.totalorder %s45, 0
      %p93 = por %p91, %p92
      %s95 = sadd.s32 %s94, 1
      %p98 = scmp.eq.s32.totalorder %s39, 1
      %p99 = scmp.ne.s32.totalorder %s94, %s96
      %p100 = scmp.eq.s32.totalorder %s39, 0
      %p101 = por %p99, %p100
      %p102 = scmp.ne.s32.totalorder %s94, %s96
      %p103 = scmp.eq.s32.totalorder %s44, 1
      %p104 = por %p102, %p103
      %p105 = scmp.ne.s32.totalorder %s96, %s97
      %p106 = scmp.eq.s32.totalorder %s44, 0
      %p107 = por %p105, %p106
      %p108 = scmp.ne.s32.totalorder %s96, %s97
      %p109 = scmp.eq.s32.totalorder %s45, 1
      %p110 = por %p108, %p109
      %p112 = scmp.ne.s32.totalorder %s97, %s111
      %p113 = scmp.eq.s32.totalorder %s45, 0
      %p114 = por %p112, %p113
      %s116 = sadd.s32 %s115, 1
      %p119 = scmp.eq.s32.totalorder %s39, 1
      %p120 = scmp.ne.s32.totalorder %s115, %s117
      %p121 = scmp.eq.s32.totalorder %s39, 0
      %p122 = por %p120, %p121
      %p123 = scmp.ne.s32.totalorder %s115, %s117
      %p124 = scmp.eq.s32.totalorder %s44, 1
      %p125 = por %p123, %p124
      %p126 = scmp.ne.s32.totalorder %s117, %s118
      %p127 = scmp.eq.s32.totalorder %s44, 0
      %p128 = por %p126, %p127
      %p129 = scmp.ne.s32.totalorder %s117, %s118
      %p130 = scmp.eq.s32.totalorder %s45, 1
      %p131 = por %p129, %p130
      %p133 = scmp.ne.s32.totalorder %s118, %s132
      %p134 = scmp.eq.s32.totalorder %s45, 0
      %p135 = por %p133, %p134
      %s137 = sadd.s32 %s136, 1
      %p140 = scmp.eq.s32.totalorder %s39, 1
      %p141 = scmp.ne.s32.totalorder %s136, %s138
      %p142 = scmp.eq.s32.totalorder %s39, 0
      %p143 = por %p141, %p142
      %p144 = scmp.ne.s32.totalorder %s136, %s138
      %p145 = scmp.eq.s32.totalorder %s44, 1
      %p146 = por %p144, %p145
      %p147 = scmp.ne.s32.totalorder %s138, %s139
      %p148 = scmp.eq.s32.totalorder %s44, 0
      %p149 = por %p147, %p148
      %p150 = scmp.ne.s32.totalorder %s138, %s139
      %p151 = scmp.eq.s32.totalorder %s45, 1
      %p152 = por %p150, %p151
      %p154 = scmp.ne.s32.totalorder %s139, %s153
      %p155 = scmp.eq.s32.totalorder %s45, 0
      %p156 = por %p154, %p155
      %s158 = sadd.s32 %s157, 1
      %p161 = scmp.eq.s32.totalorder %s39, 1
      %p162 = scmp.ne.s32.totalorder %s157, %s159
      %p163 = scmp.eq.s32.totalorder %s39, 0
      %p164 = por %p162, %p163
      %p165 = scmp.ne.s32.totalorder %s157, %s159
      %p166 = scmp.eq.s32.totalorder %s44, 1
      %p167 = por %p165, %p166
      %p168 = scmp.ne.s32.totalorder %s159, %s160
      %p169 = scmp.eq.s32.totalorder %s44, 0
      %p170 = por %p168, %p169
      %p171 = scmp.ne.s32.totalorder %s159, %s160
      %p172 = scmp.eq.s32.totalorder %s45, 1
      %p173 = por %p171, %p172
      %p175 = scmp.ne.s32.totalorder %s160, %s174
      %p176 = scmp.eq.s32.totalorder %s45, 0
      %p177 = por %p175, %p176
      %s179 = sadd.s32 %s178, 1
      %p182 = scmp.eq.s32.totalorder %s39, 1
      %p183 = scmp.ne.s32.totalorder %s178, %s180
      %p184 = scmp.eq.s32.totalorder %s39, 0
      %p185 = por %p183, %p184
      %p186 = scmp.ne.s32.totalorder %s178, %s180
      %p187 = scmp.eq.s32.totalorder %s44, 1
      %p188 = por %p186, %p187
      %p189 = scmp.ne.s32.totalorder %s180, %s181
      %p190 = scmp.eq.s32.totalorder %s44, 0
      %p191 = por %p189, %p190
      %p192 = scmp.ne.s32.totalorder %s180, %s181
      %p193 = scmp.eq.s32.totalorder %s45, 1
      %p194 = por %p192, %p193
      %p196 = scmp.ne.s32.totalorder %s181, %s195
      %p197 = scmp.eq.s32.totalorder %s45, 0
      %p198 = por %p196, %p197
      %s200 = sadd.s32 %s199, 1
      %p203 = scmp.eq.s32.totalorder %s39, 1
      %p204 = scmp.ne.s32.totalorder %s199, %s201
      %p205 = scmp.eq.s32.totalorder %s39, 0
      %p206 = por %p204, %p205
      %p207 = scmp.ne.s32.totalorder %s199, %s201
      %p208 = scmp.eq.s32.totalorder %s44, 1
      %p209 = por %p207, %p208
      %p210 = scmp.ne.s32.totalorder %s201, %s202
      %p211 = scmp.eq.s32.totalorder %s44, 0
      %p212 = por %p210, %p211
      %p213 = scmp.ne.s32.totalorder %s201, %s202
      %p214 = scmp.eq.s32.totalorder %s45, 1
      %p215 = por %p213, %p214
      %p217 = scmp.ne.s32.totalorder %s202, %s216
      %p218 = scmp.eq.s32.totalorder %s45, 0
      %p219 = por %p217, %p218
      %s221 = sadd.s32 %s220, 1
      %p224 = scmp.eq.s32.totalorder %s39, 1
      %p225 = scmp.ne.s32.totalorder %s220, %s222
      %p226 = scmp.eq.s32.totalorder %s39, 0
      %p227 = por %p225, %p226
      %p228 = scmp.ne.s32.totalorder %s220, %s222
      %p229 = scmp.eq.s32.totalorder %s44, 1
      %p230 = por %p228, %p229
      %p231 = scmp.ne.s32.totalorder %s222, %s223
      %p232 = scmp.eq.s32.totalorder %s44, 0
      %p233 = por %p231, %p232
      %p234 = scmp.ne.s32.totalorder %s222, %s223
      %p235 = scmp.eq.s32.totalorder %s45, 1
      %p236 = por %p234, %p235
      %p238 = scmp.ne.s32.totalorder %s223, %s237
      %p239 = scmp.eq.s32.totalorder %s45, 0
      %p240 = por %p238, %p239
      %s242 = sadd.s32 %s241, 1
      %p245 = scmp.eq.s32.totalorder %s39, 1
      %p246 = scmp.ne.s32.totalorder %s241, %s243
      %p247 = scmp.eq.s32.totalorder %s39, 0
      %p248 = por %p246, %p247
      %p249 = scmp.ne.s32.totalorder %s241, %s243
      %p250 = scmp.eq.s32.totalorder %s44, 1
      %p251 = por %p249, %p250
      %p252 = scmp.ne.s32.totalorder %s243, %s244
      %p253 = scmp.eq.s32.totalorder %s44, 0
      %p254 = por %p252, %p253
      %p255 = scmp.ne.s32.totalorder %s243, %s244
      %p256 = scmp.eq.s32.totalorder %s45, 1
      %p257 = por %p255, %p256
      %p259 = scmp.ne.s32.totalorder %s244, %s258
      %p260 = scmp.eq.s32.totalorder %s45, 0
      %p261 = por %p259, %p260
      %s263 = sadd.s32 %s262, 1
      %p266 = scmp.eq.s32.totalorder %s39, 1
      %p267 = scmp.ne.s32.totalorder %s262, %s264
      %p268 = scmp.eq.s32.totalorder %s39, 0
      %p269 = por %p267, %p268
      %p270 = scmp.ne.s32.totalorder %s262, %s264
      %p271 = scmp.eq.s32.totalorder %s44, 1
      %p272 = por %p270, %p271
      %p273 = scmp.ne.s32.totalorder %s264, %s265
      %p274 = scmp.eq.s32.totalorder %s44, 0
      %p275 = por %p273, %p274
      %p276 = scmp.ne.s32.totalorder %s264, %s265
      %p277 = scmp.eq.s32.totalorder %s45, 1
      %p278 = por %p276, %p277
      %p280 = scmp.ne.s32.totalorder %s265, %s279
      %p281 = scmp.eq.s32.totalorder %s45, 0
      %p282 = por %p280, %p281
      %s284 = sadd.s32 %s283, 1
      %p287 = scmp.eq.s32.totalorder %s39, 1
      %p288 = scmp.ne.s32.totalorder %s283, %s285
      %p289 = scmp.eq.s32.totalorder %s39, 0
      %p290 = por %p288, %p289
      %p291 = scmp.ne.s32.totalorder %s283, %s285
      %p292 = scmp.eq.s32.totalorder %s44, 1
      %p293 = por %p291, %p292
      %p294 = scmp.ne.s32.totalorder %s285, %s286
      %p295 = scmp.eq.s32.totalorder %s44, 0
      %p296 = por %p294, %p295
      %p297 = scmp.ne.s32.totalorder %s285, %s286
      %p298 = scmp.eq.s32.totalorder %s45, 1
      %p299 = por %p297, %p298
      %p301 = scmp.ne.s32.totalorder %s286, %s300
      %p302 = scmp.eq.s32.totalorder %s45, 0
      %p303 = por %p301, %p302
      %s305 = sadd.s32 %s304, 1
      %p308 = scmp.eq.s32.totalorder %s39, 1
      %p309 = scmp.ne.s32.totalorder %s304, %s306
      %p310 = scmp.eq.s32.totalorder %s39, 0
      %p311 = por %p309, %p310
      %p312 = scmp.ne.s32.totalorder %s304, %s306
      %p313 = scmp.eq.s32.totalorder %s44, 1
      %p314 = por %p312, %p313
      %p315 = scmp.ne.s32.totalorder %s306, %s307
      %p316 = scmp.eq.s32.totalorder %s44, 0
      %p317 = por %p315, %p316
      %p318 = scmp.ne.s32.totalorder %s306, %s307
      %p319 = scmp.eq.s32.totalorder %s45, 1
      %p320 = por %p318, %p319
      %p322 = scmp.ne.s32.totalorder %s307, %s321
      %p323 = scmp.eq.s32.totalorder %s45, 0
      %p324 = por %p322, %p323
      %s326 = sadd.s32 %s325, 1
      %p329 = scmp.eq.s32.totalorder %s39, 1
      %p330 = scmp.ne.s32.totalorder %s325, %s327
      %p331 = scmp.eq.s32.totalorder %s39, 0
      %p332 = por %p330, %p331
      %p333 = scmp.ne.s32.totalorder %s325, %s327
      %p334 = scmp.eq.s32.totalorder %s44, 1
      %p335 = por %p333, %p334
      %p336 = scmp.ne.s32.totalorder %s327, %s328
      %p337 = scmp.eq.s32.totalorder %s44, 0
      %p338 = por %p336, %p337
      %p339 = scmp.ne.s32.totalorder %s327, %s328
      %p340 = scmp.eq.s32.totalorder %s45, 1
      %p341 = por %p339, %p340
      %p343 = scmp.ne.s32.totalorder %s328, %s342
      %p344 = scmp.eq.s32.totalorder %s45, 0
      %p345 = por %p343, %p344
      %s347 = sadd.s32 %s346, 1
      %p350 = scmp.eq.s32.totalorder %s39, 1
      %p351 = scmp.ne.s32.totalorder %s346, %s348
      %p352 = scmp.eq.s32.totalorder %s39, 0
      %p353 = por %p351, %p352
      %p354 = scmp.ne.s32.totalorder %s346, %s348
      %p355 = scmp.eq.s32.totalorder %s44, 1
      %p356 = por %p354, %p355
      %p357 = scmp.ne.s32.totalorder %s348, %s349
      %p358 = scmp.eq.s32.totalorder %s44, 0
      %p359 = por %p357, %p358
      %p360 = scmp.ne.s32.totalorder %s348, %s349
      %p361 = scmp.eq.s32.totalorder %s45, 1
      %p362 = por %p360, %p361
      %p364 = scmp.ne.s32.totalorder %s349, %s363
      %p365 = scmp.eq.s32.totalorder %s45, 0
      %p366 = por %p364, %p365
      %s368 = sadd.s32 %s367, 1
      %p371 = scmp.eq.s32.totalorder %s39, 1
      %p372 = scmp.ne.s32.totalorder %s367, %s369
      %p373 = scmp.eq.s32.totalorder %s39, 0
      %p374 = por %p372, %p373
      %p375 = scmp.ne.s32.totalorder %s367, %s369
      %p376 = scmp.eq.s32.totalorder %s44, 1
      %p377 = por %p375, %p376
      %p378 = scmp.ne.s32.totalorder %s369, %s370
      %p379 = scmp.eq.s32.totalorder %s44, 0
      %p380 = por %p378, %p379
      %p381 = scmp.ne.s32.totalorder %s369, %s370
      %p382 = scmp.eq.s32.totalorder %s45, 1
      %p383 = por %p381, %p382
      %p385 = scmp.ne.s32.totalorder %s370, %s384
      %p386 = scmp.eq.s32.totalorder %s45, 0
      %p387 = por %p385, %p386
      %s389 = sadd.s32 %s388, 1
      %p392 = scmp.eq.s32.totalorder %s39, 1
      %p393 = scmp.ne.s32.totalorder %s388, %s390
      %p394 = scmp.eq.s32.totalorder %s39, 0
      %p395 = por %p393, %p394
      %p396 = scmp.ne.s32.totalorder %s388, %s390
      %p397 = scmp.eq.s32.totalorder %s44, 1
      %p398 = por %p396, %p397
      %p399 = scmp.ne.s32.totalorder %s390, %s391
      %p400 = scmp.eq.s32.totalorder %s44, 0
      %p401 = por %p399, %p400
      %p402 = scmp.ne.s32.totalorder %s390, %s391
      %p403 = scmp.eq.s32.totalorder %s45, 1
      %p404 = por %p402, %p403
      %p406 = scmp.ne.s32.totalorder %s391, %s405
      %p407 = scmp.eq.s32.totalorder %s45, 0
      %p408 = por %p406, %p407
      %s410 = sadd.s32 %s409, 1
      %p413 = scmp.eq.s32.totalorder %s39, 1
      %p414 = scmp.ne.s32.totalorder %s409, %s411
      %p415 = scmp.eq.s32.totalorder %s39, 0
      %p416 = por %p414, %p415
      %p417 = scmp.ne.s32.totalorder %s409, %s411
      %p418 = scmp.eq.s32.totalorder %s44, 1
      %p419 = por %p417, %p418
      %p420 = scmp.ne.s32.totalorder %s411, %s412
      %p421 = scmp.eq.s32.totalorder %s44, 0
      %p422 = por %p420, %p421
      %p423 = scmp.ne.s32.totalorder %s411, %s412
      %p424 = scmp.eq.s32.totalorder %s45, 1
      %p425 = por %p423, %p424
      %p427 = scmp.ne.s32.totalorder %s412, %s426
      %p428 = scmp.eq.s32.totalorder %s45, 0
      %p429 = por %p427, %p428
      %s430 = ssub.s32 %s39, %s46
      %p431 = scmp.eq.s32.totalorder %s430, 0
      %s433 = sadd.s32 %s432, 1
      %s434 = scalar_select %p431, %s432, %s433
      %p437 = pneg %p431
      %p438 = scmp.eq.s32.totalorder %s39, 1
      %p439 = por %p437, %p438
      %p440 = scmp.ne.s32.totalorder %s432, %s435
      %p441 = scmp.eq.s32.totalorder %s39, 0
      %p442 = por %p440, %p441
      %p443 = scmp.ne.s32.totalorder %s432, %s435
      %p444 = scmp.eq.s32.totalorder %s44, 1
      %p445 = por %p443, %p444
      %p446 = scmp.ne.s32.totalorder %s435, %s436
      %p447 = scmp.eq.s32.totalorder %s44, 0
      %p448 = por %p446, %p447
      %p449 = scmp.ne.s32.totalorder %s435, %s436
      %p450 = scmp.eq.s32.totalorder %s45, 1
      %p451 = por %p449, %p450
      %p453 = scmp.ne.s32.totalorder %s436, %s452
      %p454 = scmp.eq.s32.totalorder %s45, 0
      %p455 = por %p453, %p454
      %p456 = scmp.le.s32.totalorder 1, %s39
      %p457 = scmp.lt.s32.totalorder %s39, 3
      %p458 = pnand %p456, %p457
      %p459 = pneg %p458
      // Predicated region
      $region9: #{tpu_custom_call.1} parent=5 // pred_check
        _
      $region10: #{tpu_custom_call.1} parent=5 // pred_check_branch
        %461 = sbr.rel (%p458) target = $region12
      $region11: #{tpu_custom_call.1} parent=5 // pred_region
        %s462 = ssub.s32 %s39, 1
        // Predicated region
        $region13: #{tpu_custom_call.1} parent=11 // pred_check
          %p463 = pneg %p86
        $region14: #{tpu_custom_call.1} parent=11 // pred_check_branch
          %465 = sbr.rel (%p463) target = $region16
        $region15: #{tpu_custom_call.1} parent=11 // pred_region
          %s467 = ssub.s32 128, 128
          %468 = vsyncadd [#allocation7], %s467
          %s470 = sshll.u32 [#allocation6], 4
          %s471 = int_to_ptr.vmem [resolvable:$true] %s470
          %473 = dma.hbm_to_vmem [thread:$0]  %s1, 128, %s471, [#allocation7]
        $region16: #{tpu_custom_call.1} parent=11 // pred_fallthru
          _
        // Predicated region
        $region17: #{tpu_custom_call.1} parent=11 // pred_check
          %p474 = pneg %p107
        $region18: #{tpu_custom_call.1} parent=11 // pred_check_branch
          %476 = sbr.rel (%p474) target = $region20
        $region19: #{tpu_custom_call.1} parent=11 // pred_region
          _
        $region20: #{tpu_custom_call.1} parent=11 // pred_fallthru
          _
        // Predicated region
        $region21: #{tpu_custom_call.1} parent=11 // pred_check
          %p477 = pneg %p128
        $region22: #{tpu_custom_call.1} parent=11 // pred_check_branch
          %479 = sbr.rel (%p477) target = $region24
        $region23: #{tpu_custom_call.1} parent=11 // pred_region
          %s481 = ssub.s32 256, 256
          %482 = vsyncadd [#allocation7], %s481
          %s483 = sshll.u32 [#allocation8], 4
          %s484 = int_to_ptr.vmem [resolvable:$true] %s483
          %489 = dma.hbm_to_vmem [thread:$0]  %s3, 256, %s484, [#allocation7], 64, 64, 4
        $region24: #{tpu_custom_call.1} parent=11 // pred_fallthru
          _
        // Predicated region
        $region25: #{tpu_custom_call.1} parent=11 // pred_check
          %p490 = pneg %p149
        $region26: #{tpu_custom_call.1} parent=11 // pred_check_branch
          %492 = sbr.rel (%p490) target = $region28
        $region27: #{tpu_custom_call.1} parent=11 // pred_region
          _
        $region28: #{tpu_custom_call.1} parent=11 // pred_fallthru
          _
        // Predicated region
        $region29: #{tpu_custom_call.1} parent=11 // pred_check
          %p493 = pneg %p170
        $region30: #{tpu_custom_call.1} parent=11 // pred_check_branch
          %495 = sbr.rel (%p493) target = $region32
        $region31: #{tpu_custom_call.1} parent=11 // pred_region
          %s497 = ssub.s32 256, 256
          %498 = vsyncadd [#allocation10], %s497
          %s499 = sshll.u32 [#allocation9], 4
          %s500 = int_to_ptr.vmem [resolvable:$true] %s499
          %505 = dma.hbm_to_vmem [thread:$0]  %s5, 256, %s500, [#allocation10], 64, 64, 4
        $region32: #{tpu_custom_call.1} parent=11 // pred_fallthru
          _
        // Predicated region
        $region33: #{tpu_custom_call.1} parent=11 // pred_check
          %p506 = pneg %p191
        $region34: #{tpu_custom_call.1} parent=11 // pred_check_branch
          %508 = sbr.rel (%p506) target = $region36
        $region35: #{tpu_custom_call.1} parent=11 // pred_region
          _
        $region36: #{tpu_custom_call.1} parent=11 // pred_fallthru
          _
        // Predicated region
        $region37: #{tpu_custom_call.1} parent=11 // pred_check
          %p509 = pneg %p212
        $region38: #{tpu_custom_call.1} parent=11 // pred_check_branch
          %511 = sbr.rel (%p509) target = $region40
        $region39: #{tpu_custom_call.1} parent=11 // pred_region
          %s513 = ssub.s32 256, 256
          %514 = vsyncadd [#allocation10], %s513
          %s515 = sshll.u32 [#allocation11], 4
          %s516 = int_to_ptr.vmem [resolvable:$true] %s515
          %521 = dma.hbm_to_vmem [thread:$0]  %s7, 256, %s516, [#allocation10], 64, 64, 4
        $region40: #{tpu_custom_call.1} parent=11 // pred_fallthru
          _
        // Predicated region
        $region41: #{tpu_custom_call.1} parent=11 // pred_check
          %p522 = pneg %p233
        $region42: #{tpu_custom_call.1} parent=11 // pred_check_branch
          %524 = sbr.rel (%p522) target = $region44
        $region43: #{tpu_custom_call.1} parent=11 // pred_region
          _
        $region44: #{tpu_custom_call.1} parent=11 // pred_fallthru
          _
        // Predicated region
        $region45: #{tpu_custom_call.1} parent=11 // pred_check
          %p525 = pneg %p254
        $region46: #{tpu_custom_call.1} parent=11 // pred_check_branch
          %527 = sbr.rel (%p525) target = $region48
        $region47: #{tpu_custom_call.1} parent=11 // pred_region
          _
        $region48: #{tpu_custom_call.1} parent=11 // pred_fallthru
          _
        // Predicated region
        $region49: #{tpu_custom_call.1} parent=11 // pred_check
          %p528 = pneg %p275
        $region50: #{tpu_custom_call.1} parent=11 // pred_check_branch
          %530 = sbr.rel (%p528) target = $region52
        $region51: #{tpu_custom_call.1} parent=11 // pred_region
          %s532 = ssub.s32 16, 16
          %533 = vsyncadd [#allocation13], %s532
          %s535 = sshll.u32 [#allocation12], 4
          %s536 = int_to_ptr.vmem [resolvable:$true] %s535
          %538 = dma.hbm_to_vmem [thread:$0]  %s10, 16, %s536, [#allocation13]
        $region52: #{tpu_custom_call.1} parent=11 // pred_fallthru
          _
        // Predicated region
        $region53: #{tpu_custom_call.1} parent=11 // pred_check
          %p539 = pneg %p296
        $region54: #{tpu_custom_call.1} parent=11 // pred_check_branch
          %541 = sbr.rel (%p539) target = $region56
        $region55: #{tpu_custom_call.1} parent=11 // pred_region
          %s543 = ssub.s32 256, 256
          %544 = vsyncadd [#allocation13], %s543
          %s545 = sshll.u32 [#allocation14], 4
          %s546 = int_to_ptr.vmem [resolvable:$true] %s545
          %551 = dma.hbm_to_vmem [thread:$0]  %s11, 256, %s546, [#allocation13], 64, 64, 4
        $region56: #{tpu_custom_call.1} parent=11 // pred_fallthru
          _
        // Predicated region
        $region57: #{tpu_custom_call.1} parent=11 // pred_check
          %p552 = pneg %p317
        $region58: #{tpu_custom_call.1} parent=11 // pred_check_branch
          %554 = sbr.rel (%p552) target = $region60
        $region59: #{tpu_custom_call.1} parent=11 // pred_region
          %s556 = ssub.s32 16, 16
          %557 = vsyncadd [#allocation16], %s556
          %s559 = sshll.u32 [#allocation15], 4
          %s560 = int_to_ptr.vmem [resolvable:$true] %s559
          %562 = dma.hbm_to_vmem [thread:$0]  %s12, 16, %s560, [#allocation16]
        $region60: #{tpu_custom_call.1} parent=11 // pred_fallthru
          _
        // Predicated region
        $region61: #{tpu_custom_call.1} parent=11 // pred_check
          %p563 = pneg %p338
        $region62: #{tpu_custom_call.1} parent=11 // pred_check_branch
          %565 = sbr.rel (%p563) target = $region64
        $region63: #{tpu_custom_call.1} parent=11 // pred_region
          %s567 = ssub.s32 16, 16
          %568 = vsyncadd [#allocation16], %s567
          %s570 = sshll.u32 [#allocation17], 4
          %s571 = int_to_ptr.vmem [resolvable:$true] %s570
          %573 = dma.hbm_to_vmem [thread:$0]  %s13, 16, %s571, [#allocation16]
        $region64: #{tpu_custom_call.1} parent=11 // pred_fallthru
          _
        // Predicated region
        $region65: #{tpu_custom_call.1} parent=11 // pred_check
          %p574 = pneg %p359
        $region66: #{tpu_custom_call.1} parent=11 // pred_check_branch
          %576 = sbr.rel (%p574) target = $region68
        $region67: #{tpu_custom_call.1} parent=11 // pred_region
          %s578 = ssub.s32 256, 256
          %579 = vsyncadd [#allocation19], %s578
          %s580 = sshll.u32 [#allocation18], 4
          %s581 = int_to_ptr.vmem [resolvable:$true] %s580
          %586 = dma.hbm_to_vmem [thread:$0]  %s14, 256, %s581, [#allocation19], 64, 64, 4
        $region68: #{tpu_custom_call.1} parent=11 // pred_fallthru
          _
        // Predicated region
        $region69: #{tpu_custom_call.1} parent=11 // pred_check
          %p587 = pneg %p380
        $region70: #{tpu_custom_call.1} parent=11 // pred_check_branch
          %589 = sbr.rel (%p587) target = $region72
        $region71: #{tpu_custom_call.1} parent=11 // pred_region
          %s591 = ssub.s32 16, 16
          %592 = vsyncadd [#allocation19], %s591
          %s594 = sshll.u32 [#allocation20], 4
          %s595 = int_to_ptr.vmem [resolvable:$true] %s594
          %597 = dma.hbm_to_vmem [thread:$0]  %s15, 16, %s595, [#allocation19]
        $region72: #{tpu_custom_call.1} parent=11 // pred_fallthru
          _
        // Predicated region
        $region73: #{tpu_custom_call.1} parent=11 // pred_check
          %p598 = pneg %p401
        $region74: #{tpu_custom_call.1} parent=11 // pred_check_branch
          %600 = sbr.rel (%p598) target = $region76
        $region75: #{tpu_custom_call.1} parent=11 // pred_region
          %s602 = ssub.s32 16, 16
          %603 = vsyncadd [#allocation22], %s602
          %s605 = sshll.u32 [#allocation21], 4
          %s606 = int_to_ptr.vmem [resolvable:$true] %s605
          %608 = dma.hbm_to_vmem [thread:$0]  %s16, 16, %s606, [#allocation22]
        $region76: #{tpu_custom_call.1} parent=11 // pred_fallthru
          _
        // Predicated region
        $region77: #{tpu_custom_call.1} parent=11 // pred_check
          %p609 = pneg %p422
        $region78: #{tpu_custom_call.1} parent=11 // pred_check_branch
          %611 = sbr.rel (%p609) target = $region80
        $region79: #{tpu_custom_call.1} parent=11 // pred_region
          %s613 = ssub.s32 16, 16
          %614 = vsyncadd [#allocation22], %s613
          %s616 = sshll.u32 [#allocation23], 4
          %s617 = int_to_ptr.vmem [resolvable:$true] %s616
          %619 = dma.hbm_to_vmem [thread:$0]  %s17, 16, %s617, [#allocation22]
        $region80: #{tpu_custom_call.1} parent=11 // pred_fallthru
          _
      $region12: #{tpu_custom_call.1} parent=5 // pred_fallthru
        _
      %p620 = scmp.lt.s32.totalorder %s39, 2
      // Predicated region
      $region81: #{tpu_custom_call.1} parent=5 // pred_check
        %p621 = pneg %p620
      $region82: #{tpu_custom_call.1} parent=5 // pred_check_branch
        %623 = sbr.rel (%p621) target = $region84
      $region83: #{tpu_custom_call.1} parent=5 // pred_region
        // Predicated region
        $region85: #{tpu_custom_call.1} parent=83 // pred_check
          %p624 = pneg %p59
        $region86: #{tpu_custom_call.1} parent=83 // pred_check_branch
          %626 = sbr.rel (%p624) target = $region88
        $region87: #{tpu_custom_call.1} parent=83 // pred_region
          %s627 = sand.u32 %s49, 1
          %s628 = scalar_lea.sflag [#allocation4], %s627
          %s629 = sand.u32 %s49, 1
          %s630 = smul.addr %s629, 8
          %s631 = scalar_lea.vmem [#allocation3], %s630
          %s633 = ssub.s32 128, 128
          %634 = vsyncadd %s628, %s633
          %s635 = smul.addr %s39, 128
          %s636 = scalar_lea.hbm %s0, %s635
          %s638 = sshll.u32 %s631, 4
          %s639 = int_to_ptr.vmem [resolvable:$true] %s638
          %641 = dma.hbm_to_vmem [thread:$0]  %s636, 128, %s639, %s628
        $region88: #{tpu_custom_call.1} parent=83 // pred_fallthru
          _
      $region84: #{tpu_custom_call.1} parent=5 // pred_fallthru
        _
      %p642 = scmp.le.s32.totalorder 1, %s39
      %p643 = scmp.lt.s32.totalorder %s39, 3
      %p644 = pnand %p642, %p643
      %p645 = pneg %p644
      // Predicated region
      $region89: #{tpu_custom_call.1} parent=5 // pred_check
        _
      $region90: #{tpu_custom_call.1} parent=5 // pred_check_branch
        %647 = sbr.rel (%p644) target = $region92
      $region91: #{tpu_custom_call.1} parent=5 // pred_region
        %s648 = ssub.s32 %s39, 1
        %s649 = sand.u32 %s52, 1
        %s650 = scalar_lea.sflag [#allocation4], %s649
        %s651 = sand.u32 %s52, 1
        %s652 = smul.addr %s651, 8
        %s653 = scalar_lea.vmem [#allocation3], %s652
        // Predicated region
        $region93: #{tpu_custom_call.1} parent=91 // pred_check
          %p654 = pneg %p65
        $region94: #{tpu_custom_call.1} parent=91 // pred_check_branch
          %656 = sbr.rel (%p654) target = $region96
        $region95: #{tpu_custom_call.1} parent=91 // pred_region
          %657 = dma.done %s650, 128
        $region96: #{tpu_custom_call.1} parent=91 // pred_fallthru
          _
        // Predicated region
        $region97: #{tpu_custom_call.1} parent=91 // pred_check
          %p658 = pneg %p86
        $region98: #{tpu_custom_call.1} parent=91 // pred_check_branch
          %660 = sbr.rel (%p658) target = $region100
        $region99: #{tpu_custom_call.1} parent=91 // pred_region
          %661 = dma.done [#allocation7], 128
        $region100: #{tpu_custom_call.1} parent=91 // pred_fallthru
          _
        // Predicated region
        $region101: #{tpu_custom_call.1} parent=91 // pred_check
          %p662 = pneg %p128
        $region102: #{tpu_custom_call.1} parent=91 // pred_check_branch
          %664 = sbr.rel (%p662) target = $region104
        $region103: #{tpu_custom_call.1} parent=91 // pred_region
          %665 = dma.done [#allocation7], 256
        $region104: #{tpu_custom_call.1} parent=91 // pred_fallthru
          _
        // Predicated region
        $region105: #{tpu_custom_call.1} parent=91 // pred_check
          %p666 = pneg %p170
        $region106: #{tpu_custom_call.1} parent=91 // pred_check_branch
          %668 = sbr.rel (%p666) target = $region108
        $region107: #{tpu_custom_call.1} parent=91 // pred_region
          %669 = dma.done [#allocation10], 256
        $region108: #{tpu_custom_call.1} parent=91 // pred_fallthru
          _
        // Predicated region
        $region109: #{tpu_custom_call.1} parent=91 // pred_check
          %p670 = pneg %p212
        $region110: #{tpu_custom_call.1} parent=91 // pred_check_branch
          %672 = sbr.rel (%p670) target = $region112
        $region111: #{tpu_custom_call.1} parent=91 // pred_region
          %673 = dma.done [#allocation10], 256
        $region112: #{tpu_custom_call.1} parent=91 // pred_fallthru
          _
        // Predicated region
        $region113: #{tpu_custom_call.1} parent=91 // pred_check
          %p674 = pneg %p275
        $region114: #{tpu_custom_call.1} parent=91 // pred_check_branch
          %676 = sbr.rel (%p674) target = $region116
        $region115: #{tpu_custom_call.1} parent=91 // pred_region
          %677 = dma.done [#allocation13], 16
        $region116: #{tpu_custom_call.1} parent=91 // pred_fallthru
          _
        // Predicated region
        $region117: #{tpu_custom_call.1} parent=91 // pred_check
          %p678 = pneg %p296
        $region118: #{tpu_custom_call.1} parent=91 // pred_check_branch
          %680 = sbr.rel (%p678) target = $region120
        $region119: #{tpu_custom_call.1} parent=91 // pred_region
          %681 = dma.done [#allocation13], 256
        $region120: #{tpu_custom_call.1} parent=91 // pred_fallthru
          _
        // Predicated region
        $region121: #{tpu_custom_call.1} parent=91 // pred_check
          %p682 = pneg %p317
        $region122: #{tpu_custom_call.1} parent=91 // pred_check_branch
          %684 = sbr.rel (%p682) target = $region124
        $region123: #{tpu_custom_call.1} parent=91 // pred_region
          %685 = dma.done [#allocation16], 16
        $region124: #{tpu_custom_call.1} parent=91 // pred_fallthru
          _
        // Predicated region
        $region125: #{tpu_custom_call.1} parent=91 // pred_check
          %p686 = pneg %p338
        $region126: #{tpu_custom_call.1} parent=91 // pred_check_branch
          %688 = sbr.rel (%p686) target = $region128
        $region127: #{tpu_custom_call.1} parent=91 // pred_region
          %689 = dma.done [#allocation16], 16
        $region128: #{tpu_custom_call.1} parent=91 // pred_fallthru
          _
        // Predicated region
        $region129: #{tpu_custom_call.1} parent=91 // pred_check
          %p690 = pneg %p359
        $region130: #{tpu_custom_call.1} parent=91 // pred_check_branch
          %692 = sbr.rel (%p690) target = $region132
        $region131: #{tpu_custom_call.1} parent=91 // pred_region
          %693 = dma.done [#allocation19], 256
        $region132: #{tpu_custom_call.1} parent=91 // pred_fallthru
          _
        // Predicated region
        $region133: #{tpu_custom_call.1} parent=91 // pred_check
          %p694 = pneg %p380
        $region134: #{tpu_custom_call.1} parent=91 // pred_check_branch
          %696 = sbr.rel (%p694) target = $region136
        $region135: #{tpu_custom_call.1} parent=91 // pred_region
          %697 = dma.done [#allocation19], 16
        $region136: #{tpu_custom_call.1} parent=91 // pred_fallthru
          _
        // Predicated region
        $region137: #{tpu_custom_call.1} parent=91 // pred_check
          %p698 = pneg %p401
        $region138: #{tpu_custom_call.1} parent=91 // pred_check_branch
          %700 = sbr.rel (%p698) target = $region140
        $region139: #{tpu_custom_call.1} parent=91 // pred_region
          %701 = dma.done [#allocation22], 16
        $region140: #{tpu_custom_call.1} parent=91 // pred_fallthru
          _
        // Predicated region
        $region141: #{tpu_custom_call.1} parent=91 // pred_check
          %p702 = pneg %p422
        $region142: #{tpu_custom_call.1} parent=91 // pred_check_branch
          %704 = sbr.rel (%p702) target = $region144
        $region143: #{tpu_custom_call.1} parent=91 // pred_region
          %705 = dma.done [#allocation22], 16
        $region144: #{tpu_custom_call.1} parent=91 // pred_fallthru
          _
        %s706 = sand.u32 %s52, 1
        %s707 = scalar_lea.sflag [#allocation4], %s706
        %s708 = sand.u32 %s52, 1
        %s709 = smul.addr %s708, 8
        %s710 = scalar_lea.vmem [#allocation3], %s709
        %p711 = pneg %p65
        %p712 = pneg %p62
        %p713 = pneg %p86
        %p714 = pneg %p83
        %p715 = pneg %p107
        %p716 = pneg %p104
        %p717 = pneg %p128
        %p718 = pneg %p125
        %p719 = pneg %p149
        %p720 = pneg %p146
        %p721 = pneg %p170
        %p722 = pneg %p167
        %p723 = pneg %p191
        %p724 = pneg %p188
        %p725 = pneg %p212
        %p726 = pneg %p209
        %p727 = pneg %p233
        %p728 = pneg %p230
        %p729 = pneg %p254
        %p730 = pneg %p251
        %p731 = pneg %p275
        %p732 = pneg %p272
        %p733 = pneg %p296
        %p734 = pneg %p293
        %p735 = pneg %p317
        %p736 = pneg %p314
        %p737 = pneg %p338
        %p738 = pneg %p335
        %p739 = pneg %p359
        %p740 = pneg %p356
        %p741 = pneg %p380
        %p742 = pneg %p377
        %p743 = pneg %p401
        %p744 = pneg %p398
        %p745 = pneg %p422
        %p746 = pneg %p419
        %p747 = pneg %p448
        %p748 = pneg %p445
        %s749 = sand.u32 %s435, 1
        %s750 = scalar_lea.sflag [#allocation5], %s749
        %s751 = sand.u32 %s435, 1
        %s752 = smul.addr %s751, 8
        %s753 = scalar_lea.vmem [#allocation24], %s752
        %v755 = vld [vmem:[%s653] sm:$0xff]
        %v756 = vld [vmem:[%s2] sm:$0x1]
        %v757 = vmul.f32 %v755, %v755
        %vm758 = vcmask 261120
        %v759 = vsel %vm758, %v757, 0.0
        %760 = vadd.xlane.f32.xlu0 %v759
        %v761 = vpop.xlane.xlu0 %760
        %v762 = vrcp.pop 32.0
        %v763 = vmul.f32 %v761, %v762
        %v764 = vadd.f32 %v763, 1e-05
        %v765 = vrsqrt.pop %v764
        %v766 = vmul.f32 %v755, %v765
        %v768 = vlaneseq
        %v769 = vshrl.u32 %v768, 7
        %v770 = vsub.s32 0, %v769
        %v771 = vrot.slane %v756, %v770
        %v773 = vmul.f32 %v766, %v771
        %v774 = vpack.c.bf16 %v773, %v773
        %v775 = vld [vmem:[#allocation8] sm:$0xf]
        %v776 = vld [vmem:[#allocation8 + $0x4] sm:$0xf]
        %v777 = vld [vmem:[#allocation8 + $0x8] sm:$0xf]
        %v778 = vld [vmem:[#allocation8 + $0xc] sm:$0xf]
        %v779 = vld [vmem:[%s4] sm:$0x1]
        %v781 = vlaneseq
        %v782 = vshrl.u32 %v781, 7
        %v783 = vsub.s32 0, %v782
        %v784 = vrot.slane %v779, %v783
        %v790 = vunpack.c.l.b16 %v775
        %v791 = vunpack.c.l.b16 %v776
        %v792 = vunpack.c.l.b16 %v777
        %v793 = vunpack.c.l.b16 %v778
        %v794 = vpack.c.b16 %v791, %v790
        %v795 = vpack.c.b16 %v793, %v792
        %v799 = vsel %vm758, %v774, 0
        %801 = vmatprep.subr.bf16.mxu0 0
        %802 = vmatpush1.bf16.msra.mxu0 %v794
        %803 = vmatprep.subr.bf16.mxu0 0
        %804 = vmatpush1.bf16.msra.mxu0 %v795
        %805 = vmatprep.subr.bf16.mxu0 0
        %806 = vmatpush1.bf16.msra.mxu0 0
        %807 = vmatprep.subr.bf16.mxu0 0
        %808 = vmatpush1.bf16.msra.mxu0 0
        %809 = vmatprep.subr.bf16.mxu0 0
        %810 = vmatpush1.bf16.msra.mxu0 0
        %811 = vmatprep.subr.bf16.mxu0 0
        %812 = vmatpush1.bf16.msra.mxu0 0
        %813 = vmatprep.subr.bf16.mxu0 0
        %814 = vmatpush1.bf16.msra.mxu0 0
        %815 = vmatprep.subr.bf16.mxu0 0
        %816 = vmatpush1.bf16.msra.mxu0 0
        %817 = vmatprep.subr.bf16.mxu0 0
        %818 = vmatpush1.bf16.msra.mxu0 0
        %819 = vmatprep.subr.bf16.mxu0 0
        %820 = vmatpush1.bf16.msra.mxu0 0
        %821 = vmatprep.subr.bf16.mxu0 0
        %822 = vmatpush1.bf16.msra.mxu0 0
        %823 = vmatprep.subr.bf16.mxu0 0
        %824 = vmatpush1.bf16.msra.mxu0 0
        %825 = vmatprep.subr.bf16.mxu0 0
        %826 = vmatpush1.bf16.msra.mxu0 0
        %827 = vmatprep.subr.bf16.mxu0 0
        %828 = vmatpush1.bf16.msra.mxu0 0
        %829 = vmatprep.subr.bf16.mxu0 0
        %830 = vmatpush1.bf16.msra.mxu0 0
        %831 = vmatprep.subr.bf16.mxu0 0
        %832 = vmatpush1.bf16.msra.mxu0 0
        %833 = vmatprep.mubr.bf16.mxu0 0
        %834 = vmatmul.mubr.bf16.gmra.mrb[0].mxu0 %v799
        %v835 = vpop.f32.mrb[0].mxu0
        %v836 = vadd.f32 %v784, %v835
        %v837 = vpop.f32.mrb[0].mxu0
        %v838 = vpop.f32.mrb[0].mxu0
        %v839 = vpop.f32.mrb[0].mxu0
        %840 = vdwg.mxu0
        %v841 = vld [vmem:[#allocation9] sm:$0xf]
        %v842 = vld [vmem:[#allocation9 + $0x4] sm:$0xf]
        %v843 = vld [vmem:[#allocation9 + $0x8] sm:$0xf]
        %v844 = vld [vmem:[#allocation9 + $0xc] sm:$0xf]
        %v845 = vld [vmem:[%s6] sm:$0x1]
        %v847 = vlaneseq
        %v848 = vshrl.u32 %v847, 7
        %v849 = vsub.s32 0, %v848
        %v850 = vrot.slane %v845, %v849
        %v856 = vunpack.c.l.b16 %v841
        %v857 = vunpack.c.l.b16 %v842
        %v858 = vunpack.c.l.b16 %v843
        %v859 = vunpack.c.l.b16 %v844
        %v860 = vpack.c.b16 %v857, %v856
        %v861 = vpack.c.b16 %v859, %v858
        %864 = vmatprep.subr.bf16.mxu0 0
        %865 = vmatpush1.bf16.msra.mxu0 %v860
        %866 = vmatprep.subr.bf16.mxu0 0
        %867 = vmatpush1.bf16.msra.mxu0 %v861
        %868 = vmatprep.subr.bf16.mxu0 0
        %869 = vmatpush1.bf16.msra.mxu0 0
        %870 = vmatprep.subr.bf16.mxu0 0
        %871 = vmatpush1.bf16.msra.mxu0 0
        %872 = vmatprep.subr.bf16.mxu0 0
        %873 = vmatpush1.bf16.msra.mxu0 0
        %874 = vmatprep.subr.bf16.mxu0 0
        %875 = vmatpush1.bf16.msra.mxu0 0
        %876 = vmatprep.subr.bf16.mxu0 0
        %877 = vmatpush1.bf16.msra.mxu0 0
        %878 = vmatprep.subr.bf16.mxu0 0
        %879 = vmatpush1.bf16.msra.mxu0 0
        %880 = vmatprep.subr.bf16.mxu0 0
        %881 = vmatpush1.bf16.msra.mxu0 0
        %882 = vmatprep.subr.bf16.mxu0 0
        %883 = vmatpush1.bf16.msra.mxu0 0
        %884 = vmatprep.subr.bf16.mxu0 0
        %885 = vmatpush1.bf16.msra.mxu0 0
        %886 = vmatprep.subr.bf16.mxu0 0
        %887 = vmatpush1.bf16.msra.mxu0 0
        %888 = vmatprep.subr.bf16.mxu0 0
        %889 = vmatpush1.bf16.msra.mxu0 0
        %890 = vmatprep.subr.bf16.mxu0 0
        %891 = vmatpush1.bf16.msra.mxu0 0
        %892 = vmatprep.subr.bf16.mxu0 0
        %893 = vmatpush1.bf16.msra.mxu0 0
        %894 = vmatprep.subr.bf16.mxu0 0
        %895 = vmatpush1.bf16.msra.mxu0 0
        %896 = vmatprep.mubr.bf16.mxu0 0
        %897 = vmatmul.mubr.bf16.gmra.mrb[0].mxu0 %v799
        %v898 = vpop.f32.mrb[0].mxu0
        %v899 = vadd.f32 %v850, %v898
        %v900 = vpop.f32.mrb[0].mxu0
        %v901 = vpop.f32.mrb[0].mxu0
        %v902 = vpop.f32.mrb[0].mxu0
        %903 = vdwg.mxu0
        %v904 = vld [vmem:[#allocation11] sm:$0xf]
        %v905 = vld [vmem:[#allocation11 + $0x4] sm:$0xf]
        %v906 = vld [vmem:[#allocation11 + $0x8] sm:$0xf]
        %v907 = vld [vmem:[#allocation11 + $0xc] sm:$0xf]
        %v908 = vld [vmem:[%s8] sm:$0x1]
        %v910 = vlaneseq
        %v911 = vshrl.u32 %v910, 7
        %v912 = vsub.s32 0, %v911
        %v913 = vrot.slane %v908, %v912
        %v919 = vunpack.c.l.b16 %v904
        %v920 = vunpack.c.l.b16 %v905
        %v921 = vunpack.c.l.b16 %v906
        %v922 = vunpack.c.l.b16 %v907
        %v923 = vpack.c.b16 %v920, %v919
        %v924 = vpack.c.b16 %v922, %v921
        %927 = vmatprep.subr.bf16.mxu0 0
        %928 = vmatpush1.bf16.msra.mxu0 %v923
        %929 = vmatprep.subr.bf16.mxu0 0
        %930 = vmatpush1.bf16.msra.mxu0 %v924
        %931 = vmatprep.subr.bf16.mxu0 0
        %932 = vmatpush1.bf16.msra.mxu0 0
        %933 = vmatprep.subr.bf16.mxu0 0
        %934 = vmatpush1.bf16.msra.mxu0 0
        %935 = vmatprep.subr.bf16.mxu0 0
        %936 = vmatpush1.bf16.msra.mxu0 0
        %937 = vmatprep.subr.bf16.mxu0 0
        %938 = vmatpush1.bf16.msra.mxu0 0
        %939 = vmatprep.subr.bf16.mxu0 0
        %940 = vmatpush1.bf16.msra.mxu0 0
        %941 = vmatprep.subr.bf16.mxu0 0
        %942 = vmatpush1.bf16.msra.mxu0 0
        %943 = vmatprep.subr.bf16.mxu0 0
        %944 = vmatpush1.bf16.msra.mxu0 0
        %945 = vmatprep.subr.bf16.mxu0 0
        %946 = vmatpush1.bf16.msra.mxu0 0
        %947 = vmatprep.subr.bf16.mxu0 0
        %948 = vmatpush1.bf16.msra.mxu0 0
        %949 = vmatprep.subr.bf16.mxu0 0
        %950 = vmatpush1.bf16.msra.mxu0 0
        %951 = vmatprep.subr.bf16.mxu0 0
        %952 = vmatpush1.bf16.msra.mxu0 0
        %953 = vmatprep.subr.bf16.mxu0 0
        %954 = vmatpush1.bf16.msra.mxu0 0
        %955 = vmatprep.subr.bf16.mxu0 0
        %956 = vmatpush1.bf16.msra.mxu0 0
        %957 = vmatprep.subr.bf16.mxu0 0
        %958 = vmatpush1.bf16.msra.mxu0 0
        %959 = vmatprep.mubr.bf16.mxu0 0
        %960 = vmatmul.mubr.bf16.gmra.mrb[0].mxu0 %v799
        %v961 = vpop.f32.mrb[0].mxu0
        %v962 = vadd.f32 %v913, %v961
        %v963 = vpop.f32.mrb[0].mxu0
        %v964 = vpop.f32.mrb[0].mxu0
        %v965 = vpop.f32.mrb[0].mxu0
        %966 = vdwg.mxu0
        %v967 = vld [vmem:[#allocation6] sm:$0xff]
        %v968 = vadd.f32 %v836, %v967
        %v969 = vld [vmem:[%s9] sm:$0x1]
        %v970 = vmul.f32 %v968, %v968
        %v971 = vsel %vm758, %v970, 0.0
        %972 = vadd.xlane.f32.xlu0 %v971
        %v973 = vpop.xlane.xlu0 %972
        %v974 = vmul.f32 %v973, %v762
        %v975 = vadd.f32 %v974, 1e-05
        %v976 = vrsqrt.pop %v975
        %v977 = vmul.f32 %v968, %v976
        %v979 = vlaneseq
        %v980 = vshrl.u32 %v979, 7
        %v981 = vsub.s32 0, %v980
        %v982 = vrot.slane %v969, %v981
        %v984 = vmul.f32 %v977, %v982
        %v985 = vadd.f32 %v899, %v967
        %v986 = vld [vmem:[#allocation12] sm:$0x1]
        %v987 = vmul.f32 %v985, %v985
        %v988 = vsel %vm758, %v987, 0.0
        %989 = vadd.xlane.f32.xlu0 %v988
        %v990 = vpop.xlane.xlu0 %989
        %v991 = vmul.f32 %v990, %v762
        %v992 = vadd.f32 %v991, 1e-05
        %v993 = vrsqrt.pop %v992
        %v994 = vmul.f32 %v985, %v993
        %v996 = vlaneseq
        %v997 = vshrl.u32 %v996, 7
        %v998 = vsub.s32 0, %v997
        %v999 = vrot.slane %v986, %v998
        %v1001 = vmul.f32 %v994, %v999
        %v1002 = vpack.c.bf16 %v984, %v984
        %v1003 = vpack.c.bf16 %v1001, %v1001
        %v1004 = vpack.c.bf16 %v962, %v962
        %vm1005 = vcmask 64512
        %v1007 = vsel %vm1005, %v1002, 0
        %v1010 = vsel %vm1005, %v1003, 0
        %1012 = vmatprep.subr.bf16.mxu0 0
        %1013 = vmatpush1.bf16.xpose.msra.mxu0 %v1010
        %1014 = vmatprep.subr.bf16.mxu0 0
        %1015 = vmatpush1.bf16.xpose.msra.mxu0 0
        %1016 = vmatprep.subr.bf16.mxu0 0
        %1017 = vmatpush1.bf16.xpose.msra.mxu0 0
        %1018 = vmatprep.subr.bf16.mxu0 0
        %1019 = vmatpush1.bf16.xpose.msra.mxu0 0
        %1020 = vmatprep.subr.bf16.mxu0 0
        %1021 = vmatpush1.bf16.xpose.msra.mxu0 0
        %1022 = vmatprep.subr.bf16.mxu0 0
        %1023 = vmatpush1.bf16.xpose.msra.mxu0 0
        %1024 = vmatprep.subr.bf16.mxu0 0
        %1025 = vmatpush1.bf16.xpose.msra.mxu0 0
        %1026 = vmatprep.subr.bf16.mxu0 0
        %1027 = vmatpush1.bf16.xpose.msra.mxu0 0
        %1028 = vmatprep.subr.bf16.mxu0 0
        %1029 = vmatpush1.bf16.xpose.msra.mxu0 0
        %1030 = vmatprep.subr.bf16.mxu0 0
        %1031 = vmatpush1.bf16.xpose.msra.mxu0 0
        %1032 = vmatprep.subr.bf16.mxu0 0
        %1033 = vmatpush1.bf16.xpose.msra.mxu0 0
        %1034 = vmatprep.subr.bf16.mxu0 0
        %1035 = vmatpush1.bf16.xpose.msra.mxu0 0
        %1036 = vmatprep.subr.bf16.mxu0 0
        %1037 = vmatpush1.bf16.xpose.msra.mxu0 0
        %1038 = vmatprep.subr.bf16.mxu0 0
        %1039 = vmatpush1.bf16.xpose.msra.mxu0 0
        %1040 = vmatprep.subr.bf16.mxu0 0
        %1041 = vmatpush1.bf16.xpose.msra.mxu0 0
        %1042 = vmatprep.subr.bf16.mxu0 0
        %1043 = vmatpush1.bf16.xpose.msra.mxu0 0
        %1044 = vmatprep.mubr.bf16.mxu0 0
        %1045 = vmatmul.mubr.bf16.gmra.mrb[0].mxu0 %v1007
        %v1046 = vpop.f32.mrb[0].mxu0
        %v1047 = vadd.f32 0.0, %v1046
        %v1048 = vpop.f32.mrb[0].mxu0
        %v1049 = vpop.f32.mrb[0].mxu0
        %v1050 = vpop.f32.mrb[0].mxu0
        %1051 = vdwg.mxu0
        %v1052 = vmul.f32 %v1047, 0.35355338
        %v1053 = vsel %vm1005, %v1052, -inf
        %1054 = vmax.xlane.f32.xlu0 %v1053
        %v1055 = vpop.xlane.xlu0 %1054
        %v1056 = vsub.f32 %v1052, %v1055
        %v1057 = vmul.f32 %v1056, 1.442695
        %v1058 = vpow.pop %v1057
        %v1059 = vsel %vm1005, %v1058, 0.0
        %1060 = vadd.xlane.f32.xlu0 %v1059
        %v1061 = vpop.xlane.xlu0 %1060
        %v1062 = vrcp.pop %v1061
        %v1063 = vmul.f32 %v1058, %v1062
        %v1064 = vpack.c.bf16 %v1063, %v1063
        %v1066 = vsel %vm1005, %v1064, 0
        %vm1068 = vcmask 1043456
        %v1070 = vsel %vm1068, %v1004, 0
        %1072 = vmatprep.subr.bf16.mxu0 0
        %1073 = vmatpush1.bf16.msra.mxu0 %v1070
        %1074 = vmatprep.subr.bf16.mxu0 0
        %1075 = vmatpush1.bf16.msra.mxu0 0
        %1076 = vmatprep.subr.bf16.mxu0 0
        %1077 = vmatpush1.bf16.msra.mxu0 0
        %1078 = vmatprep.subr.bf16.mxu0 0
        %1079 = vmatpush1.bf16.msra.mxu0 0
        %1080 = vmatprep.subr.bf16.mxu0 0
        %1081 = vmatpush1.bf16.msra.mxu0 0
        %1082 = vmatprep.subr.bf16.mxu0 0
        %1083 = vmatpush1.bf16.msra.mxu0 0
        %1084 = vmatprep.subr.bf16.mxu0 0
        %1085 = vmatpush1.bf16.msra.mxu0 0
        %1086 = vmatprep.subr.bf16.mxu0 0
        %1087 = vmatpush1.bf16.msra.mxu0 0
        %1088 = vmatprep.subr.bf16.mxu0 0
        %1089 = vmatpush1.bf16.msra.mxu0 0
        %1090 = vmatprep.subr.bf16.mxu0 0
        %1091 = vmatpush1.bf16.msra.mxu0 0
        %1092 = vmatprep.subr.bf16.mxu0 0
        %1093 = vmatpush1.bf16.msra.mxu0 0
        %1094 = vmatprep.subr.bf16.mxu0 0
        %1095 = vmatpush1.bf16.msra.mxu0 0
        %1096 = vmatprep.subr.bf16.mxu0 0
        %1097 = vmatpush1.bf16.msra.mxu0 0
        %1098 = vmatprep.subr.bf16.mxu0 0
        %1099 = vmatpush1.bf16.msra.mxu0 0
        %1100 = vmatprep.subr.bf16.mxu0 0
        %1101 = vmatpush1.bf16.msra.mxu0 0
        %1102 = vmatprep.subr.bf16.mxu0 0
        %1103 = vmatpush1.bf16.msra.mxu0 0
        %1104 = vmatprep.mubr.bf16.mxu0 0
        %1105 = vmatmul.mubr.bf16.gmra.mrb[0].mxu0 %v1066
        %v1106 = vpop.f32.mrb[0].mxu0
        %v1107 = vadd.f32 0.0, %v1106
        %v1108 = vpop.f32.mrb[0].mxu0
        %v1109 = vpop.f32.mrb[0].mxu0
        %v1110 = vpop.f32.mrb[0].mxu0
        %1111 = vdwg.mxu0
        %1113 = vrot.lane.b32.xlu0 %v1002, 120
        %v1114 = vpop.permute.xlu0 %1113
        %1116 = vrot.lane.b32.xlu0 %v1003, 120
        %v1117 = vpop.permute.xlu0 %1116
        %v1119 = vsel %vm1005, %v1114, 0
        %v1122 = vsel %vm1005, %v1117, 0
        %1124 = vmatprep.subr.bf16.mxu0 0
        %1125 = vmatpush1.bf16.xpose.msra.mxu0 %v1122
        %1126 = vmatprep.subr.bf16.mxu0 0
        %1127 = vmatpush1.bf16.xpose.msra.mxu0 0
        %1128 = vmatprep.subr.bf16.mxu0 0
        %1129 = vmatpush1.bf16.xpose.msra.mxu0 0
        %1130 = vmatprep.subr.bf16.mxu0 0
        %1131 = vmatpush1.bf16.xpose.msra.mxu0 0
        %1132 = vmatprep.subr.bf16.mxu0 0
        %1133 = vmatpush1.bf16.xpose.msra.mxu0 0
        %1134 = vmatprep.subr.bf16.mxu0 0
        %1135 = vmatpush1.bf16.xpose.msra.mxu0 0
        %1136 = vmatprep.subr.bf16.mxu0 0
        %1137 = vmatpush1.bf16.xpose.msra.mxu0 0
        %1138 = vmatprep.subr.bf16.mxu0 0
        %1139 = vmatpush1.bf16.xpose.msra.mxu0 0
        %1140 = vmatprep.subr.bf16.mxu0 0
        %1141 = vmatpush1.bf16.xpose.msra.mxu0 0
        %1142 = vmatprep.subr.bf16.mxu0 0
        %1143 = vmatpush1.bf16.xpose.msra.mxu0 0
        %1144 = vmatprep.subr.bf16.mxu0 0
        %1145 = vmatpush1.bf16.xpose.msra.mxu0 0
        %1146 = vmatprep.subr.bf16.mxu0 0
        %1147 = vmatpush1.bf16.xpose.msra.mxu0 0
        %1148 = vmatprep.subr.bf16.mxu0 0
        %1149 = vmatpush1.bf16.xpose.msra.mxu0 0
        %1150 = vmatprep.subr.bf16.mxu0 0
        %1151 = vmatpush1.bf16.xpose.msra.mxu0 0
        %1152 = vmatprep.subr.bf16.mxu0 0
        %1153 = vmatpush1.bf16.xpose.msra.mxu0 0
        %1154 = vmatprep.subr.bf16.mxu0 0
        %1155 = vmatpush1.bf16.xpose.msra.mxu0 0
        %1156 = vmatprep.mubr.bf16.mxu0 0
        %1157 = vmatmul.mubr.bf16.gmra.mrb[0].mxu0 %v1119
        %v1158 = vpop.f32.mrb[0].mxu0
        %v1159 = vadd.f32 0.0, %v1158
        %v1160 = vpop.f32.mrb[0].mxu0
        %v1161 = vpop.f32.mrb[0].mxu0
        %v1162 = vpop.f32.mrb[0].mxu0
        %1163 = vdwg.mxu0
        %v1164 = vmul.f32 %v1159, 0.35355338
        %v1165 = vsel %vm1005, %v1164, -inf
        %1166 = vmax.xlane.f32.xlu0 %v1165
        %v1167 = vpop.xlane.xlu0 %1166
        %v1168 = vsub.f32 %v1164, %v1167
        %v1169 = vmul.f32 %v1168, 1.442695
        %v1170 = vpow.pop %v1169
        %v1171 = vsel %vm1005, %v1170, 0.0
        %1172 = vadd.xlane.f32.xlu0 %v1171
        %v1173 = vpop.xlane.xlu0 %1172
        %v1174 = vrcp.pop %v1173
        %v1175 = vmul.f32 %v1170, %v1174
        %v1176 = vpack.c.bf16 %v1175, %v1175
        %1178 = vrot.lane.b32.xlu0 %v1004, 120
        %v1179 = vpop.permute.xlu0 %1178
        %v1181 = vsel %vm1005, %v1176, 0
        %v1184 = vsel %vm1068, %v1179, 0
        %1186 = vmatprep.subr.bf16.mxu0 0
        %1187 = vmatpush1.bf16.msra.mxu0 %v1184
        %1188 = vmatprep.subr.bf16.mxu0 0
        %1189 = vmatpush1.bf16.msra.mxu0 0
        %1190 = vmatprep.subr.bf16.mxu0 0
        %1191 = vmatpush1.bf16.msra.mxu0 0
        %1192 = vmatprep.subr.bf16.mxu0 0
        %1193 = vmatpush1.bf16.msra.mxu0 0
        %1194 = vmatprep.subr.bf16.mxu0 0
        %1195 = vmatpush1.bf16.msra.mxu0 0
        %1196 = vmatprep.subr.bf16.mxu0 0
        %1197 = vmatpush1.bf16.msra.mxu0 0
        %1198 = vmatprep.subr.bf16.mxu0 0
        %1199 = vmatpush1.bf16.msra.mxu0 0
        %1200 = vmatprep.subr.bf16.mxu0 0
        %1201 = vmatpush1.bf16.msra.mxu0 0
        %1202 = vmatprep.subr.bf16.mxu0 0
        %1203 = vmatpush1.bf16.msra.mxu0 0
        %1204 = vmatprep.subr.bf16.mxu0 0
        %1205 = vmatpush1.bf16.msra.mxu0 0
        %1206 = vmatprep.subr.bf16.mxu0 0
        %1207 = vmatpush1.bf16.msra.mxu0 0
        %1208 = vmatprep.subr.bf16.mxu0 0
        %1209 = vmatpush1.bf16.msra.mxu0 0
        %1210 = vmatprep.subr.bf16.mxu0 0
        %1211 = vmatpush1.bf16.msra.mxu0 0
        %1212 = vmatprep.subr.bf16.mxu0 0
        %1213 = vmatpush1.bf16.msra.mxu0 0
        %1214 = vmatprep.subr.bf16.mxu0 0
        %1215 = vmatpush1.bf16.msra.mxu0 0
        %1216 = vmatprep.subr.bf16.mxu0 0
        %1217 = vmatpush1.bf16.msra.mxu0 0
        %1218 = vmatprep.mubr.bf16.mxu0 0
        %1219 = vmatmul.mubr.bf16.gmra.mrb[0].mxu0 %v1181
        %v1220 = vpop.f32.mrb[0].mxu0
        %v1221 = vadd.f32 0.0, %v1220
        %v1222 = vpop.f32.mrb[0].mxu0
        %v1223 = vpop.f32.mrb[0].mxu0
        %v1224 = vpop.f32.mrb[0].mxu0
        %1225 = vdwg.mxu0
        %1226 = vrot.lane.b32.xlu0 %v1002, 112
        %v1227 = vpop.permute.xlu0 %1226
        %1228 = vrot.lane.b32.xlu0 %v1003, 112
        %v1229 = vpop.permute.xlu0 %1228
        %v1231 = vsel %vm1005, %v1227, 0
        %v1234 = vsel %vm1005, %v1229, 0
        %1236 = vmatprep.subr.bf16.mxu0 0
        %1237 = vmatpush1.bf16.xpose.msra.mxu0 %v1234
        %1238 = vmatprep.subr.bf16.mxu0 0
        %1239 = vmatpush1.bf16.xpose.msra.mxu0 0
        %1240 = vmatprep.subr.bf16.mxu0 0
        %1241 = vmatpush1.bf16.xpose.msra.mxu0 0
        %1242 = vmatprep.subr.bf16.mxu0 0
        %1243 = vmatpush1.bf16.xpose.msra.mxu0 0
        %1244 = vmatprep.subr.bf16.mxu0 0
        %1245 = vmatpush1.bf16.xpose.msra.mxu0 0
        %1246 = vmatprep.subr.bf16.mxu0 0
        %1247 = vmatpush1.bf16.xpose.msra.mxu0 0
        %1248 = vmatprep.subr.bf16.mxu0 0
        %1249 = vmatpush1.bf16.xpose.msra.mxu0 0
        %1250 = vmatprep.subr.bf16.mxu0 0
        %1251 = vmatpush1.bf16.xpose.msra.mxu0 0
        %1252 = vmatprep.subr.bf16.mxu0 0
        %1253 = vmatpush1.bf16.xpose.msra.mxu0 0
        %1254 = vmatprep.subr.bf16.mxu0 0
        %1255 = vmatpush1.bf16.xpose.msra.mxu0 0
        %1256 = vmatprep.subr.bf16.mxu0 0
        %1257 = vmatpush1.bf16.xpose.msra.mxu0 0
        %1258 = vmatprep.subr.bf16.mxu0 0
        %1259 = vmatpush1.bf16.xpose.msra.mxu0 0
        %1260 = vmatprep.subr.bf16.mxu0 0
        %1261 = vmatpush1.bf16.xpose.msra.mxu0 0
        %1262 = vmatprep.subr.bf16.mxu0 0
        %1263 = vmatpush1.bf16.xpose.msra.mxu0 0
        %1264 = vmatprep.subr.bf16.mxu0 0
        %1265 = vmatpush1.bf16.xpose.msra.mxu0 0
        %1266 = vmatprep.subr.bf16.mxu0 0
        %1267 = vmatpush1.bf16.xpose.msra.mxu0 0
        %1268 = vmatprep.mubr.bf16.mxu0 0
        %1269 = vmatmul.mubr.bf16.gmra.mrb[0].mxu0 %v1231
        %v1270 = vpop.f32.mrb[0].mxu0
        %v1271 = vadd.f32 0.0, %v1270
        %v1272 = vpop.f32.mrb[0].mxu0
        %v1273 = vpop.f32.mrb[0].mxu0
        %v1274 = vpop.f32.mrb[0].mxu0
        %1275 = vdwg.mxu0
        %v1276 = vmul.f32 %v1271, 0.35355338
        %v1277 = vsel %vm1005, %v1276, -inf
        %1278 = vmax.xlane.f32.xlu0 %v1277
        %v1279 = vpop.xlane.xlu0 %1278
        %v1280 = vsub.f32 %v1276, %v1279
        %v1281 = vmul.f32 %v1280, 1.442695
        %v1282 = vpow.pop %v1281
        %v1283 = vsel %vm1005, %v1282, 0.0
        %1284 = vadd.xlane.f32.xlu0 %v1283
        %v1285 = vpop.xlane.xlu0 %1284
        %v1286 = vrcp.pop %v1285
        %v1287 = vmul.f32 %v1282, %v1286
        %v1288 = vpack.c.bf16 %v1287, %v1287
        %1289 = vrot.lane.b32.xlu0 %v1004, 112
        %v1290 = vpop.permute.xlu0 %1289
        %v1292 = vsel %vm1005, %v1288, 0
        %v1295 = vsel %vm1068, %v1290, 0
        %1297 = vmatprep.subr.bf16.mxu0 0
        %1298 = vmatpush1.bf16.msra.mxu0 %v1295
        %1299 = vmatprep.subr.bf16.mxu0 0
        %1300 = vmatpush1.bf16.msra.mxu0 0
        %1301 = vmatprep.subr.bf16.mxu0 0
        %1302 = vmatpush1.bf16.msra.mxu0 0
        %1303 = vmatprep.subr.bf16.mxu0 0
        %1304 = vmatpush1.bf16.msra.mxu0 0
        %1305 = vmatprep.subr.bf16.mxu0 0
        %1306 = vmatpush1.bf16.msra.mxu0 0
        %1307 = vmatprep.subr.bf16.mxu0 0
        %1308 = vmatpush1.bf16.msra.mxu0 0
        %1309 = vmatprep.subr.bf16.mxu0 0
        %1310 = vmatpush1.bf16.msra.mxu0 0
        %1311 = vmatprep.subr.bf16.mxu0 0
        %1312 = vmatpush1.bf16.msra.mxu0 0
        %1313 = vmatprep.subr.bf16.mxu0 0
        %1314 = vmatpush1.bf16.msra.mxu0 0
        %1315 = vmatprep.subr.bf16.mxu0 0
        %1316 = vmatpush1.bf16.msra.mxu0 0
        %1317 = vmatprep.subr.bf16.mxu0 0
        %1318 = vmatpush1.bf16.msra.mxu0 0
        %1319 = vmatprep.subr.bf16.mxu0 0
        %1320 = vmatpush1.bf16.msra.mxu0 0
        %1321 = vmatprep.subr.bf16.mxu0 0
        %1322 = vmatpush1.bf16.msra.mxu0 0
        %1323 = vmatprep.subr.bf16.mxu0 0
        %1324 = vmatpush1.bf16.msra.mxu0 0
        %1325 = vmatprep.subr.bf16.mxu0 0
        %1326 = vmatpush1.bf16.msra.mxu0 0
        %1327 = vmatprep.subr.bf16.mxu0 0
        %1328 = vmatpush1.bf16.msra.mxu0 0
        %1329 = vmatprep.mubr.bf16.mxu0 0
        %1330 = vmatmul.mubr.bf16.gmra.mrb[0].mxu0 %v1292
        %v1331 = vpop.f32.mrb[0].mxu0
        %v1332 = vadd.f32 0.0, %v1331
        %v1333 = vpop.f32.mrb[0].mxu0
        %v1334 = vpop.f32.mrb[0].mxu0
        %v1335 = vpop.f32.mrb[0].mxu0
        %1336 = vdwg.mxu0
        %1337 = vrot.lane.b32.xlu0 %v1002, 104
        %v1338 = vpop.permute.xlu0 %1337
        %1339 = vrot.lane.b32.xlu0 %v1003, 104
        %v1340 = vpop.permute.xlu0 %1339
        %v1342 = vsel %vm1005, %v1338, 0
        %v1345 = vsel %vm1005, %v1340, 0
        %1347 = vmatprep.subr.bf16.mxu0 0
        %1348 = vmatpush1.bf16.xpose.msra.mxu0 %v1345
        %1349 = vmatprep.subr.bf16.mxu0 0
        %1350 = vmatpush1.bf16.xpose.msra.mxu0 0
        %1351 = vmatprep.subr.bf16.mxu0 0
        %1352 = vmatpush1.bf16.xpose.msra.mxu0 0
        %1353 = vmatprep.subr.bf16.mxu0 0
        %1354 = vmatpush1.bf16.xpose.msra.mxu0 0
        %1355 = vmatprep.subr.bf16.mxu0 0
        %1356 = vmatpush1.bf16.xpose.msra.mxu0 0
        %1357 = vmatprep.subr.bf16.mxu0 0
        %1358 = vmatpush1.bf16.xpose.msra.mxu0 0
        %1359 = vmatprep.subr.bf16.mxu0 0
        %1360 = vmatpush1.bf16.xpose.msra.mxu0 0
        %1361 = vmatprep.subr.bf16.mxu0 0
        %1362 = vmatpush1.bf16.xpose.msra.mxu0 0
        %1363 = vmatprep.subr.bf16.mxu0 0
        %1364 = vmatpush1.bf16.xpose.msra.mxu0 0
        %1365 = vmatprep.subr.bf16.mxu0 0
        %1366 = vmatpush1.bf16.xpose.msra.mxu0 0
        %1367 = vmatprep.subr.bf16.mxu0 0
        %1368 = vmatpush1.bf16.xpose.msra.mxu0 0
        %1369 = vmatprep.subr.bf16.mxu0 0
        %1370 = vmatpush1.bf16.xpose.msra.mxu0 0
        %1371 = vmatprep.subr.bf16.mxu0 0
        %1372 = vmatpush1.bf16.xpose.msra.mxu0 0
        %1373 = vmatprep.subr.bf16.mxu0 0
        %1374 = vmatpush1.bf16.xpose.msra.mxu0 0
        %1375 = vmatprep.subr.bf16.mxu0 0
        %1376 = vmatpush1.bf16.xpose.msra.mxu0 0
        %1377 = vmatprep.subr.bf16.mxu0 0
        %1378 = vmatpush1.bf16.xpose.msra.mxu0 0
        %1379 = vmatprep.mubr.bf16.mxu0 0
        %1380 = vmatmul.mubr.bf16.gmra.mrb[0].mxu0 %v1342
        %v1381 = vpop.f32.mrb[0].mxu0
        %v1382 = vadd.f32 0.0, %v1381
        %v1383 = vpop.f32.mrb[0].mxu0
        %v1384 = vpop.f32.mrb[0].mxu0
        %v1385 = vpop.f32.mrb[0].mxu0
        %1386 = vdwg.mxu0
        %v1387 = vmul.f32 %v1382, 0.35355338
        %v1388 = vsel %vm1005, %v1387, -inf
        %1389 = vmax.xlane.f32.xlu0 %v1388
        %v1390 = vpop.xlane.xlu0 %1389
        %v1391 = vsub.f32 %v1387, %v1390
        %v1392 = vmul.f32 %v1391, 1.442695
        %v1393 = vpow.pop %v1392
        %v1394 = vsel %vm1005, %v1393, 0.0
        %1395 = vadd.xlane.f32.xlu0 %v1394
        %v1396 = vpop.xlane.xlu0 %1395
        %v1397 = vrcp.pop %v1396
        %v1398 = vmul.f32 %v1393, %v1397
        %v1399 = vpack.c.bf16 %v1398, %v1398
        %1400 = vrot.lane.b32.xlu0 %v1004, 104
        %v1401 = vpop.permute.xlu0 %1400
        %v1403 = vsel %vm1005, %v1399, 0
        %v1406 = vsel %vm1068, %v1401, 0
        %1408 = vmatprep.subr.bf16.mxu0 0
        %1409 = vmatpush1.bf16.msra.mxu0 %v1406
        %1410 = vmatprep.subr.bf16.mxu0 0
        %1411 = vmatpush1.bf16.msra.mxu0 0
        %1412 = vmatprep.subr.bf16.mxu0 0
        %1413 = vmatpush1.bf16.msra.mxu0 0
        %1414 = vmatprep.subr.bf16.mxu0 0
        %1415 = vmatpush1.bf16.msra.mxu0 0
        %1416 = vmatprep.subr.bf16.mxu0 0
        %1417 = vmatpush1.bf16.msra.mxu0 0
        %1418 = vmatprep.subr.bf16.mxu0 0
        %1419 = vmatpush1.bf16.msra.mxu0 0
        %1420 = vmatprep.subr.bf16.mxu0 0
        %1421 = vmatpush1.bf16.msra.mxu0 0
        %1422 = vmatprep.subr.bf16.mxu0 0
        %1423 = vmatpush1.bf16.msra.mxu0 0
        %1424 = vmatprep.subr.bf16.mxu0 0
        %1425 = vmatpush1.bf16.msra.mxu0 0
        %1426 = vmatprep.subr.bf16.mxu0 0
        %1427 = vmatpush1.bf16.msra.mxu0 0
        %1428 = vmatprep.subr.bf16.mxu0 0
        %1429 = vmatpush1.bf16.msra.mxu0 0
        %1430 = vmatprep.subr.bf16.mxu0 0
        %1431 = vmatpush1.bf16.msra.mxu0 0
        %1432 = vmatprep.subr.bf16.mxu0 0
        %1433 = vmatpush1.bf16.msra.mxu0 0
        %1434 = vmatprep.subr.bf16.mxu0 0
        %1435 = vmatpush1.bf16.msra.mxu0 0
        %1436 = vmatprep.subr.bf16.mxu0 0
        %1437 = vmatpush1.bf16.msra.mxu0 0
        %1438 = vmatprep.subr.bf16.mxu0 0
        %1439 = vmatpush1.bf16.msra.mxu0 0
        %1440 = vmatprep.mubr.bf16.mxu0 0
        %1441 = vmatmul.mubr.bf16.gmra.mrb[0].mxu0 %v1403
        %v1442 = vpop.f32.mrb[0].mxu0
        %v1443 = vadd.f32 0.0, %v1442
        %v1444 = vpop.f32.mrb[0].mxu0
        %v1445 = vpop.f32.mrb[0].mxu0
        %v1446 = vpop.f32.mrb[0].mxu0
        %1447 = vdwg.mxu0
        %1449 = vrot.lane.b32.xlu0 %v1221, 8
        %v1450 = vpop.permute.xlu0 %1449
        %1453 = vrot.lane.b32.xlu0 %v1332, 16
        %v1454 = vpop.permute.xlu0 %1453
        %1457 = vrot.lane.b32.xlu0 %v1443, 24
        %v1458 = vpop.permute.xlu0 %1457
        %v1460 = vsel %vm1005, %v1107, %v1450
        %vm1461 = vcmask 130048
        %v1462 = vsel %vm1461, %v1460, %v1454
        %vm1463 = vcmask 195584
        %v1464 = vsel %vm1463, %v1462, %v1458
        %v1465 = vpack.c.bf16 %v1464, %v1464
        %v1466 = vld [vmem:[#allocation14] sm:$0xf]
        %v1467 = vld [vmem:[#allocation14 + $0x4] sm:$0xf]
        %v1468 = vld [vmem:[#allocation14 + $0x8] sm:$0xf]
        %v1469 = vld [vmem:[#allocation14 + $0xc] sm:$0xf]
        %v1470 = vld [vmem:[#allocation15] sm:$0x1]
        %v1472 = vlaneseq
        %v1473 = vshrl.u32 %v1472, 7
        %v1474 = vsub.s32 0, %v1473
        %v1475 = vrot.slane %v1470, %v1474
        %v1481 = vunpack.c.l.b16 %v1466
        %v1482 = vunpack.c.l.b16 %v1467
        %v1483 = vunpack.c.l.b16 %v1468
        %v1484 = vunpack.c.l.b16 %v1469
        %v1485 = vpack.c.b16 %v1482, %v1481
        %v1486 = vpack.c.b16 %v1484, %v1483
        %v1490 = vsel %vm758, %v1465, 0
        %1492 = vmatprep.subr.bf16.mxu0 0
        %1493 = vmatpush1.bf16.msra.mxu0 %v1485
        %1494 = vmatprep.subr.bf16.mxu0 0
        %1495 = vmatpush1.bf16.msra.mxu0 %v1486
        %1496 = vmatprep.subr.bf16.mxu0 0
        %1497 = vmatpush1.bf16.msra.mxu0 0
        %1498 = vmatprep.subr.bf16.mxu0 0
        %1499 = vmatpush1.bf16.msra.mxu0 0
        %1500 = vmatprep.subr.bf16.mxu0 0
        %1501 = vmatpush1.bf16.msra.mxu0 0
        %1502 = vmatprep.subr.bf16.mxu0 0
        %1503 = vmatpush1.bf16.msra.mxu0 0
        %1504 = vmatprep.subr.bf16.mxu0 0
        %1505 = vmatpush1.bf16.msra.mxu0 0
        %1506 = vmatprep.subr.bf16.mxu0 0
        %1507 = vmatpush1.bf16.msra.mxu0 0
        %1508 = vmatprep.subr.bf16.mxu0 0
        %1509 = vmatpush1.bf16.msra.mxu0 0
        %1510 = vmatprep.subr.bf16.mxu0 0
        %1511 = vmatpush1.bf16.msra.mxu0 0
        %1512 = vmatprep.subr.bf16.mxu0 0
        %1513 = vmatpush1.bf16.msra.mxu0 0
        %1514 = vmatprep.subr.bf16.mxu0 0
        %1515 = vmatpush1.bf16.msra.mxu0 0
        %1516 = vmatprep.subr.bf16.mxu0 0
        %1517 = vmatpush1.bf16.msra.mxu0 0
        %1518 = vmatprep.subr.bf16.mxu0 0
        %1519 = vmatpush1.bf16.msra.mxu0 0
        %1520 = vmatprep.subr.bf16.mxu0 0
        %1521 = vmatpush1.bf16.msra.mxu0 0
        %1522 = vmatprep.subr.bf16.mxu0 0
        %1523 = vmatpush1.bf16.msra.mxu0 0
        %1524 = vmatprep.mubr.bf16.mxu0 0
        %1525 = vmatmul.mubr.bf16.gmra.mrb[0].mxu0 %v1490
        %v1526 = vpop.f32.mrb[0].mxu0
        %v1527 = vadd.f32 %v1475, %v1526
        %v1528 = vpop.f32.mrb[0].mxu0
        %v1529 = vpop.f32.mrb[0].mxu0
        %v1530 = vpop.f32.mrb[0].mxu0
        %1531 = vdwg.mxu0
        %v1532 = vadd.f32 %v755, %v1527
        %v1533 = vld [vmem:[#allocation17] sm:$0x1]
        %v1534 = vmul.f32 %v1532, %v1532
        %v1535 = vsel %vm758, %v1534, 0.0
        %1536 = vadd.xlane.f32.xlu0 %v1535
        %v1537 = vpop.xlane.xlu0 %1536
        %v1538 = vmul.f32 %v1537, %v762
        %v1539 = vadd.f32 %v1538, 1e-05
        %v1540 = vrsqrt.pop %v1539
        %v1541 = vmul.f32 %v1532, %v1540
        %v1543 = vlaneseq
        %v1544 = vshrl.u32 %v1543, 7
        %v1545 = vsub.s32 0, %v1544
        %v1546 = vrot.slane %v1533, %v1545
        %v1548 = vmul.f32 %v1541, %v1546
        %v1549 = vpack.c.bf16 %v1548, %v1548
        %v1550 = vld [vmem:[#allocation18] sm:$0xf]
        %v1551 = vld [vmem:[#allocation18 + $0x4] sm:$0xf]
        %v1552 = vld [vmem:[#allocation18 + $0x8] sm:$0xf]
        %v1553 = vld [vmem:[#allocation18 + $0xc] sm:$0xf]
        %v1554 = vld [vmem:[#allocation20] sm:$0x1]
        %v1556 = vlaneseq
        %v1557 = vshrl.u32 %v1556, 7
        %v1558 = vsub.s32 0, %v1557
        %v1559 = vrot.slane %v1554, %v1558
        %v1565 = vunpack.c.l.b16 %v1550
        %v1566 = vunpack.c.l.b16 %v1551
        %v1567 = vunpack.c.l.b16 %v1552
        %v1568 = vunpack.c.l.b16 %v1553
        %v1569 = vpack.c.b16 %v1566, %v1565
        %v1570 = vpack.c.b16 %v1568, %v1567
        %v1574 = vsel %vm758, %v1549, 0
        %1576 = vmatprep.subr.bf16.mxu0 0
        %1577 = vmatpush1.bf16.msra.mxu0 %v1569
        %1578 = vmatprep.subr.bf16.mxu0 0
        %1579 = vmatpush1.bf16.msra.mxu0 %v1570
        %1580 = vmatprep.subr.bf16.mxu0 0
        %1581 = vmatpush1.bf16.msra.mxu0 0
        %1582 = vmatprep.subr.bf16.mxu0 0
        %1583 = vmatpush1.bf16.msra.mxu0 0
        %1584 = vmatprep.subr.bf16.mxu0 0
        %1585 = vmatpush1.bf16.msra.mxu0 0
        %1586 = vmatprep.subr.bf16.mxu0 0
        %1587 = vmatpush1.bf16.msra.mxu0 0
        %1588 = vmatprep.subr.bf16.mxu0 0
        %1589 = vmatpush1.bf16.msra.mxu0 0
        %1590 = vmatprep.subr.bf16.mxu0 0
        %1591 = vmatpush1.bf16.msra.mxu0 0
        %1592 = vmatprep.subr.bf16.mxu0 0
        %1593 = vmatpush1.bf16.msra.mxu0 0
        %1594 = vmatprep.subr.bf16.mxu0 0
        %1595 = vmatpush1.bf16.msra.mxu0 0
        %1596 = vmatprep.subr.bf16.mxu0 0
        %1597 = vmatpush1.bf16.msra.mxu0 0
        %1598 = vmatprep.subr.bf16.mxu0 0
        %1599 = vmatpush1.bf16.msra.mxu0 0
        %1600 = vmatprep.subr.bf16.mxu0 0
        %1601 = vmatpush1.bf16.msra.mxu0 0
        %1602 = vmatprep.subr.bf16.mxu0 0
        %1603 = vmatpush1.bf16.msra.mxu0 0
        %1604 = vmatprep.subr.bf16.mxu0 0
        %1605 = vmatpush1.bf16.msra.mxu0 0
        %1606 = vmatprep.subr.bf16.mxu0 0
        %1607 = vmatpush1.bf16.msra.mxu0 0
        %1608 = vmatprep.mubr.bf16.mxu0 0
        %1609 = vmatmul.mubr.bf16.gmra.mrb[0].mxu0 %v1574
        %v1610 = vpop.f32.mrb[0].mxu0
        %v1611 = vadd.f32 %v1559, %v1610
        %v1612 = vpop.f32.mrb[0].mxu0
        %v1613 = vpop.f32.mrb[0].mxu0
        %v1614 = vpop.f32.mrb[0].mxu0
        %1615 = vdwg.mxu0
        %v1616 = vpack.c.bf16 %v1611, %v1611
        %1617 = vst.msk [vmem:[#allocation2] sm:$0xff] %vm758, 0.0
        $region145: #{tpu_custom_call.1} parent=91
          #allocation25 [shape = 'u8[65536]{0}', space=vmem, size = 0x10000, scoped, tag = 'scoped memory for tpu_custom_call.1']
          #allocation26 [shape = 'u8[1024]{0}', space=vmem, size = 0x400, scoped, tag = 'scoped memory for tpu_custom_call.1']
          #allocation27 [shape = 'u8[32768]{0}', space=vmem, size = 0x8000, scoped, tag = 'scoped memory for tpu_custom_call.1']
          $region146: #{tpu_custom_call.1} parent=145
            #allocation28 [shape = 's32[1]{0}', space=sflag, size = 0x4, scoped, tag = 'scoped memory for tpu_custom_call.1']
            %p1619 = scmp.lt.u32.totalorder 128, 8
            %p1620 = pneg %p1619
            // Predicated region
            $region147: #{tpu_custom_call.1} parent=146 // pred_check
              _
            $region148: #{tpu_custom_call.1} parent=146 // pred_check_branch
              %1622 = sbr.rel (%p1619) target = $region150
            $region149: #{tpu_custom_call.1} parent=146 // pred_region
              %s1637 = sand.u32 128, 7
              %p1638 = scmp.eq.s32.totalorder %s1637, 0
              // Predicated region
              $region162: #{tpu_custom_call.1} parent=149 // pred_check
                %p1639 = pneg %p1638
              $region163: #{tpu_custom_call.1} parent=149 // pred_check_branch
                %1641 = sbr.rel (%p1639) target = $region165
              $region164: #{tpu_custom_call.1} parent=149 // pred_region
                loop: start=0, step=1, limit=1
                $region166: #{tpu_custom_call.1} parent=164 // loop_pre_header
                  _
                $region167: #{tpu_custom_call.1} parent=164 // loop_header
                  %s1643 = sphi 0, %s1647
                  %p1644 = scmp.ge.s32.totalorder %s1643, 1
                  %s1648 = sphi %s18, %s18
                  %s1649 = sphi [#allocation25], [#allocation25]
                $region168: #{tpu_custom_call.1} parent=164 // loop_header_branch
                  %1646 = sbr.rel (%p1644) target = $region172
                $region169: #{tpu_custom_call.1} parent=164 // loop_body
                  %v1650 = vld [vmem:[%s1648] sm:$0xff]
                  %1651 = vst [vmem:[%s1649] sm:$0xff] %v1650
                  %v1652 = vld [vmem:[%s1648 + $0x8] sm:$0xff]
                  %1653 = vst [vmem:[%s1649 + $0x8] sm:$0xff] %v1652
                  %v1654 = vld [vmem:[%s1648 + $0x10] sm:$0xff]
                  %1655 = vst [vmem:[%s1649 + $0x10] sm:$0xff] %v1654
                  %v1656 = vld [vmem:[%s1648 + $0x18] sm:$0xff]
                  %1657 = vst [vmem:[%s1649 + $0x18] sm:$0xff] %v1656
                  %v1658 = vld [vmem:[%s1648 + $0x20] sm:$0xff]
                  %1659 = vst [vmem:[%s1649 + $0x20] sm:$0xff] %v1658
                  %v1660 = vld [vmem:[%s1648 + $0x28] sm:$0xff]
                  %1661 = vst [vmem:[%s1649 + $0x28] sm:$0xff] %v1660
                  %v1662 = vld [vmem:[%s1648 + $0x30] sm:$0xff]
                  %1663 = vst [vmem:[%s1649 + $0x30] sm:$0xff] %v1662
                  %v1664 = vld [vmem:[%s1648 + $0x38] sm:$0xff]
                  %1665 = vst [vmem:[%s1649 + $0x38] sm:$0xff] %v1664
                  %v1666 = vld [vmem:[%s1648 + $0x40] sm:$0xff]
                  %1667 = vst [vmem:[%s1649 + $0x40] sm:$0xff] %v1666
                  %v1668 = vld [vmem:[%s1648 + $0x48] sm:$0xff]
                  %1669 = vst [vmem:[%s1649 + $0x48] sm:$0xff] %v1668
                  %v1670 = vld [vmem:[%s1648 + $0x50] sm:$0xff]
                  %1671 = vst [vmem:[%s1649 + $0x50] sm:$0xff] %v1670
                  %v1672 = vld [vmem:[%s1648 + $0x58] sm:$0xff]
                  %1673 = vst [vmem:[%s1649 + $0x58] sm:$0xff] %v1672
                  %v1674 = vld [vmem:[%s1648 + $0x60] sm:$0xff]
                  %1675 = vst [vmem:[%s1649 + $0x60] sm:$0xff] %v1674
                  %v1676 = vld [vmem:[%s1648 + $0x68] sm:$0xff]
                  %1677 = vst [vmem:[%s1649 + $0x68] sm:$0xff] %v1676
                  %v1678 = vld [vmem:[%s1648 + $0x70] sm:$0xff]
                  %1679 = vst [vmem:[%s1649 + $0x70] sm:$0xff] %v1678
                  %v1680 = vld [vmem:[%s1648 + $0x78] sm:$0xff]
                  %1681 = vst [vmem:[%s1649 + $0x78] sm:$0xff] %v1680
                $region170: #{tpu_custom_call.1} parent=164 // loop_footer
                  %s1647 = sadd.s32 1, %s1643
                $region171: #{tpu_custom_call.1} parent=164 // loop_footer_branch
                  %1642 = sbr.rel target = $region167
                $region172: #{tpu_custom_call.1} parent=164 // loop_exit
                  _
              $region165: #{tpu_custom_call.1} parent=149 // pred_fallthru
                _
              %p1682 = pneg %p1638
              // Predicated region
              $region173: #{tpu_custom_call.1} parent=149 // pred_check
                _
              $region174: #{tpu_custom_call.1} parent=149 // pred_check_branch
                %1684 = sbr.rel (%p1638) target = $region176
              $region175: #{tpu_custom_call.1} parent=149 // pred_region
                %s1685 = sand.u32 128, 7
              $region176: #{tpu_custom_call.1} parent=149 // pred_fallthru
                _
            $region150: #{tpu_custom_call.1} parent=146 // pred_fallthru
              _
            // Predicated region
            $region151: #{tpu_custom_call.1} parent=146 // pred_check
              %p1623 = pneg %p1619
            $region152: #{tpu_custom_call.1} parent=146 // pred_check_branch
              %1625 = sbr.rel (%p1623) target = $region154
            $region153: #{tpu_custom_call.1} parent=146 // pred_region
              %s1626 = sshllo.u32 0, 128
              loop: start=0, step=1, limit=1
              $region155: #{tpu_custom_call.1} parent=153 // loop_pre_header
                _
              $region156: #{tpu_custom_call.1} parent=153 // loop_header
                %s1628 = sphi 0, %s1632
                %p1629 = scmp.ge.s32.totalorder %s1628, 1
                %s1633 = sphi %s18, %s18
                %s1634 = sphi [#allocation25], [#allocation25]
              $region157: #{tpu_custom_call.1} parent=153 // loop_header_branch
                %1631 = sbr.rel (%p1629) target = $region161
              $region158: #{tpu_custom_call.1} parent=153 // loop_body
                %v1635 = vld [vmem:[%s1633] sm:%s1626]
                %1636 = vst [vmem:[%s1634] sm:%s1626] %v1635
              $region159: #{tpu_custom_call.1} parent=153 // loop_footer
                %s1632 = sadd.s32 1, %s1628
              $region160: #{tpu_custom_call.1} parent=153 // loop_footer_branch
                %1627 = sbr.rel target = $region156
              $region161: #{tpu_custom_call.1} parent=153 // loop_exit
                _
            $region154: #{tpu_custom_call.1} parent=146 // pred_fallthru
              _
            // Predicated region
            $region177: #{tpu_custom_call.1} parent=146 // pred_check
              _
            $region178: #{tpu_custom_call.1} parent=146 // pred_check_branch
              %1688 = sbr.rel (0) target = $region180
            $region179: #{tpu_custom_call.1} parent=146 // pred_region
              %1689 = vsyncadd [#allocation28], 2048
            $region180: #{tpu_custom_call.1} parent=146 // pred_fallthru
              _
            %s1690 = smul.u32 4, 2
            %s1691 = smul.u32 %s1690, 16
            %s1692 = smul.u32 %s1691, 1
            %s1693 = sshll.u32 %s1692, 4
            %1694 = dma.done [#allocation28], %s1693
          $region181: #{tpu_custom_call.1} parent=145
            #allocation30 [shape = 's32[1]{0}', space=sflag, size = 0x4, scoped, tag = 'scoped memory for tpu_custom_call.1']
            %p1696 = scmp.lt.u32.totalorder 2, 8
            %p1697 = pneg %p1696
            // Predicated region
            $region182: #{tpu_custom_call.1} parent=181 // pred_check
              _
            $region183: #{tpu_custom_call.1} parent=181 // pred_check_branch
              %1699 = sbr.rel (%p1696) target = $region185
            $region184: #{tpu_custom_call.1} parent=181 // pred_region
              %s1714 = sand.u32 2, 7
              %p1715 = scmp.eq.s32.totalorder %s1714, 0
              %p1716 = pneg %p1715
              // Predicated region
              $region197: #{tpu_custom_call.1} parent=184 // pred_check
                _
              $region198: #{tpu_custom_call.1} parent=184 // pred_check_branch
                %1718 = sbr.rel (%p1715) target = $region200
              $region199: #{tpu_custom_call.1} parent=184 // pred_region
                %s1719 = sand.u32 2, 7
                %s1720 = ssub.s32 2, %s1719
                %s1721 = scalar_lea.vmem %s19, %s1720
                %s1722 = ssub.s32 2, %s1719
                %s1723 = scalar_lea.vmem [#allocation26], %s1722
                %s1724 = sshllo.u32 0, %s1719
                loop: start=0, step=1, limit=1
                $region201: #{tpu_custom_call.1} parent=199 // loop_pre_header
                  _
                $region202: #{tpu_custom_call.1} parent=199 // loop_header
                  %s1726 = sphi 0, %s1730
                  %p1727 = scmp.ge.s32.totalorder %s1726, 1
                  %s1731 = sphi %s1721, %s1721
                  %s1732 = sphi %s1723, %s1723
                $region203: #{tpu_custom_call.1} parent=199 // loop_header_branch
                  %1729 = sbr.rel (%p1727) target = $region207
                $region204: #{tpu_custom_call.1} parent=199 // loop_body
                  %v1733 = vld [vmem:[%s1731] sm:%s1724]
                  %1734 = vst [vmem:[%s1732] sm:%s1724] %v1733
                $region205: #{tpu_custom_call.1} parent=199 // loop_footer
                  %s1730 = sadd.s32 1, %s1726
                $region206: #{tpu_custom_call.1} parent=199 // loop_footer_branch
                  %1725 = sbr.rel target = $region202
                $region207: #{tpu_custom_call.1} parent=199 // loop_exit
                  _
              $region200: #{tpu_custom_call.1} parent=184 // pred_fallthru
                _
            $region185: #{tpu_custom_call.1} parent=181 // pred_fallthru
              _
            // Predicated region
            $region186: #{tpu_custom_call.1} parent=181 // pred_check
              %p1700 = pneg %p1696
            $region187: #{tpu_custom_call.1} parent=181 // pred_check_branch
              %1702 = sbr.rel (%p1700) target = $region189
            $region188: #{tpu_custom_call.1} parent=181 // pred_region
              %s1703 = sshllo.u32 0, 2
              loop: start=0, step=1, limit=1
              $region190: #{tpu_custom_call.1} parent=188 // loop_pre_header
                _
              $region191: #{tpu_custom_call.1} parent=188 // loop_header
                %s1705 = sphi 0, %s1709
                %p1706 = scmp.ge.s32.totalorder %s1705, 1
                %s1710 = sphi %s19, %s19
                %s1711 = sphi [#allocation26], [#allocation26]
              $region192: #{tpu_custom_call.1} parent=188 // loop_header_branch
                %1708 = sbr.rel (%p1706) target = $region196
              $region193: #{tpu_custom_call.1} parent=188 // loop_body
                %v1712 = vld [vmem:[%s1710] sm:%s1703]
                %1713 = vst [vmem:[%s1711] sm:%s1703] %v1712
              $region194: #{tpu_custom_call.1} parent=188 // loop_footer
                %s1709 = sadd.s32 1, %s1705
              $region195: #{tpu_custom_call.1} parent=188 // loop_footer_branch
                %1704 = sbr.rel target = $region191
              $region196: #{tpu_custom_call.1} parent=188 // loop_exit
                _
            $region189: #{tpu_custom_call.1} parent=181 // pred_fallthru
              _
            // Predicated region
            $region208: #{tpu_custom_call.1} parent=181 // pred_check
              _
            $region209: #{tpu_custom_call.1} parent=181 // pred_check_branch
              %1737 = sbr.rel (0) target = $region211
            $region210: #{tpu_custom_call.1} parent=181 // pred_region
              %1738 = vsyncadd [#allocation30], 32
            $region211: #{tpu_custom_call.1} parent=181 // pred_fallthru
              _
            %s1739 = smul.u32 2, 1
            %s1740 = sshll.u32 %s1739, 4
            %1741 = dma.done [#allocation30], %s1740
          $region212: #{tpu_custom_call.1} parent=145
            #allocation32 [shape = 's32[1]{0}', space=sflag, size = 0x4, scoped, tag = 'scoped memory for tpu_custom_call.1']
            %p1743 = scmp.lt.u32.totalorder 64, 8
            %p1744 = pneg %p1743
            // Predicated region
            $region213: #{tpu_custom_call.1} parent=212 // pred_check
              _
            $region214: #{tpu_custom_call.1} parent=212 // pred_check_branch
              %1746 = sbr.rel (%p1743) target = $region216
            $region215: #{tpu_custom_call.1} parent=212 // pred_region
              %s1761 = sand.u32 64, 7
              %p1762 = scmp.eq.s32.totalorder %s1761, 0
              // Predicated region
              $region228: #{tpu_custom_call.1} parent=215 // pred_check
                %p1763 = pneg %p1762
              $region229: #{tpu_custom_call.1} parent=215 // pred_check_branch
                %1765 = sbr.rel (%p1763) target = $region231
              $region230: #{tpu_custom_call.1} parent=215 // pred_region
                loop: start=0, step=1, limit=1
                $region232: #{tpu_custom_call.1} parent=230 // loop_pre_header
                  _
                $region233: #{tpu_custom_call.1} parent=230 // loop_header
                  %s1767 = sphi 0, %s1771
                  %p1768 = scmp.ge.s32.totalorder %s1767, 1
                  %s1772 = sphi %s20, %s20
                  %s1773 = sphi [#allocation27], [#allocation27]
                $region234: #{tpu_custom_call.1} parent=230 // loop_header_branch
                  %1770 = sbr.rel (%p1768) target = $region238
                $region235: #{tpu_custom_call.1} parent=230 // loop_body
                  %v1774 = vld [vmem:[%s1772] sm:$0xff]
                  %1775 = vst [vmem:[%s1773] sm:$0xff] %v1774
                  %v1776 = vld [vmem:[%s1772 + $0x8] sm:$0xff]
                  %1777 = vst [vmem:[%s1773 + $0x8] sm:$0xff] %v1776
                  %v1778 = vld [vmem:[%s1772 + $0x10] sm:$0xff]
                  %1779 = vst [vmem:[%s1773 + $0x10] sm:$0xff] %v1778
                  %v1780 = vld [vmem:[%s1772 + $0x18] sm:$0xff]
                  %1781 = vst [vmem:[%s1773 + $0x18] sm:$0xff] %v1780
                  %v1782 = vld [vmem:[%s1772 + $0x20] sm:$0xff]
                  %1783 = vst [vmem:[%s1773 + $0x20] sm:$0xff] %v1782
                  %v1784 = vld [vmem:[%s1772 + $0x28] sm:$0xff]
                  %1785 = vst [vmem:[%s1773 + $0x28] sm:$0xff] %v1784
                  %v1786 = vld [vmem:[%s1772 + $0x30] sm:$0xff]
                  %1787 = vst [vmem:[%s1773 + $0x30] sm:$0xff] %v1786
                  %v1788 = vld [vmem:[%s1772 + $0x38] sm:$0xff]
                  %1789 = vst [vmem:[%s1773 + $0x38] sm:$0xff] %v1788
                $region236: #{tpu_custom_call.1} parent=230 // loop_footer
                  %s1771 = sadd.s32 1, %s1767
                $region237: #{tpu_custom_call.1} parent=230 // loop_footer_branch
                  %1766 = sbr.rel target = $region233
                $region238: #{tpu_custom_call.1} parent=230 // loop_exit
                  _
              $region231: #{tpu_custom_call.1} parent=215 // pred_fallthru
                _
              %p1790 = pneg %p1762
              // Predicated region
              $region239: #{tpu_custom_call.1} parent=215 // pred_check
                _
              $region240: #{tpu_custom_call.1} parent=215 // pred_check_branch
                %1792 = sbr.rel (%p1762) target = $region242
              $region241: #{tpu_custom_call.1} parent=215 // pred_region
                %s1793 = sand.u32 64, 7
              $region242: #{tpu_custom_call.1} parent=215 // pred_fallthru
                _
            $region216: #{tpu_custom_call.1} parent=212 // pred_fallthru
              _
            // Predicated region
            $region217: #{tpu_custom_call.1} parent=212 // pred_check
              %p1747 = pneg %p1743
            $region218: #{tpu_custom_call.1} parent=212 // pred_check_branch
              %1749 = sbr.rel (%p1747) target = $region220
            $region219: #{tpu_custom_call.1} parent=212 // pred_region
              %s1750 = sshllo.u32 0, 64
              loop: start=0, step=1, limit=1
              $region221: #{tpu_custom_call.1} parent=219 // loop_pre_header
                _
              $region222: #{tpu_custom_call.1} parent=219 // loop_header
                %s1752 = sphi 0, %s1756
                %p1753 = scmp.ge.s32.totalorder %s1752, 1
                %s1757 = sphi %s20, %s20
                %s1758 = sphi [#allocation27], [#allocation27]
              $region223: #{tpu_custom_call.1} parent=219 // loop_header_branch
                %1755 = sbr.rel (%p1753) target = $region227
              $region224: #{tpu_custom_call.1} parent=219 // loop_body
                %v1759 = vld [vmem:[%s1757] sm:%s1750]
                %1760 = vst [vmem:[%s1758] sm:%s1750] %v1759
              $region225: #{tpu_custom_call.1} parent=219 // loop_footer
                %s1756 = sadd.s32 1, %s1752
              $region226: #{tpu_custom_call.1} parent=219 // loop_footer_branch
                %1751 = sbr.rel target = $region222
              $region227: #{tpu_custom_call.1} parent=219 // loop_exit
                _
            $region220: #{tpu_custom_call.1} parent=212 // pred_fallthru
              _
            // Predicated region
            $region243: #{tpu_custom_call.1} parent=212 // pred_check
              _
            $region244: #{tpu_custom_call.1} parent=212 // pred_check_branch
              %1796 = sbr.rel (0) target = $region246
            $region245: #{tpu_custom_call.1} parent=212 // pred_region
              %1797 = vsyncadd [#allocation32], 1024
            $region246: #{tpu_custom_call.1} parent=212 // pred_fallthru
              _
            %s1798 = smul.u32 4, 16
            %s1799 = smul.u32 %s1798, 1
            %s1800 = sshll.u32 %s1799, 4
            %1801 = dma.done [#allocation32], %s1800
          %v1802 = vld [vmem:[#allocation26] sm:$0x3]
          %v1803 = vld [vmem:[#allocation25] sm:$0xff]
          %v1804 = vld [vmem:[#allocation25 + $0x8] sm:$0xff]
          %v1805 = vld [vmem:[#allocation25 + $0x10] sm:$0xff]
          %v1806 = vld [vmem:[#allocation25 + $0x18] sm:$0xff]
          %v1807 = vld [vmem:[#allocation25 + $0x20] sm:$0xff]
          %v1808 = vld [vmem:[#allocation25 + $0x28] sm:$0xff]
          %v1809 = vld [vmem:[#allocation25 + $0x30] sm:$0xff]
          %v1810 = vld [vmem:[#allocation25 + $0x38] sm:$0xff]
          %v1811 = vlaneseq
          %v1812 = vshrl.u32 %v1811, 7
          %v1813 = vsub.s32 0, %v1812
          %v1814 = vrot.slane %v1802, %v1813
          %1815 = vmatprep.subr.bf16.mxu0 0
          %1816 = vmatpush1.bf16.msra.mxu0 %v1803
          %1817 = vmatprep.subr.bf16.mxu0 0
          %1818 = vmatpush1.bf16.msra.mxu0 %v1804
          %1819 = vmatprep.subr.bf16.mxu0 0
          %1820 = vmatpush1.bf16.msra.mxu0 %v1805
          %1821 = vmatprep.subr.bf16.mxu0 0
          %1822 = vmatpush1.bf16.msra.mxu0 %v1806
          %1823 = vmatprep.subr.bf16.mxu0 0
          %1824 = vmatpush1.bf16.msra.mxu0 %v1807
          %1825 = vmatprep.subr.bf16.mxu0 0
          %1826 = vmatpush1.bf16.msra.mxu0 %v1808
          %1827 = vmatprep.subr.bf16.mxu0 0
          %1828 = vmatpush1.bf16.msra.mxu0 %v1809
          %1829 = vmatprep.subr.bf16.mxu0 0
          %1830 = vmatpush1.bf16.msra.mxu0 %v1810
          %1831 = vmatprep.subr.bf16.mxu0 0
          %1832 = vmatpush1.bf16.msra.mxu0 0
          %1833 = vmatprep.subr.bf16.mxu0 0
          %1834 = vmatpush1.bf16.msra.mxu0 0
          %1835 = vmatprep.subr.bf16.mxu0 0
          %1836 = vmatpush1.bf16.msra.mxu0 0
          %1837 = vmatprep.subr.bf16.mxu0 0
          %1838 = vmatpush1.bf16.msra.mxu0 0
          %1839 = vmatprep.subr.bf16.mxu0 0
          %1840 = vmatpush1.bf16.msra.mxu0 0
          %1841 = vmatprep.subr.bf16.mxu0 0
          %1842 = vmatpush1.bf16.msra.mxu0 0
          %1843 = vmatprep.subr.bf16.mxu0 0
          %1844 = vmatpush1.bf16.msra.mxu0 0
          %1845 = vmatprep.subr.bf16.mxu0 0
          %1846 = vmatpush1.bf16.msra.mxu0 0
          %1847 = vmatprep.mubr.bf16.mxu0 0
          %1848 = vmatmul.mubr.bf16.gmra.mrb[0].mxu0 %v1616
          %v1849 = vpop.f32.mrb[0].mxu0
          %v1850 = vadd.f32 %v1814, %v1849
          %v1851 = vpop.f32.mrb[0].mxu0
          %v1852 = vpop.f32.mrb[0].mxu0
          %v1853 = vpop.f32.mrb[0].mxu0
          %1854 = vdwg.mxu0
          %s1855 = scalar_lea.vmem [#allocation25], 64
          %v1856 = vld [vmem:[%s1855] sm:$0xff]
          %v1857 = vld [vmem:[%s1855 + $0x8] sm:$0xff]
          %v1858 = vld [vmem:[%s1855 + $0x10] sm:$0xff]
          %v1859 = vld [vmem:[%s1855 + $0x18] sm:$0xff]
          %v1860 = vld [vmem:[%s1855 + $0x20] sm:$0xff]
          %v1861 = vld [vmem:[%s1855 + $0x28] sm:$0xff]
          %v1862 = vld [vmem:[%s1855 + $0x30] sm:$0xff]
          %v1863 = vld [vmem:[%s1855 + $0x38] sm:$0xff]
          %v1864 = vlaneseq
          %v1865 = vshrl.u32 %v1864, 7
          %v1866 = vsub.s32 1, %v1865
          %v1867 = vrot.slane %v1802, %v1866
          %1868 = vmatprep.subr.bf16.mxu0 0
          %1869 = vmatpush1.bf16.msra.mxu0 %v1856
          %1870 = vmatprep.subr.bf16.mxu0 0
          %1871 = vmatpush1.bf16.msra.mxu0 %v1857
          %1872 = vmatprep.subr.bf16.mxu0 0
          %1873 = vmatpush1.bf16.msra.mxu0 %v1858
          %1874 = vmatprep.subr.bf16.mxu0 0
          %1875 = vmatpush1.bf16.msra.mxu0 %v1859
          %1876 = vmatprep.subr.bf16.mxu0 0
          %1877 = vmatpush1.bf16.msra.mxu0 %v1860
          %1878 = vmatprep.subr.bf16.mxu0 0
          %1879 = vmatpush1.bf16.msra.mxu0 %v1861
          %1880 = vmatprep.subr.bf16.mxu0 0
          %1881 = vmatpush1.bf16.msra.mxu0 %v1862
          %1882 = vmatprep.subr.bf16.mxu0 0
          %1883 = vmatpush1.bf16.msra.mxu0 %v1863
          %1884 = vmatprep.subr.bf16.mxu0 0
          %1885 = vmatpush1.bf16.msra.mxu0 0
          %1886 = vmatprep.subr.bf16.mxu0 0
          %1887 = vmatpush1.bf16.msra.mxu0 0
          %1888 = vmatprep.subr.bf16.mxu0 0
          %1889 = vmatpush1.bf16.msra.mxu0 0
          %1890 = vmatprep.subr.bf16.mxu0 0
          %1891 = vmatpush1.bf16.msra.mxu0 0
          %1892 = vmatprep.subr.bf16.mxu0 0
          %1893 = vmatpush1.bf16.msra.mxu0 0
          %1894 = vmatprep.subr.bf16.mxu0 0
          %1895 = vmatpush1.bf16.msra.mxu0 0
          %1896 = vmatprep.subr.bf16.mxu0 0
          %1897 = vmatpush1.bf16.msra.mxu0 0
          %1898 = vmatprep.subr.bf16.mxu0 0
          %1899 = vmatpush1.bf16.msra.mxu0 0
          %1900 = vmatprep.mubr.bf16.mxu0 0
          %1901 = vmatmul.mubr.bf16.gmra.mrb[0].mxu0 %v1616
          %v1902 = vpop.f32.mrb[0].mxu0
          %v1903 = vadd.f32 %v1867, %v1902
          %v1904 = vpop.f32.mrb[0].mxu0
          %v1905 = vpop.f32.mrb[0].mxu0
          %v1906 = vpop.f32.mrb[0].mxu0
          %1907 = vdwg.mxu0
          %v1908 = vxor.u32 %v1850, 2147483648
          %v1909 = vmul.f32 %v1908, 1.442695
          %v1910 = vpow.pop %v1909
          %v1911 = vadd.f32 %v1910, 1.0
          %v1912 = vrcp.pop %v1911
          %v1913 = vmul.f32 1.0, %v1912
          %v1914 = vmul.f32 %v1850, %v1913
          %v1915 = vmul.f32 %v1914, %v1903
          %v1916 = vld [vmem:[#allocation2] sm:$0xff]
          %v1917 = vpack.c.bf16 %v1915, %v1915
          %v1918 = vld [vmem:[#allocation27] sm:$0xff]
          %v1919 = vld [vmem:[#allocation27 + $0x8] sm:$0xff]
          %v1920 = vld [vmem:[#allocation27 + $0x10] sm:$0xff]
          %v1921 = vld [vmem:[#allocation27 + $0x18] sm:$0xff]
          %v1922 = vld [vmem:[#allocation27 + $0x20] sm:$0xff]
          %v1923 = vld [vmem:[#allocation27 + $0x28] sm:$0xff]
          %v1924 = vld [vmem:[#allocation27 + $0x30] sm:$0xff]
          %v1925 = vld [vmem:[#allocation27 + $0x38] sm:$0xff]
          %1926 = vmatprep.subr.bf16.mxu0 0
          %1927 = vmatpush1.bf16.msra.mxu0 %v1918
          %1928 = vmatprep.subr.bf16.mxu0 0
          %1929 = vmatpush1.bf16.msra.mxu0 %v1919
          %1930 = vmatprep.subr.bf16.mxu0 0
          %1931 = vmatpush1.bf16.msra.mxu0 %v1920
          %1932 = vmatprep.subr.bf16.mxu0 0
          %1933 = vmatpush1.bf16.msra.mxu0 %v1921
          %1934 = vmatprep.subr.bf16.mxu0 0
          %1935 = vmatpush1.bf16.msra.mxu0 %v1922
          %1936 = vmatprep.subr.bf16.mxu0 0
          %1937 = vmatpush1.bf16.msra.mxu0 %v1923
          %1938 = vmatprep.subr.bf16.mxu0 0
          %1939 = vmatpush1.bf16.msra.mxu0 %v1924
          %1940 = vmatprep.subr.bf16.mxu0 0
          %1941 = vmatpush1.bf16.msra.mxu0 %v1925
          %1942 = vmatprep.subr.bf16.mxu0 0
          %1943 = vmatpush1.bf16.msra.mxu0 0
          %1944 = vmatprep.subr.bf16.mxu0 0
          %1945 = vmatpush1.bf16.msra.mxu0 0
          %1946 = vmatprep.subr.bf16.mxu0 0
          %1947 = vmatpush1.bf16.msra.mxu0 0
          %1948 = vmatprep.subr.bf16.mxu0 0
          %1949 = vmatpush1.bf16.msra.mxu0 0
          %1950 = vmatprep.subr.bf16.mxu0 0
          %1951 = vmatpush1.bf16.msra.mxu0 0
          %1952 = vmatprep.subr.bf16.mxu0 0
          %1953 = vmatpush1.bf16.msra.mxu0 0
          %1954 = vmatprep.subr.bf16.mxu0 0
          %1955 = vmatpush1.bf16.msra.mxu0 0
          %1956 = vmatprep.subr.bf16.mxu0 0
          %1957 = vmatpush1.bf16.msra.mxu0 0
          %1958 = vmatprep.mubr.bf16.mxu0 0
          %1959 = vmatmul.mubr.bf16.gmra.mrb[0].mxu0 %v1917
          %v1960 = vpop.f32.mrb[0].mxu0
          %v1961 = vadd.f32 0.0, %v1960
          %v1962 = vpop.f32.mrb[0].mxu0
          %v1963 = vpop.f32.mrb[0].mxu0
          %v1964 = vpop.f32.mrb[0].mxu0
          %1965 = vdwg.mxu0
          %v1966 = vadd.f32 %v1916, %v1961
          %1967 = vst.msk [vmem:[#allocation2] sm:$0xff] %vm758, %v1966
        %v1968 = vld [vmem:[#allocation2] sm:$0xff]
        %v1969 = vld [vmem:[#allocation21] sm:$0x1]
        %v1971 = vlaneseq
        %v1972 = vshrl.u32 %v1971, 7
        %v1973 = vsub.s32 0, %v1972
        %v1974 = vrot.slane %v1969, %v1973
        %v1976 = vadd.f32 %v1968, %v1974
        %v1977 = vld [vmem:[#allocation23] sm:$0x1]
        %v1978 = vmul.f32 %v1976, %v1976
        %v1979 = vsel %vm758, %v1978, 0.0
        %1980 = vadd.xlane.f32.xlu0 %v1979
        %v1981 = vpop.xlane.xlu0 %1980
        %v1982 = vmul.f32 %v1981, %v762
        %v1983 = vadd.f32 %v1982, 1e-05
        %v1984 = vrsqrt.pop %v1983
        %v1985 = vmul.f32 %v1976, %v1984
        %v1987 = vlaneseq
        %v1988 = vshrl.u32 %v1987, 7
        %v1989 = vsub.s32 0, %v1988
        %v1990 = vrot.slane %v1977, %v1989
        %v1992 = vmul.f32 %v1985, %v1990
        %v1993 = vadd.f32 %v1532, %v1992
        %1994 = vst.msk [vmem:[%s753] sm:$0xff] %vm758, %v1993
        %s1995 = sand.u32 %s435, 1
        %s1996 = scalar_lea.sflag [#allocation5], %s1995
        %s1997 = sand.u32 %s435, 1
        %s1998 = smul.addr %s1997, 8
        %s1999 = scalar_lea.vmem [#allocation24], %s1998
        // Predicated region
        $region247: #{tpu_custom_call.1} parent=91 // pred_check
          %p2000 = pneg %p445
        $region248: #{tpu_custom_call.1} parent=91 // pred_check_branch
          %2002 = sbr.rel (%p2000) target = $region250
        $region249: #{tpu_custom_call.1} parent=91 // pred_region
          %s2004 = ssub.s32 128, 128
          %2005 = vsyncadd %s1996, %s2004
          %s2006 = smul.addr %s44, 128
          %s2007 = scalar_lea.hbm %s21, %s2006
          %s2009 = sshll.u32 %s1999, 4
          %s2010 = int_to_ptr.vmem [resolvable:$true] %s2009
          %2012 = dma.vmem_to_hbm [thread:$0]  %s2010, 128, %s2007, %s1996
        $region250: #{tpu_custom_call.1} parent=91 // pred_fallthru
          _
      $region92: #{tpu_custom_call.1} parent=5 // pred_fallthru
        _
      %p2013 = scmp.le.s32.totalorder 2, %s39
      // Predicated region
      $region251: #{tpu_custom_call.1} parent=5 // pred_check
        %p2014 = pneg %p2013
      $region252: #{tpu_custom_call.1} parent=5 // pred_check_branch
        %2016 = sbr.rel (%p2014) target = $region254
      $region253: #{tpu_custom_call.1} parent=5 // pred_region
        %s2017 = ssub.s32 %s39, 2
        // Predicated region
        $region255: #{tpu_custom_call.1} parent=253 // pred_check
          %p2018 = pneg %p451
        $region256: #{tpu_custom_call.1} parent=253 // pred_check_branch
          %2020 = sbr.rel (%p2018) target = $region258
        $region257: #{tpu_custom_call.1} parent=253 // pred_region
          %s2021 = sand.u32 %s436, 1
          %s2022 = scalar_lea.sflag [#allocation5], %s2021
          %s2023 = sand.u32 %s436, 1
          %s2024 = smul.addr %s2023, 8
          %s2025 = scalar_lea.vmem [#allocation24], %s2024
          %2026 = dma.done %s2022, 128
        $region258: #{tpu_custom_call.1} parent=253 // pred_fallthru
          _
      $region254: #{tpu_custom_call.1} parent=5 // pred_fallthru
        _
    $region6: #{tpu_custom_call.1} parent=1 // loop_footer
      %s43 = sadd.s32 1, %s39
    $region7: #{tpu_custom_call.1} parent=1 // loop_footer_branch
      %38 = sbr.rel target = $region3
    $region8: #{tpu_custom_call.1} parent=1 // loop_exit
      _
    %2027 = vsyncpa [#allocation4], 1
    %s2028 = scalar_lea.sflag [#allocation4], 1
    %2029 = vsyncpa %s2028, 1
    %2030 = vsyncpa [#allocation7], 1
    %2031 = vsyncpa [#allocation10], 1
    %2032 = vsyncpa [#allocation13], 1
    %2033 = vsyncpa [#allocation16], 1
    %2034 = vsyncpa [#allocation19], 1
    %2035 = vsyncpa [#allocation22], 1
    %2036 = vsyncpa [#allocation5], 1
    %s2037 = scalar_lea.sflag [#allocation5], 1
    %2038 = vsyncpa %s2037, 1

</llo_original>
